<compile_context>
chip_gen: v7x
topology: tpu7x:2x2x1
jax: 0.10.0
libtpu: 0.0.40
codegen_flags: <defaults>
</compile_context>

<pallas_src>
import functools

import jax
import jax.numpy as jnp
from jax import lax
from jax.experimental import pallas as pl
from jax.experimental.pallas import tpu as pltpu


# ---------------------------------------------------------------------------
# Kernel 1: layer-norm statistics per (b, c), tiled over WH ("arbitrary" axis),
# accumulated in VMEM scratch.  Only the tiny (B, C, 1) mean / rstd leave the
# kernel -- the normalized activation itself is never written to HBM.
# ---------------------------------------------------------------------------
def ln_stats_kernel(x_ref, mu_ref, rstd_ref, s1, s2, *, inv_n):
    t = pl.program_id(1)

    @pl.when(t == 0)
    def _():
        s1[...] = jnp.zeros_like(s1)
        s2[...] = jnp.zeros_like(s2)

    xt = x_ref[0]                                        # (C, st)
    s1[...] += jnp.sum(xt, axis=1, keepdims=True)
    s2[...] += jnp.sum(xt * xt, axis=1, keepdims=True)

    @pl.when(t == pl.num_programs(1) - 1)
    def _():
        mean = s1[...] * inv_n
        var = s2[...] * inv_n - mean * mean
        mu_ref[0] = mean
        rstd_ref[0] = lax.rsqrt(var + 1e-5)


# ---------------------------------------------------------------------------
# Kernel 2: fused LN-apply + q/k/v projection (folded 1x1->3x3 convs) +
# channel-attention accumulation + softmax + fold of the output 1x1 conv.
#   grid = (B, W // tw); the w-tile axis is the reduction ("arbitrary") axis.
#   per tile:  slice a haloed window from the per-batch resident padded block,
#              scale by rstd, form the 9 taps in VMEM, one matmul per tap into
#              qkv (f32), emit the v tile, accumulate A += k^T q in VMEM.
#   last tile: P = softmax(flatten(A));  M = W4 @ P^T  written once per batch.
# ---------------------------------------------------------------------------
def qkv_attn_kernel(xpad_ref, rstd_ref, w_ref, w4_ref, m_ref, v_ref, a_sc,
                    *, C, tw, H):
    t = pl.program_id(1)

    @pl.when(t == 0)
    def _():
        a_sc[...] = jnp.zeros_like(a_sc)

    # Haloed window of the centered / masked / zero-padded activation.
    w0 = pl.multiple_of(t * tw, tw)
    halo = xpad_ref[0, pl.ds(w0, tw + 2), :, :].astype(jnp.float32)
    halo = halo * rstd_ref[0]          # LN scale per channel; mask channel scale = 1

    # Folded (1x1 -> 3x3) q/k/v projection: 9 shifted-view matmuls, f32 accumulate.
    # Reshapes only merge leading dims (lane layout untouched).
    acc = jnp.zeros((tw * H, 3 * C), jnp.float32)
    for kh in range(3):
        for kw in range(3):
            tap = halo[kh:kh + tw, kw:kw + H, :].reshape(tw * H, C + 1)
            acc = acc + jnp.dot(tap.astype(w_ref.dtype), w_ref[kh * 3 + kw],
                                preferred_element_type=jnp.float32)

    q = acc[:, 0:C]
    k = acc[:, C:2 * C]
    v = acc[:, 2 * C:3 * C]

    v_ref[0] = v.astype(v_ref.dtype)
    # A[c1, c2] += sum_s k[s, c1] * q[s, c2]
    a_sc[...] += lax.dot_general(k, q, (((0,), (0,)), ((), ())),
                                 preferred_element_type=jnp.float32)

    @pl.when(t == pl.num_programs(1) - 1)
    def _():
        A = a_sc[...]
        mx = jnp.max(jnp.max(A, axis=1, keepdims=True), axis=0, keepdims=True)
        e = jnp.exp(A - mx)
        s = jnp.sum(jnp.sum(e, axis=1, keepdims=True), axis=0, keepdims=True)
        p = e / s                                        # exact; once per batch
        # Fold the output 1x1 conv into the attention matrix:
        #   M[o, c1] = sum_c2 w4[o, c2] * P[c1, c2]   ->   y = v @ M^T + b4
        m_ref[0] = lax.dot_general(w4_ref[...], p, (((1,), (1,)), ((), ())),
                                   preferred_element_type=jnp.float32)


# ---------------------------------------------------------------------------
# Kernel 3: apply the folded attention+output matrix per tile: y = v @ M^T + b4.
# ---------------------------------------------------------------------------
def attn_out_kernel(m_ref, v_ref, b4_ref, y_ref):
    v = v_ref[0]                                         # (tw*H, C)
    m = m_ref[0].astype(v.dtype)                         # (C, C) = W4 @ P^T
    y = lax.dot_general(v, m, (((1,), (1,)), ((), ())),
                        preferred_element_type=jnp.float32)
    y_ref[0] = y + b4_ref[...]


# ---------------------------------------------------------------------------
# Parameter folding: Conv1x1(+b1) -> Conv3x3(pad1, +b3) as 9 per-tap (C+1, C)
# matrices over [normalized x channels, valid-mask] in channels-last layout.
# The mask channel (1 inside the image, 0 in the zero-padding) carries the 1x1
# bias so border pixels are exact; the 3x3 bias rides the always-1 center tap.
# ---------------------------------------------------------------------------
def _fold_branch(w1, b1, w3, b3):
    C = w1.shape[0]
    w1m = w1[:, :, 0, 0]                                     # (out=C, in=C)
    wc = jnp.einsum('omkl,mc->klco', w3, w1m)                # (3, 3, C_in, C_out)
    bt = jnp.einsum('omkl,m->klo', w3, b1)[:, :, None, :]    # (3, 3, 1, C_out)
    w = jnp.concatenate([wc, bt], axis=2).reshape(9, C + 1, C)
    w = w.at[4, C, :].add(b3)                                # center tap, mask row
    return w


def mdta_forward(x, params, *, w_tile=None, stats_tile=None,
                 stream_dtype=jnp.float32):
    B, C, W, H = x.shape
    WH = W * H
    x = x.astype(jnp.float32)

    if w_tile is None:
        w_tile = next((t for t in (64, 32, 16, 8) if W % t == 0), W)
    tw = w_tile
    assert W % tw == 0 and (tw == W or (tw * H) % 8 == 0), "bad w_tile"
    n_t = W // tw

    if stats_tile is None:
        stats_tile = next(
            (t for t in (4096, 2048, 1024, 512, 256, 128) if WH % t == 0), WH)
    st = stats_tile
    assert WH % st == 0 and (st == WH or st % 128 == 0), "bad stats_tile"
    n_s = WH // st

    # ---- kernel 1: LN statistics (tiled, accumulated in VMEM) ----
    mu, rstd = pl.pallas_call(
        functools.partial(ln_stats_kernel, inv_n=1.0 / WH),
        out_shape=(jax.ShapeDtypeStruct((B, C, 1), jnp.float32),
                   jax.ShapeDtypeStruct((B, C, 1), jnp.float32)),
        grid=(B, n_s),
        in_specs=[pl.BlockSpec((1, C, st), lambda b, t: (b, 0, t))],
        out_specs=(pl.BlockSpec((1, C, 1), lambda b, t: (b, 0, 0)),
                   pl.BlockSpec((1, C, 1), lambda b, t: (b, 0, 0))),
        scratch_shapes=[pltpu.VMEM((C, 1), jnp.float32),
                        pltpu.VMEM((C, 1), jnp.float32)],
        compiler_params=pltpu.CompilerParams(
            dimension_semantics=("parallel", "arbitrary")),
    )(x.reshape(B, C, WH))

    # ---- glue (single fused XLA pass): center, append valid-mask channel,
    # channels-last, zero-pad, cast to the streaming dtype. ----
    xc = x - mu.reshape(B, C, 1, 1)
    xc = jnp.concatenate([xc, jnp.ones((B, 1, W, H), jnp.float32)], axis=1)
    xc = jnp.transpose(xc, (0, 2, 3, 1))                 # (B, W, H, C+1)
    xpad = jnp.pad(xc, ((0, 0), (1, 1), (1, 1), (0, 0))).astype(stream_dtype)

    rstd_ext = jnp.concatenate(
        [rstd.reshape(B, C), jnp.ones((B, 1), jnp.float32)], axis=1
    ).reshape(B, 1, C + 1)                               # mask-channel scale = 1

    # ---- fold the three (1x1 -> 3x3) conv pairs into one per-tap weight ----
    wqkv = jnp.concatenate(
        [_fold_branch(params['w1q'], params['b1q'], params['w3q'], params['b3q']),
         _fold_branch(params['w1k'], params['b1k'], params['w3k'], params['b3k']),
         _fold_branch(params['w1v'], params['b1v'], params['w3v'], params['b3v'])],
        axis=2).astype(stream_dtype)                     # (9, C+1, 3C)
    w4m = params['w4'][:, :, 0, 0].astype(jnp.float32)   # (C, C)
    b4r = params['b4'].reshape(1, C).astype(jnp.float32)

    # ---- kernel 2: fused LN-apply + qkv + attention matrix + softmax + W4 fold ----
    m_mat, v_mat = pl.pallas_call(
        functools.partial(qkv_attn_kernel, C=C, tw=tw, H=H),
        out_shape=(jax.ShapeDtypeStruct((B, C, C), jnp.float32),
                   jax.ShapeDtypeStruct((B, WH, C), stream_dtype)),
        grid=(B, n_t),
        in_specs=[
            pl.BlockSpec((1, W + 2, H + 2, C + 1), lambda b, t: (b, 0, 0, 0)),
            pl.BlockSpec((1, 1, C + 1), lambda b, t: (b, 0, 0)),
            pl.BlockSpec((9, C + 1, 3 * C), lambda b, t: (0, 0, 0)),
            pl.BlockSpec((C, C), lambda b, t: (0, 0)),
        ],
        out_specs=(pl.BlockSpec((1, C, C), lambda b, t: (b, 0, 0)),
                   pl.BlockSpec((1, tw * H, C), lambda b, t: (b, t, 0))),
        scratch_shapes=[pltpu.VMEM((C, C), jnp.float32)],
        compiler_params=pltpu.CompilerParams(
            dimension_semantics=("parallel", "arbitrary")),
    )(xpad, rstd_ext, wqkv, w4m)

    # ---- kernel 3: y = v @ M^T + b4, streamed per tile ----
    y = pl.pallas_call(
        attn_out_kernel,
        out_shape=jax.ShapeDtypeStruct((B, WH, C), jnp.float32),
        grid=(B, n_t),
        in_specs=[pl.BlockSpec((1, C, C), lambda b, t: (b, 0, 0)),
                  pl.BlockSpec((1, tw * H, C), lambda b, t: (b, t, 0)),
                  pl.BlockSpec((1, C), lambda b, t: (0, 0))],
        out_specs=pl.BlockSpec((1, tw * H, C), lambda b, t: (b, t, 0)),
        compiler_params=pltpu.CompilerParams(
            dimension_semantics=("parallel", "parallel")),
    )(m_mat, v_mat, b4r)

    # ---- epilogue (XLA, single fused pass): the module re-reads the flat '(w h)'
    # axis as '(h w)'; fuse that reindex with the f32 residual add. ----
    return y.reshape(B, H, W, C).transpose(0, 3, 2, 1) + x


# ---------------------------------------------------------------------------
# Pure-JAX reference (mirrors the PyTorch forward exactly) for validation.
# Note: faithfully single-head with the module's globally-flattened softmax.
# ---------------------------------------------------------------------------
def mdta_reference(x, params):
    B, C, W, H = x.shape
    mean = x.mean(axis=(2, 3), keepdims=True)
    var = ((x - mean) ** 2).mean(axis=(2, 3), keepdims=True)
    xn = (x - mean) / jnp.sqrt(var + 1e-5)

    def conv1x1(z, w, b):
        return jnp.einsum('bchw,oc->bohw', z, w[:, :, 0, 0]) + b[None, :, None, None]

    def conv3x3(z, w, b):
        y = lax.conv_general_dilated(z, w, (1, 1), ((1, 1), (1, 1)),
                                     dimension_numbers=('NCHW', 'OIHW', 'NCHW'))
        return y + b[None, :, None, None]

    q = conv3x3(conv1x1(xn, params['w1q'], params['b1q']), params['w3q'], params['b3q'])
    k = conv3x3(conv1x1(xn, params['w1k'], params['b1k']), params['w3k'], params['b3k'])
    v = conv3x3(conv1x1(xn, params['w1v'], params['b1v']), params['w3v'], params['b3v'])

    q_ = q.reshape(B, C, W * H).transpose(0, 2, 1)   # b (w h) c
    k_ = k.reshape(B, C, W * H)                      # b c (w h)
    v_ = v.reshape(B, C, W * H).transpose(0, 2, 1)   # b (w h) c

    A = jnp.matmul(k_, q_)                           # (B, C, C)
    A = jax.nn.softmax(A.reshape(B, C * C), axis=1).reshape(B, C, C)
    vo = jnp.matmul(v_, A)                           # (B, WH, C)
    vo = vo.reshape(B, H, W, C).transpose(0, 3, 2, 1)    # 'b (h w) c -> b c w h'
    return conv1x1(vo, params['w4'], params['b4']) + x


# ---------------------------------------------------------------------------
def make_params(key, C):
    keys = jax.random.split(key, 14)
    scale = 0.1
    p = {}
    names = [('w1q', (C, C, 1, 1)), ('b1q', (C,)), ('w3q', (C, C, 3, 3)), ('b3q', (C,)),
             ('w1k', (C, C, 1, 1)), ('b1k', (C,)), ('w3k', (C, C, 3, 3)), ('b3k', (C,)),
             ('w1v', (C, C, 1, 1)), ('b1v', (C,)), ('w3v', (C, C, 3, 3)), ('b3v', (C,)),
             ('w4', (C, C, 1, 1)), ('b4', (C,))]
    for k_i, (name, shape) in zip(keys, names):
        p[name] = scale * jax.random.normal(k_i, shape, dtype=jnp.float32)
    return p


if __name__ == "__main__":
    root = jax.random.PRNGKey(0)
    kx, kp, kx2 = jax.random.split(root, 3)

    # ---- square case (f32 streaming, tight tolerance); 2 w-tiles + 2 stats tiles
    # exercise both accumulation paths. ----
    B, C, W, H = 2, 4, 16, 16
    x = jax.random.normal(kx, (B, C, W, H), dtype=jnp.float32)
    params = make_params(kp, C)

    fwd = jax.jit(functools.partial(mdta_forward, w_tile=8, stats_tile=128))
    out = jax.block_until_ready(fwd(x, params))
    ref = mdta_reference(x, params)
    assert out.shape == ref.shape == (B, C, W, H)
    err = float(jnp.max(jnp.abs(out - ref)))
    assert err < 1e-3, f"f32 square: max abs diff {err}"

    # ---- rectangular case (W != H) to pin the '(w h)' vs '(h w)' reindexing ----
    x2 = jax.random.normal(kx2, (1, C, 16, 8), dtype=jnp.float32)
    fwd2 = jax.jit(functools.partial(mdta_forward, w_tile=4))
    out2 = jax.block_until_ready(fwd2(x2, params))
    ref2 = mdta_reference(x2, params)
    err2 = float(jnp.max(jnp.abs(out2 - ref2)))
    assert err2 < 1e-3, f"f32 rect: max abs diff {err2}"

    # ---- bf16-streamed case (activation / weights / v tiles in bf16, f32
    # accumulation, softmax, LN stats, residual); loose tolerance. ----
    fwd_bf16 = jax.jit(functools.partial(mdta_forward, w_tile=8, stats_tile=128,
                                         stream_dtype=jnp.bfloat16))
    out3 = jax.block_until_ready(fwd_bf16(x, params))
    err3 = float(jnp.max(jnp.abs(out3 - ref)))
    assert err3 < 5e-2, f"bf16 stream: max abs diff {err3}"

    print("KERNEL_OK")
</pallas_src>

<mosaic_0001>
module attributes {stable_mosaic.version = 11 : i64} {
  func.func @ln_stats_kernel(%arg0: i32, %arg1: i32, %arg2: memref<1x4x128xf32, #tpu.memory_space<vmem>>, %arg3: memref<1x4x1xf32, #tpu.memory_space<vmem>>, %arg4: memref<1x4x1xf32, #tpu.memory_space<vmem>>, %arg5: memref<4x1xf32, #tpu.memory_space<vmem>>, %arg6: memref<4x1xf32, #tpu.memory_space<vmem>>) attributes {dimension_semantics = [#tpu.dimension_semantics<parallel>, #tpu.dimension_semantics<arbitrary>], iteration_bounds = array<i64: 2, 2>, scalar_prefetch = 0 : i64, scratch_operands = 2 : i64, tpu.core_type = #tpu.core_type<tc>, window_params = [{transform_indices = @transform_0, window_bounds = array<i64: 1, 4, 128>}, {transform_indices = @transform_1, window_bounds = array<i64: 1, 4, 1>}, {transform_indices = @transform_2, window_bounds = array<i64: 1, 4, 1>}]} {
    %c0_i32 = arith.constant 0 : i32
    %0 = arith.cmpi eq, %arg1, %c0_i32 : i32
    %1 = arith.extui %0 : i1 to i32
    %c0_i32_0 = arith.constant 0 : i32
    %2 = arith.cmpi ne, %1, %c0_i32_0 : i32
    scf.if %2 {
      %cst_13 = arith.constant 0.000000e+00 : f32
      %19 = vector.broadcast %cst_13 : f32 to vector<4x1xf32>
      %c0_14 = arith.constant 0 : index
      %c0_15 = arith.constant 0 : index
      %20 = vector.load %arg5[%c0_14, %c0_15] : memref<4x1xf32, #tpu.memory_space<vmem>>, vector<4x1xf32>
      tpu.vector_store %arg5[%c0_14, %c0_15], %19 {strides = array<i32>} : memref<4x1xf32, #tpu.memory_space<vmem>>, vector<4x1xf32>,
      %cst_16 = arith.constant 0.000000e+00 : f32
      %21 = vector.broadcast %cst_16 : f32 to vector<4x1xf32>
      %c0_17 = arith.constant 0 : index
      %c0_18 = arith.constant 0 : index
      %22 = vector.load %arg6[%c0_17, %c0_18] : memref<4x1xf32, #tpu.memory_space<vmem>>, vector<4x1xf32>
      tpu.vector_store %arg6[%c0_17, %c0_18], %21 {strides = array<i32>} : memref<4x1xf32, #tpu.memory_space<vmem>>, vector<4x1xf32>,
    } else {
    }
    %c0 = arith.constant 0 : index
    %c0_1 = arith.constant 0 : index
    %c0_2 = arith.constant 0 : index
    %3 = vector.load %arg2[%c0, %c0_1, %c0_2] : memref<1x4x128xf32, #tpu.memory_space<vmem>>, vector<1x4x128xf32>
    %4 = vector.shape_cast %3 : vector<1x4x128xf32> to vector<4x128xf32>
    %c0_3 = arith.constant 0 : index
    %c0_4 = arith.constant 0 : index
    %5 = vector.load %arg5[%c0_3, %c0_4] : memref<4x1xf32, #tpu.memory_space<vmem>>, vector<4x1xf32>
    %cst = arith.constant dense<0.000000e+00> : vector<4xf32>
    %6 = vector.multi_reduction <add>, %4, %cst [1] : vector<4x128xf32> to vector<4xf32>
    %7 = vector.shape_cast %6 : vector<4xf32> to vector<4x1xf32>
    %8 = arith.addf %5, %7 : vector<4x1xf32>
    %c0_5 = arith.constant 0 : index
    %c0_6 = arith.constant 0 : index
    %9 = vector.load %arg5[%c0_5, %c0_6] : memref<4x1xf32, #tpu.memory_space<vmem>>, vector<4x1xf32>
    tpu.vector_store %arg5[%c0_5, %c0_6], %8 {strides = array<i32>} : memref<4x1xf32, #tpu.memory_space<vmem>>, vector<4x1xf32>,
    %c0_7 = arith.constant 0 : index
    %c0_8 = arith.constant 0 : index
    %10 = vector.load %arg6[%c0_7, %c0_8] : memref<4x1xf32, #tpu.memory_space<vmem>>, vector<4x1xf32>
    %11 = arith.mulf %4, %4 : vector<4x128xf32>
    %cst_9 = arith.constant dense<0.000000e+00> : vector<4xf32>
    %12 = vector.multi_reduction <add>, %11, %cst_9 [1] : vector<4x128xf32> to vector<4xf32>
    %13 = vector.shape_cast %12 : vector<4xf32> to vector<4x1xf32>
    %14 = arith.addf %10, %13 : vector<4x1xf32>
    %c0_10 = arith.constant 0 : index
    %c0_11 = arith.constant 0 : index
    %15 = vector.load %arg6[%c0_10, %c0_11] : memref<4x1xf32, #tpu.memory_space<vmem>>, vector<4x1xf32>
    tpu.vector_store %arg6[%c0_10, %c0_11], %14 {strides = array<i32>} : memref<4x1xf32, #tpu.memory_space<vmem>>, vector<4x1xf32>,
    %c1_i32 = arith.constant 1 : i32
    %16 = arith.cmpi eq, %arg1, %c1_i32 : i32
    %17 = arith.extui %16 : i1 to i32
    %c0_i32_12 = arith.constant 0 : i32
    %18 = arith.cmpi ne, %17, %c0_i32_12 : i32
    scf.if %18 {
      %c0_13 = arith.constant 0 : index
      %c0_14 = arith.constant 0 : index
      %19 = vector.load %arg5[%c0_13, %c0_14] : memref<4x1xf32, #tpu.memory_space<vmem>>, vector<4x1xf32>
      %cst_15 = arith.constant 3.906250e-03 : f32
      %20 = vector.broadcast %cst_15 : f32 to vector<4x1xf32>
      %21 = arith.mulf %19, %20 : vector<4x1xf32>
      %c0_16 = arith.constant 0 : index
      %c0_17 = arith.constant 0 : index
      %22 = vector.load %arg6[%c0_16, %c0_17] : memref<4x1xf32, #tpu.memory_space<vmem>>, vector<4x1xf32>
      %cst_18 = arith.constant 3.906250e-03 : f32
      %23 = vector.broadcast %cst_18 : f32 to vector<4x1xf32>
      %24 = arith.mulf %22, %23 : vector<4x1xf32>
      %25 = arith.mulf %21, %21 : vector<4x1xf32>
      %26 = arith.subf %24, %25 : vector<4x1xf32>
      %c0_19 = arith.constant 0 : index
      %c0_20 = arith.constant 0 : index
      %c0_21 = arith.constant 0 : index
      %27 = vector.load %arg3[%c0_19, %c0_20, %c0_21] : memref<1x4x1xf32, #tpu.memory_space<vmem>>, vector<1x4x1xf32>
      %28 = vector.shape_cast %27 : vector<1x4x1xf32> to vector<4x1xf32>
      %29 = vector.shape_cast %21 : vector<4x1xf32> to vector<1x4x1xf32>
      tpu.vector_store %arg3[%c0_19, %c0_20, %c0_21], %29 {strides = array<i32>} : memref<1x4x1xf32, #tpu.memory_space<vmem>>, vector<1x4x1xf32>,
      %cst_22 = arith.constant 9.99999974E-6 : f32
      %30 = vector.broadcast %cst_22 : f32 to vector<4x1xf32>
      %31 = arith.addf %26, %30 : vector<4x1xf32>
      %32 = math.rsqrt %31 : vector<4x1xf32>
      %c0_23 = arith.constant 0 : index
      %c0_24 = arith.constant 0 : index
      %c0_25 = arith.constant 0 : index
      %33 = vector.load %arg4[%c0_23, %c0_24, %c0_25] : memref<1x4x1xf32, #tpu.memory_space<vmem>>, vector<1x4x1xf32>
      %34 = vector.shape_cast %33 : vector<1x4x1xf32> to vector<4x1xf32>
      %35 = vector.shape_cast %32 : vector<4x1xf32> to vector<1x4x1xf32>
      tpu.vector_store %arg4[%c0_23, %c0_24, %c0_25], %35 {strides = array<i32>} : memref<1x4x1xf32, #tpu.memory_space<vmem>>, vector<1x4x1xf32>,
    } else {
    }
    return
  }
  func.func @transform_0(%arg0: i32, %arg1: i32) -> (i32, i32, i32) {
    %c0_i32 = arith.constant 0 : i32
    %c0_i32_0 = arith.constant 0 : i32
    return %arg0, %c0_i32, %arg1 : i32, i32, i32
  }
  func.func @transform_1(%arg0: i32, %arg1: i32) -> (i32, i32, i32) {
    %c0_i32 = arith.constant 0 : i32
    %c0_i32_0 = arith.constant 0 : i32
    %c0_i32_1 = arith.constant 0 : i32
    return %arg0, %c0_i32, %c0_i32_0 : i32, i32, i32
  }
  func.func @transform_2(%arg0: i32, %arg1: i32) -> (i32, i32, i32) {
    %c0_i32 = arith.constant 0 : i32
    %c0_i32_0 = arith.constant 0 : i32
    %c0_i32_1 = arith.constant 0 : i32
    return %arg0, %c0_i32, %c0_i32_0 : i32, i32, i32
  }
}

module attributes {stable_mosaic.version = 11 : i64} {
  func.func @attn_out_kernel(%arg0: i32, %arg1: i32, %arg2: memref<1x4x4xf32, #tpu.memory_space<vmem>>, %arg3: memref<1x128x4xf32, #tpu.memory_space<vmem>>, %arg4: memref<1x4xf32, #tpu.memory_space<vmem>>, %arg5: memref<1x128x4xf32, #tpu.memory_space<vmem>>) attributes {dimension_semantics = [#tpu.dimension_semantics<parallel>, #tpu.dimension_semantics<parallel>], iteration_bounds = array<i64: 2, 2>, scalar_prefetch = 0 : i64, scratch_operands = 0 : i64, tpu.core_type = #tpu.core_type<tc>, window_params = [{transform_indices = @transform_0, window_bounds = array<i64: 1, 4, 4>}, {transform_indices = @transform_1, window_bounds = array<i64: 1, 128, 4>}, {pipeline_mode = #tpu.pipeline_mode<synchronous>, transform_indices = @transform_2, window_bounds = array<i64: 1, 4>}, {transform_indices = @transform_3, window_bounds = array<i64: 1, 128, 4>}]} {
    %c0 = arith.constant 0 : index
    %c0_0 = arith.constant 0 : index
    %c0_1 = arith.constant 0 : index
    %0 = vector.load %arg3[%c0, %c0_0, %c0_1] : memref<1x128x4xf32, #tpu.memory_space<vmem>>, vector<1x128x4xf32>
    %1 = vector.shape_cast %0 : vector<1x128x4xf32> to vector<128x4xf32>
    %c0_2 = arith.constant 0 : index
    %c0_3 = arith.constant 0 : index
    %c0_4 = arith.constant 0 : index
    %2 = vector.load %arg2[%c0_2, %c0_3, %c0_4] : memref<1x4x4xf32, #tpu.memory_space<vmem>>, vector<1x4x4xf32>
    %3 = vector.shape_cast %2 : vector<1x4x4xf32> to vector<4x4xf32>
    %cst = arith.constant dense<0.000000e+00> : vector<128x4xf32>
    %4 = tpu.matmul %1, %3, %cst {dimension_numbers = #tpu.dot_dimension_numbers<[1], [1], [0], [0], [0, 0, 1, 0], [], []>} : vector<128x4xf32>, vector<4x4xf32>, vector<128x4xf32> -> vector<128x4xf32>
    %c0_5 = arith.constant 0 : index
    %c0_6 = arith.constant 0 : index
    %5 = vector.load %arg4[%c0_5, %c0_6] : memref<1x4xf32, #tpu.memory_space<vmem>>, vector<1x4xf32>
    %6 = vector.broadcast %5 : vector<1x4xf32> to vector<128x4xf32>
    %7 = arith.addf %4, %6 : vector<128x4xf32>
    %c0_7 = arith.constant 0 : index
    %c0_8 = arith.constant 0 : index
    %c0_9 = arith.constant 0 : index
    %8 = vector.load %arg5[%c0_7, %c0_8, %c0_9] : memref<1x128x4xf32, #tpu.memory_space<vmem>>, vector<1x128x4xf32>
    %9 = vector.shape_cast %8 : vector<1x128x4xf32> to vector<128x4xf32>
    %10 = vector.shape_cast %7 : vector<128x4xf32> to vector<1x128x4xf32>
    tpu.vector_store %arg5[%c0_7, %c0_8, %c0_9], %10 {strides = array<i32>} : memref<1x128x4xf32, #tpu.memory_space<vmem>>, vector<1x128x4xf32>,
    return
  }
  func.func @transform_0(%arg0: i32, %arg1: i32) -> (i32, i32, i32) {
    %c0_i32 = arith.constant 0 : i32
    %c0_i32_0 = arith.constant 0 : i32
    %c0_i32_1 = arith.constant 0 : i32
    return %arg0, %c0_i32, %c0_i32_0 : i32, i32, i32
  }
  func.func @transform_1(%arg0: i32, %arg1: i32) -> (i32, i32, i32) {
    %c0_i32 = arith.constant 0 : i32
    %c0_i32_0 = arith.constant 0 : i32
    return %arg0, %arg1, %c0_i32 : i32, i32, i32
  }
  func.func @transform_2(%arg0: i32, %arg1: i32) -> (i32, i32) {
    %c0_i32 = arith.constant 0 : i32
    %c0_i32_0 = arith.constant 0 : i32
    %c0_i32_1 = arith.constant 0 : i32
    return %c0_i32, %c0_i32_0 : i32, i32
  }
  func.func @transform_3(%arg0: i32, %arg1: i32) -> (i32, i32, i32) {
    %c0_i32 = arith.constant 0 : i32
    %c0_i32_0 = arith.constant 0 : i32
    return %arg0, %arg1, %c0_i32 : i32, i32, i32
  }
}

module attributes {stable_mosaic.version = 11 : i64} {
  func.func @qkv_attn_kernel(%arg0: i32, %arg1: i32, %arg2: memref<1x18x18x5xf32, #tpu.memory_space<vmem>>, %arg3: memref<1x1x5xf32, #tpu.memory_space<vmem>>, %arg4: memref<9x5x12xf32, #tpu.memory_space<vmem>>, %arg5: memref<4x4xf32, #tpu.memory_space<vmem>>, %arg6: memref<1x4x4xf32, #tpu.memory_space<vmem>>, %arg7: memref<1x128x4xf32, #tpu.memory_space<vmem>>, %arg8: memref<4x4xf32, #tpu.memory_space<vmem>>) attributes {dimension_semantics = [#tpu.dimension_semantics<parallel>, #tpu.dimension_semantics<arbitrary>], iteration_bounds = array<i64: 2, 2>, scalar_prefetch = 0 : i64, scratch_operands = 1 : i64, tpu.core_type = #tpu.core_type<tc>, window_params = [{transform_indices = @transform_0, window_bounds = array<i64: 1, 18, 18, 5>}, {transform_indices = @transform_1, window_bounds = array<i64: 1, 1, 5>}, {pipeline_mode = #tpu.pipeline_mode<synchronous>, transform_indices = @transform_2, window_bounds = array<i64: 9, 5, 12>}, {pipeline_mode = #tpu.pipeline_mode<synchronous>, transform_indices = @transform_3, window_bounds = array<i64: 4, 4>}, {transform_indices = @transform_4, window_bounds = array<i64: 1, 4, 4>}, {transform_indices = @transform_5, window_bounds = array<i64: 1, 128, 4>}]} {
    %c0_i32 = arith.constant 0 : i32
    %0 = arith.cmpi eq, %arg1, %c0_i32 : i32
    %1 = arith.extui %0 : i1 to i32
    %c0_i32_0 = arith.constant 0 : i32
    %2 = arith.cmpi ne, %1, %c0_i32_0 : i32
    scf.if %2 {
      %cst_43 = arith.constant 0.000000e+00 : f32
      %81 = vector.broadcast %cst_43 : f32 to vector<4x4xf32>
      %c0_44 = arith.constant 0 : index
      %c0_45 = arith.constant 0 : index
      %82 = vector.load %arg8[%c0_44, %c0_45] : memref<4x4xf32, #tpu.memory_space<vmem>>, vector<4x4xf32>
      tpu.vector_store %arg8[%c0_44, %c0_45], %81 {strides = array<i32>} : memref<4x4xf32, #tpu.memory_space<vmem>>, vector<4x4xf32>,
    } else {
    }
    %c8_i32 = arith.constant 8 : i32
    %3 = arith.muli %arg1, %c8_i32 : i32
    %4 = tpu.assume_multiple %3, 8 : i32
    %c0 = arith.constant 0 : index
    %5 = arith.index_cast %4 : i32 to index
    %c0_1 = arith.constant 0 : index
    %c0_2 = arith.constant 0 : index
    %6 = vector.load %arg2[%c0, %5, %c0_1, %c0_2] : memref<1x18x18x5xf32, #tpu.memory_space<vmem>>, vector<1x10x18x5xf32>
    %7 = vector.shape_cast %6 : vector<1x10x18x5xf32> to vector<10x18x5xf32>
    %c0_3 = arith.constant 0 : index
    %c0_4 = arith.constant 0 : index
    %c0_5 = arith.constant 0 : index
    %8 = vector.load %arg3[%c0_3, %c0_4, %c0_5] : memref<1x1x5xf32, #tpu.memory_space<vmem>>, vector<1x1x5xf32>
    %9 = vector.shape_cast %8 : vector<1x1x5xf32> to vector<1x5xf32>
    %10 = vector.shape_cast %9 : vector<1x5xf32> to vector<1x1x5xf32>
    %11 = vector.broadcast %10 : vector<1x1x5xf32> to vector<10x18x5xf32>
    %12 = arith.mulf %7, %11 : vector<10x18x5xf32>
    %cst = arith.constant 0.000000e+00 : f32
    %13 = vector.broadcast %cst : f32 to vector<128x12xf32>
    %14 = vector.extract_strided_slice %12 {offsets = [0, 0, 0], sizes = [8, 16, 5], strides = [1, 1, 1]} : vector<10x18x5xf32> to vector<8x16x5xf32>
    %15 = vector.shape_cast %14 : vector<8x16x5xf32> to vector<128x5xf32>
    %c0_6 = arith.constant 0 : index
    %c0_7 = arith.constant 0 : index
    %c0_8 = arith.constant 0 : index
    %16 = vector.load %arg4[%c0_6, %c0_7, %c0_8] : memref<9x5x12xf32, #tpu.memory_space<vmem>>, vector<1x5x12xf32>
    %17 = vector.shape_cast %16 : vector<1x5x12xf32> to vector<5x12xf32>
    %cst_9 = arith.constant dense<0.000000e+00> : vector<128x12xf32>
    %18 = tpu.matmul %15, %17, %cst_9 {dimension_numbers = #tpu.dot_dimension_numbers<[1], [0], [0], [1], [0, 0, 1, 1], [], []>} : vector<128x5xf32>, vector<5x12xf32>, vector<128x12xf32> -> vector<128x12xf32>
    %19 = arith.addf %13, %18 : vector<128x12xf32>
    %20 = vector.extract_strided_slice %12 {offsets = [0, 1, 0], sizes = [8, 16, 5], strides = [1, 1, 1]} : vector<10x18x5xf32> to vector<8x16x5xf32>
    %21 = vector.shape_cast %20 : vector<8x16x5xf32> to vector<128x5xf32>
    %c1 = arith.constant 1 : index
    %c0_10 = arith.constant 0 : index
    %c0_11 = arith.constant 0 : index
    %22 = vector.load %arg4[%c1, %c0_10, %c0_11] : memref<9x5x12xf32, #tpu.memory_space<vmem>>, vector<1x5x12xf32>
    %23 = vector.shape_cast %22 : vector<1x5x12xf32> to vector<5x12xf32>
    %cst_12 = arith.constant dense<0.000000e+00> : vector<128x12xf32>
    %24 = tpu.matmul %21, %23, %cst_12 {dimension_numbers = #tpu.dot_dimension_numbers<[1], [0], [0], [1], [0, 0, 1, 1], [], []>} : vector<128x5xf32>, vector<5x12xf32>, vector<128x12xf32> -> vector<128x12xf32>
    %25 = arith.addf %19, %24 : vector<128x12xf32>
    %26 = vector.extract_strided_slice %12 {offsets = [0, 2, 0], sizes = [8, 16, 5], strides = [1, 1, 1]} : vector<10x18x5xf32> to vector<8x16x5xf32>
    %27 = vector.shape_cast %26 : vector<8x16x5xf32> to vector<128x5xf32>
    %c2 = arith.constant 2 : index
    %c0_13 = arith.constant 0 : index
    %c0_14 = arith.constant 0 : index
    %28 = vector.load %arg4[%c2, %c0_13, %c0_14] : memref<9x5x12xf32, #tpu.memory_space<vmem>>, vector<1x5x12xf32>
    %29 = vector.shape_cast %28 : vector<1x5x12xf32> to vector<5x12xf32>
    %cst_15 = arith.constant dense<0.000000e+00> : vector<128x12xf32>
    %30 = tpu.matmul %27, %29, %cst_15 {dimension_numbers = #tpu.dot_dimension_numbers<[1], [0], [0], [1], [0, 0, 1, 1], [], []>} : vector<128x5xf32>, vector<5x12xf32>, vector<128x12xf32> -> vector<128x12xf32>
    %31 = arith.addf %25, %30 : vector<128x12xf32>
    %32 = vector.extract_strided_slice %12 {offsets = [1, 0, 0], sizes = [8, 16, 5], strides = [1, 1, 1]} : vector<10x18x5xf32> to vector<8x16x5xf32>
    %33 = vector.shape_cast %32 : vector<8x16x5xf32> to vector<128x5xf32>
    %c3 = arith.constant 3 : index
    %c0_16 = arith.constant 0 : index
    %c0_17 = arith.constant 0 : index
    %34 = vector.load %arg4[%c3, %c0_16, %c0_17] : memref<9x5x12xf32, #tpu.memory_space<vmem>>, vector<1x5x12xf32>
    %35 = vector.shape_cast %34 : vector<1x5x12xf32> to vector<5x12xf32>
    %cst_18 = arith.constant dense<0.000000e+00> : vector<128x12xf32>
    %36 = tpu.matmul %33, %35, %cst_18 {dimension_numbers = #tpu.dot_dimension_numbers<[1], [0], [0], [1], [0, 0, 1, 1], [], []>} : vector<128x5xf32>, vector<5x12xf32>, vector<128x12xf32> -> vector<128x12xf32>
    %37 = arith.addf %31, %36 : vector<128x12xf32>
    %38 = vector.extract_strided_slice %12 {offsets = [1, 1, 0], sizes = [8, 16, 5], strides = [1, 1, 1]} : vector<10x18x5xf32> to vector<8x16x5xf32>
    %39 = vector.shape_cast %38 : vector<8x16x5xf32> to vector<128x5xf32>
    %c4 = arith.constant 4 : index
    %c0_19 = arith.constant 0 : index
    %c0_20 = arith.constant 0 : index
    %40 = vector.load %arg4[%c4, %c0_19, %c0_20] : memref<9x5x12xf32, #tpu.memory_space<vmem>>, vector<1x5x12xf32>
    %41 = vector.shape_cast %40 : vector<1x5x12xf32> to vector<5x12xf32>
    %cst_21 = arith.constant dense<0.000000e+00> : vector<128x12xf32>
    %42 = tpu.matmul %39, %41, %cst_21 {dimension_numbers = #tpu.dot_dimension_numbers<[1], [0], [0], [1], [0, 0, 1, 1], [], []>} : vector<128x5xf32>, vector<5x12xf32>, vector<128x12xf32> -> vector<128x12xf32>
    %43 = arith.addf %37, %42 : vector<128x12xf32>
    %44 = vector.extract_strided_slice %12 {offsets = [1, 2, 0], sizes = [8, 16, 5], strides = [1, 1, 1]} : vector<10x18x5xf32> to vector<8x16x5xf32>
    %45 = vector.shape_cast %44 : vector<8x16x5xf32> to vector<128x5xf32>
    %c5 = arith.constant 5 : index
    %c0_22 = arith.constant 0 : index
    %c0_23 = arith.constant 0 : index
    %46 = vector.load %arg4[%c5, %c0_22, %c0_23] : memref<9x5x12xf32, #tpu.memory_space<vmem>>, vector<1x5x12xf32>
    %47 = vector.shape_cast %46 : vector<1x5x12xf32> to vector<5x12xf32>
    %cst_24 = arith.constant dense<0.000000e+00> : vector<128x12xf32>
    %48 = tpu.matmul %45, %47, %cst_24 {dimension_numbers = #tpu.dot_dimension_numbers<[1], [0], [0], [1], [0, 0, 1, 1], [], []>} : vector<128x5xf32>, vector<5x12xf32>, vector<128x12xf32> -> vector<128x12xf32>
    %49 = arith.addf %43, %48 : vector<128x12xf32>
    %50 = vector.extract_strided_slice %12 {offsets = [2, 0, 0], sizes = [8, 16, 5], strides = [1, 1, 1]} : vector<10x18x5xf32> to vector<8x16x5xf32>
    %51 = vector.shape_cast %50 : vector<8x16x5xf32> to vector<128x5xf32>
    %c6 = arith.constant 6 : index
    %c0_25 = arith.constant 0 : index
    %c0_26 = arith.constant 0 : index
    %52 = vector.load %arg4[%c6, %c0_25, %c0_26] : memref<9x5x12xf32, #tpu.memory_space<vmem>>, vector<1x5x12xf32>
    %53 = vector.shape_cast %52 : vector<1x5x12xf32> to vector<5x12xf32>
    %cst_27 = arith.constant dense<0.000000e+00> : vector<128x12xf32>
    %54 = tpu.matmul %51, %53, %cst_27 {dimension_numbers = #tpu.dot_dimension_numbers<[1], [0], [0], [1], [0, 0, 1, 1], [], []>} : vector<128x5xf32>, vector<5x12xf32>, vector<128x12xf32> -> vector<128x12xf32>
    %55 = arith.addf %49, %54 : vector<128x12xf32>
    %56 = vector.extract_strided_slice %12 {offsets = [2, 1, 0], sizes = [8, 16, 5], strides = [1, 1, 1]} : vector<10x18x5xf32> to vector<8x16x5xf32>
    %57 = vector.shape_cast %56 : vector<8x16x5xf32> to vector<128x5xf32>
    %c7 = arith.constant 7 : index
    %c0_28 = arith.constant 0 : index
    %c0_29 = arith.constant 0 : index
    %58 = vector.load %arg4[%c7, %c0_28, %c0_29] : memref<9x5x12xf32, #tpu.memory_space<vmem>>, vector<1x5x12xf32>
    %59 = vector.shape_cast %58 : vector<1x5x12xf32> to vector<5x12xf32>
    %cst_30 = arith.constant dense<0.000000e+00> : vector<128x12xf32>
    %60 = tpu.matmul %57, %59, %cst_30 {dimension_numbers = #tpu.dot_dimension_numbers<[1], [0], [0], [1], [0, 0, 1, 1], [], []>} : vector<128x5xf32>, vector<5x12xf32>, vector<128x12xf32> -> vector<128x12xf32>
    %61 = arith.addf %55, %60 : vector<128x12xf32>
    %62 = vector.extract_strided_slice %12 {offsets = [2, 2, 0], sizes = [8, 16, 5], strides = [1, 1, 1]} : vector<10x18x5xf32> to vector<8x16x5xf32>
    %63 = vector.shape_cast %62 : vector<8x16x5xf32> to vector<128x5xf32>
    %c8 = arith.constant 8 : index
    %c0_31 = arith.constant 0 : index
    %c0_32 = arith.constant 0 : index
    %64 = vector.load %arg4[%c8, %c0_31, %c0_32] : memref<9x5x12xf32, #tpu.memory_space<vmem>>, vector<1x5x12xf32>
    %65 = vector.shape_cast %64 : vector<1x5x12xf32> to vector<5x12xf32>
    %cst_33 = arith.constant dense<0.000000e+00> : vector<128x12xf32>
    %66 = tpu.matmul %63, %65, %cst_33 {dimension_numbers = #tpu.dot_dimension_numbers<[1], [0], [0], [1], [0, 0, 1, 1], [], []>} : vector<128x5xf32>, vector<5x12xf32>, vector<128x12xf32> -> vector<128x12xf32>
    %67 = arith.addf %61, %66 : vector<128x12xf32>
    %68 = vector.extract_strided_slice %67 {offsets = [0, 0], sizes = [128, 4], strides = [1, 1]} : vector<128x12xf32> to vector<128x4xf32>
    %69 = vector.extract_strided_slice %67 {offsets = [0, 4], sizes = [128, 4], strides = [1, 1]} : vector<128x12xf32> to vector<128x4xf32>
    %70 = vector.extract_strided_slice %67 {offsets = [0, 8], sizes = [128, 4], strides = [1, 1]} : vector<128x12xf32> to vector<128x4xf32>
    %c0_34 = arith.constant 0 : index
    %c0_35 = arith.constant 0 : index
    %c0_36 = arith.constant 0 : index
    %71 = vector.load %arg7[%c0_34, %c0_35, %c0_36] : memref<1x128x4xf32, #tpu.memory_space<vmem>>, vector<1x128x4xf32>
    %72 = vector.shape_cast %71 : vector<1x128x4xf32> to vector<128x4xf32>
    %73 = vector.shape_cast %70 : vector<128x4xf32> to vector<1x128x4xf32>
    tpu.vector_store %arg7[%c0_34, %c0_35, %c0_36], %73 {strides = array<i32>} : memref<1x128x4xf32, #tpu.memory_space<vmem>>, vector<1x128x4xf32>,
    %c0_37 = arith.constant 0 : index
    %c0_38 = arith.constant 0 : index
    %74 = vector.load %arg8[%c0_37, %c0_38] : memref<4x4xf32, #tpu.memory_space<vmem>>, vector<4x4xf32>
    %cst_39 = arith.constant dense<0.000000e+00> : vector<4x4xf32>
    %75 = tpu.matmul %69, %68, %cst_39 {dimension_numbers = #tpu.dot_dimension_numbers<[0], [0], [1], [1], [0, 1, 1, 1], [], []>} : vector<128x4xf32>, vector<128x4xf32>, vector<4x4xf32> -> vector<4x4xf32>
    %76 = arith.addf %74, %75 : vector<4x4xf32>
    %c0_40 = arith.constant 0 : index
    %c0_41 = arith.constant 0 : index
    %77 = vector.load %arg8[%c0_40, %c0_41] : memref<4x4xf32, #tpu.memory_space<vmem>>, vector<4x4xf32>
    tpu.vector_store %arg8[%c0_40, %c0_41], %76 {strides = array<i32>} : memref<4x4xf32, #tpu.memory_space<vmem>>, vector<4x4xf32>,
    %c1_i32 = arith.constant 1 : i32
    %78 = arith.cmpi eq, %arg1, %c1_i32 : i32
    %79 = arith.extui %78 : i1 to i32
    %c0_i32_42 = arith.constant 0 : i32
    %80 = arith.cmpi ne, %79, %c0_i32_42 : i32
    scf.if %80 {
      %c0_43 = arith.constant 0 : index
      %c0_44 = arith.constant 0 : index
      %81 = vector.load %arg8[%c0_43, %c0_44] : memref<4x4xf32, #tpu.memory_space<vmem>>, vector<4x4xf32>
      %cst_45 = arith.constant dense<0xFF800000> : vector<4xf32>
      %82 = vector.multi_reduction <maximumf>, %81, %cst_45 [1] : vector<4x4xf32> to vector<4xf32>
      %83 = vector.shape_cast %82 : vector<4xf32> to vector<4x1xf32>
      %cst_46 = arith.constant dense<0xFF800000> : vector<1xf32>
      %84 = vector.multi_reduction <maximumf>, %83, %cst_46 [0] : vector<4x1xf32> to vector<1xf32>
      %85 = vector.shape_cast %84 : vector<1xf32> to vector<1x1xf32>
      %86 = vector.broadcast %85 : vector<1x1xf32> to vector<4x4xf32>
      %87 = arith.subf %81, %86 : vector<4x4xf32>
      %88 = math.exp %87 : vector<4x4xf32>
      %cst_47 = arith.constant dense<0.000000e+00> : vector<4xf32>
      %89 = vector.multi_reduction <add>, %88, %cst_47 [1] : vector<4x4xf32> to vector<4xf32>
      %90 = vector.shape_cast %89 : vector<4xf32> to vector<4x1xf32>
      %cst_48 = arith.constant dense<0.000000e+00> : vector<1xf32>
      %91 = vector.multi_reduction <add>, %90, %cst_48 [0] : vector<4x1xf32> to vector<1xf32>
      %92 = vector.shape_cast %91 : vector<1xf32> to vector<1x1xf32>
      %93 = vector.broadcast %92 : vector<1x1xf32> to vector<4x4xf32>
      %94 = arith.divf %88, %93 : vector<4x4xf32>
      %c0_49 = arith.constant 0 : index
      %c0_50 = arith.constant 0 : index
      %95 = vector.load %arg5[%c0_49, %c0_50] : memref<4x4xf32, #tpu.memory_space<vmem>>, vector<4x4xf32>
      %cst_51 = arith.constant dense<0.000000e+00> : vector<4x4xf32>
      %96 = tpu.matmul %95, %94, %cst_51 {dimension_numbers = #tpu.dot_dimension_numbers<[1], [1], [0], [0], [0, 0, 1, 0], [], []>} : vector<4x4xf32>, vector<4x4xf32>, vector<4x4xf32> -> vector<4x4xf32>
      %c0_52 = arith.constant 0 : index
      %c0_53 = arith.constant 0 : index
      %c0_54 = arith.constant 0 : index
      %97 = vector.load %arg6[%c0_52, %c0_53, %c0_54] : memref<1x4x4xf32, #tpu.memory_space<vmem>>, vector<1x4x4xf32>
      %98 = vector.shape_cast %97 : vector<1x4x4xf32> to vector<4x4xf32>
      %99 = vector.shape_cast %96 : vector<4x4xf32> to vector<1x4x4xf32>
      tpu.vector_store %arg6[%c0_52, %c0_53, %c0_54], %99 {strides = array<i32>} : memref<1x4x4xf32, #tpu.memory_space<vmem>>, vector<1x4x4xf32>,
    } else {
    }
    return
  }
  func.func @transform_0(%arg0: i32, %arg1: i32) -> (i32, i32, i32, i32) {
    %c0_i32 = arith.constant 0 : i32
    %c0_i32_0 = arith.constant 0 : i32
    %c0_i32_1 = arith.constant 0 : i32
    %c0_i32_2 = arith.constant 0 : i32
    return %arg0, %c0_i32, %c0_i32_0, %c0_i32_1 : i32, i32, i32, i32
  }
  func.func @transform_1(%arg0: i32, %arg1: i32) -> (i32, i32, i32) {
    %c0_i32 = arith.constant 0 : i32
    %c0_i32_0 = arith.constant 0 : i32
    %c0_i32_1 = arith.constant 0 : i32
    return %arg0, %c0_i32, %c0_i32_0 : i32, i32, i32
  }
  func.func @transform_2(%arg0: i32, %arg1: i32) -> (i32, i32, i32) {
    %c0_i32 = arith.constant 0 : i32
    %c0_i32_0 = arith.constant 0 : i32
    %c0_i32_1 = arith.constant 0 : i32
    %c0_i32_2 = arith.constant 0 : i32
    return %c0_i32, %c0_i32_0, %c0_i32_1 : i32, i32, i32
  }
  func.func @transform_3(%arg0: i32, %arg1: i32) -> (i32, i32) {
    %c0_i32 = arith.constant 0 : i32
    %c0_i32_0 = arith.constant 0 : i32
    %c0_i32_1 = arith.constant 0 : i32
    return %c0_i32, %c0_i32_0 : i32, i32
  }
  func.func @transform_4(%arg0: i32, %arg1: i32) -> (i32, i32, i32) {
    %c0_i32 = arith.constant 0 : i32
    %c0_i32_0 = arith.constant 0 : i32
    %c0_i32_1 = arith.constant 0 : i32
    return %arg0, %c0_i32, %c0_i32_0 : i32, i32, i32
  }
  func.func @transform_5(%arg0: i32, %arg1: i32) -> (i32, i32, i32) {
    %c0_i32 = arith.constant 0 : i32
    %c0_i32_0 = arith.constant 0 : i32
    return %arg0, %arg1, %c0_i32 : i32, i32, i32
  }
}

</mosaic_0001>

<llo_original>
// kernel: mdta_forward.3
$region0: #{mdta_forward.3}
  #allocation0 [shape = 'u32[]', space=smem, size = 0x4, offset = 0x4, fixed_abs, tag = 'smem constant byte address 0x4 - core index']
  #allocation1 [shape = 'u32[144,128]{1,0:T(1,128)}', space=vmem, size = 0x12000, scoped, tag = 'internal scratch']
  #allocation2 [shape = 'f32[4,1]{1,0:T(4,128)}', space=vmem, size = 0x800, scoped, tag = 'scratch operand']
  #allocation3 [shape = 'f32[4,1]{1,0:T(4,128)}', space=vmem, size = 0x800, scoped, tag = 'scratch operand']
  %s0 = inlined_call_operand.vmem [shape: f32[2,4,256], index: 0, kind: input, shape index: {}]
  %s1 = inlined_call_operand.vmem [shape: f32[2,4,1], index: 1, kind: output, shape index: {0}]
  %s2 = inlined_call_operand.vmem [shape: f32[2,4,1], index: 2, kind: output, shape index: {1}]
  %3 = xla_tuple %s1, %s2
  %s4 = sld [smem:[#allocation0]]
  $region53: #{mdta_forward.3} parent=0
    _
  %s6 = ssub.s32 1, %s4
  %s7 = scalar_select 0, %s6, %s4
  loop: start=0, step=1, limit=6
  $region2: #{mdta_forward.3} parent=0 // loop_pre_header
    _
  $region3: #{mdta_forward.3} parent=0 // loop_header
    %s9 = sphi 0, %s13
    %p10 = scmp.ge.s32.totalorder %s9, 6
    %s16 = sphi 0, %s28
    %s17 = sphi 0, %s24
    %s18 = sphi 0, %s16
    %s19 = sphi 0, %s17
    %s20 = sphi 0, %s18
    %s21 = sphi 0, %s19
    %s33 = sphi 0, %s35
    %s36 = sphi 0, %s33
    %s37 = sphi 0, %s36
    %s53 = sphi 0, %s37
    %s59 = sphi 0, %s61
    %s62 = sphi 0, %s59
    %s63 = sphi 0, %s62
    %s79 = sphi 0, %s63
    %s85 = sphi 0, %s87
    %s88 = sphi 0, %s85
    %s89 = sphi 0, %s88
    %s105 = sphi 0, %s89
  $region4: #{mdta_forward.3} parent=0 // loop_header_branch
    %12 = sbr.rel (%p10) target = $region8
  $region5: #{mdta_forward.3} parent=0 // loop_body
    %s14 = ssub.s32 %s9, 1
    %s15 = ssub.s32 %s9, 2
    %s22 = sadd.s32 1, %s17
    %p23 = scmp.ge.s32.totalorder %s22, 2
    %s24 = scalar_select %p23, 0, %s22
    %s25 = sadd.s32 1, %s16
    %s26 = scalar_select %p23, %s25, %s16
    %p27 = scmp.ge.s32.totalorder %s26, 2
    %s28 = scalar_select %p27, 0, %s26
    %s29 = ssub.s32 %s16, %s28
    %s30 = ssub.s32 %s17, %s24
    %s31 = sor.u32 %s29, %s30
    %p32 = scmp.eq.s32.totalorder %s31, 0
    %s34 = sadd.s32 %s33, 1
    %s35 = scalar_select %p32, %s33, %s34
    %p38 = pneg %p32
    %p39 = scmp.eq.s32.totalorder %s9, 3
    %p40 = por %p38, %p39
    %p41 = scmp.ne.s32.totalorder %s33, %s36
    %p42 = scmp.eq.s32.totalorder %s9, 0
    %p43 = por %p41, %p42
    %p44 = scmp.ne.s32.totalorder %s33, %s36
    %p45 = scmp.eq.s32.totalorder %s14, 3
    %p46 = por %p44, %p45
    %p47 = scmp.ne.s32.totalorder %s36, %s37
    %p48 = scmp.eq.s32.totalorder %s14, 0
    %p49 = por %p47, %p48
    %p50 = scmp.ne.s32.totalorder %s36, %s37
    %p51 = scmp.eq.s32.totalorder %s15, 3
    %p52 = por %p50, %p51
    %p54 = scmp.ne.s32.totalorder %s37, %s53
    %p55 = scmp.eq.s32.totalorder %s15, 0
    %p56 = por %p54, %p55
    %s57 = ssub.s32 %s16, %s28
    %p58 = scmp.eq.s32.totalorder %s57, 0
    %s60 = sadd.s32 %s59, 1
    %s61 = scalar_select %p58, %s59, %s60
    %p64 = pneg %p58
    %p65 = scmp.eq.s32.totalorder %s9, 3
    %p66 = por %p64, %p65
    %p67 = scmp.ne.s32.totalorder %s59, %s62
    %p68 = scmp.eq.s32.totalorder %s9, 0
    %p69 = por %p67, %p68
    %p70 = scmp.ne.s32.totalorder %s59, %s62
    %p71 = scmp.eq.s32.totalorder %s14, 3
    %p72 = por %p70, %p71
    %p73 = scmp.ne.s32.totalorder %s62, %s63
    %p74 = scmp.eq.s32.totalorder %s14, 0
    %p75 = por %p73, %p74
    %p76 = scmp.ne.s32.totalorder %s62, %s63
    %p77 = scmp.eq.s32.totalorder %s15, 3
    %p78 = por %p76, %p77
    %p80 = scmp.ne.s32.totalorder %s63, %s79
    %p81 = scmp.eq.s32.totalorder %s15, 0
    %p82 = por %p80, %p81
    %s83 = ssub.s32 %s16, %s28
    %p84 = scmp.eq.s32.totalorder %s83, 0
    %s86 = sadd.s32 %s85, 1
    %s87 = scalar_select %p84, %s85, %s86
    %p90 = pneg %p84
    %p91 = scmp.eq.s32.totalorder %s9, 3
    %p92 = por %p90, %p91
    %p93 = scmp.ne.s32.totalorder %s85, %s88
    %p94 = scmp.eq.s32.totalorder %s9, 0
    %p95 = por %p93, %p94
    %p96 = scmp.ne.s32.totalorder %s85, %s88
    %p97 = scmp.eq.s32.totalorder %s14, 3
    %p98 = por %p96, %p97
    %p99 = scmp.ne.s32.totalorder %s88, %s89
    %p100 = scmp.eq.s32.totalorder %s14, 0
    %p101 = por %p99, %p100
    %p102 = scmp.ne.s32.totalorder %s88, %s89
    %p103 = scmp.eq.s32.totalorder %s15, 3
    %p104 = por %p102, %p103
    %p106 = scmp.ne.s32.totalorder %s89, %s105
    %p107 = scmp.eq.s32.totalorder %s15, 0
    %p108 = por %p106, %p107
    %p109 = scmp.le.s32.totalorder 1, %s9
    %p110 = scmp.lt.s32.totalorder %s9, 5
    %p111 = pnand %p109, %p110
    %p112 = pneg %p111
    // Predicated region
    $region9: #{mdta_forward.3} parent=5 // pred_check
      _
    $region10: #{mdta_forward.3} parent=5 // pred_check_branch
      %114 = sbr.rel (%p111) target = $region12
    $region11: #{mdta_forward.3} parent=5 // pred_region
      %s115 = ssub.s32 %s9, 1
    $region12: #{mdta_forward.3} parent=5 // pred_fallthru
      _
    %p116 = scmp.lt.s32.totalorder %s9, 4
    // Predicated region
    $region13: #{mdta_forward.3} parent=5 // pred_check
      %p117 = pneg %p116
    $region14: #{mdta_forward.3} parent=5 // pred_check_branch
      %119 = sbr.rel (%p117) target = $region16
    $region15: #{mdta_forward.3} parent=5 // pred_region
      // Predicated region
      $region17: #{mdta_forward.3} parent=15 // pred_check
        %p120 = pneg %p43
      $region18: #{mdta_forward.3} parent=15 // pred_check_branch
        %122 = sbr.rel (%p120) target = $region20
      $region19: #{mdta_forward.3} parent=15 // pred_region
        %p123 = scmp.lt.s32.totalorder %s16, 1
        %s124 = scalar_select %p123, %s16, 1
        %p125 = scmp.lt.s32.totalorder %s17, 1
        %s126 = scalar_select %p125, %s17, 1
        %s127 = smul.addr %s124, 2
        %s128 = sadd.s32 %s126, %s127
        %s129 = smul.addr %s128, 4
        %s130 = scalar_lea.vmem %s0, %s129
      $region20: #{mdta_forward.3} parent=15 // pred_fallthru
        _
    $region16: #{mdta_forward.3} parent=5 // pred_fallthru
      _
    %p131 = scmp.le.s32.totalorder 1, %s9
    %p132 = scmp.lt.s32.totalorder %s9, 5
    %p133 = pnand %p131, %p132
    %p134 = pneg %p133
    // Predicated region
    $region21: #{mdta_forward.3} parent=5 // pred_check
      _
    $region22: #{mdta_forward.3} parent=5 // pred_check_branch
      %136 = sbr.rel (%p133) target = $region24
    $region23: #{mdta_forward.3} parent=5 // pred_region
      %s137 = ssub.s32 %s9, 1
      %p138 = scmp.lt.s32.totalorder %s18, 1
      %s139 = scalar_select %p138, %s18, 1
      %p140 = scmp.lt.s32.totalorder %s19, 1
      %s141 = scalar_select %p140, %s19, 1
      %s142 = smul.addr %s139, 2
      %s143 = sadd.s32 %s141, %s142
      %s144 = smul.addr %s143, 4
      %s145 = scalar_lea.vmem %s0, %s144
      %p146 = pneg %p49
      %p147 = pneg %p46
      %p148 = pneg %p75
      %p149 = pneg %p72
      %p150 = scmp.lt.s32.totalorder %s18, 1
      %s151 = scalar_select %p150, %s18, 1
      %s152 = smul.addr %s151, 4
      %s153 = scalar_lea.vmem %s1, %s152
      %p154 = pneg %p101
      %p155 = pneg %p98
      %p156 = scmp.lt.s32.totalorder %s18, 1
      %s157 = scalar_select %p156, %s18, 1
      %s158 = smul.addr %s157, 4
      %s159 = scalar_lea.vmem %s2, %s158
      %p160 = scmp.lt.s32.totalorder %s18, 1
      %s161 = scalar_select %p160, %s18, 1
      %p162 = scmp.lt.s32.totalorder %s19, 1
      %s163 = scalar_select %p162, %s19, 1
      %s164 = smul.addr %s161, 2
      %s165 = sadd.s32 %s163, %s164
      %s166 = smul.addr %s165, 4
      %s167 = scalar_lea.vmem %s0, %s166
      %p168 = scmp.lt.s32.totalorder %s18, 1
      %s169 = scalar_select %p168, %s18, 1
      %s170 = smul.addr %s169, 4
      %s171 = scalar_lea.vmem %s1, %s170
      %p172 = scmp.lt.s32.totalorder %s18, 1
      %s173 = scalar_select %p172, %s18, 1
      %s174 = smul.addr %s173, 4
      %s175 = scalar_lea.vmem %s2, %s174
      %p176 = scmp.eq.s32.totalorder %s19, 0
      // Predicated region
      $region25: #{mdta_forward.3} parent=23 // pred_check
        %p177 = pneg %p176
      $region26: #{mdta_forward.3} parent=23 // pred_check_branch
        %179 = sbr.rel (%p177) target = $region28
      $region27: #{mdta_forward.3} parent=23 // pred_region
        %vm180 = vcmask 3072
        %181 = vst.msk [vmem:[#allocation2] sm:$0xf] %vm180, 0.0
        %182 = vst.msk [vmem:[#allocation3] sm:$0xf] %vm180, 0.0
      $region28: #{mdta_forward.3} parent=23 // pred_fallthru
        _
      %v183 = vld [vmem:[%s167] sm:$0xf]
      %v184 = vld [vmem:[#allocation2] sm:$0xf]
      %vm185 = vcmask 1043456
      %v186 = vsel %vm185, %v183, 0.0
      %187 = vadd.xlane.f32.xlu0 %v186
      %v188 = vpop.xlane.xlu0 %187
      %v189 = vadd.f32 %v184, %v188
      %vm190 = vcmask 3072
      %191 = vst.msk [vmem:[#allocation2] sm:$0xf] %vm190, %v189
      %v192 = vld [vmem:[#allocation3] sm:$0xf]
      %v193 = vmul.f32 %v183, %v183
      %v194 = vsel %vm185, %v193, 0.0
      %195 = vadd.xlane.f32.xlu0 %v194
      %v196 = vpop.xlane.xlu0 %195
      %v197 = vadd.f32 %v192, %v196
      %198 = vst.msk [vmem:[#allocation3] sm:$0xf] %vm190, %v197
      %p199 = scmp.eq.s32.totalorder %s19, 1
      // Predicated region
      $region29: #{mdta_forward.3} parent=23 // pred_check
        %p200 = pneg %p199
      $region30: #{mdta_forward.3} parent=23 // pred_check_branch
        %202 = sbr.rel (%p200) target = $region32
      $region31: #{mdta_forward.3} parent=23 // pred_region
        %v203 = vld [vmem:[#allocation2] sm:$0xf]
        %v204 = vmul.f32 %v203, 0.00390625
        %v205 = vld [vmem:[#allocation3] sm:$0xf]
        %v206 = vmul.f32 %v205, 0.00390625
        %v207 = vmul.f32 %v204, %v204
        %v208 = vsub.f32 %v206, %v207
        %209 = vst.msk [vmem:[%s171] sm:$0xf] %vm190, %v204
        %v210 = vadd.f32 %v208, 1e-05
        %v211 = vrsqrt.pop %v210
        %212 = vst.msk [vmem:[%s175] sm:$0xf] %vm190, %v211
      $region32: #{mdta_forward.3} parent=23 // pred_fallthru
        _
      %p213 = scmp.lt.s32.totalorder %s18, 1
      %s214 = scalar_select %p213, %s18, 1
      %s215 = smul.addr %s214, 4
      %s216 = scalar_lea.vmem %s1, %s215
      %p217 = scmp.lt.s32.totalorder %s18, 1
      %s218 = scalar_select %p217, %s18, 1
      %s219 = smul.addr %s218, 4
      %s220 = scalar_lea.vmem %s2, %s219
      // Predicated region
      $region33: #{mdta_forward.3} parent=23 // pred_check
        %p221 = pneg %p72
      $region34: #{mdta_forward.3} parent=23 // pred_check_branch
        %223 = sbr.rel (%p221) target = $region36
      $region35: #{mdta_forward.3} parent=23 // pred_region
        _
      $region36: #{mdta_forward.3} parent=23 // pred_fallthru
        _
      // Predicated region
      $region37: #{mdta_forward.3} parent=23 // pred_check
        %p224 = pneg %p98
      $region38: #{mdta_forward.3} parent=23 // pred_check_branch
        %226 = sbr.rel (%p224) target = $region40
      $region39: #{mdta_forward.3} parent=23 // pred_region
        _
      $region40: #{mdta_forward.3} parent=23 // pred_fallthru
        _
    $region24: #{mdta_forward.3} parent=5 // pred_fallthru
      _
    %p227 = scmp.le.s32.totalorder 2, %s9
    // Predicated region
    $region41: #{mdta_forward.3} parent=5 // pred_check
      %p228 = pneg %p227
    $region42: #{mdta_forward.3} parent=5 // pred_check_branch
      %230 = sbr.rel (%p228) target = $region44
    $region43: #{mdta_forward.3} parent=5 // pred_region
      %s231 = ssub.s32 %s9, 2
      // Predicated region
      $region45: #{mdta_forward.3} parent=43 // pred_check
        %p232 = pneg %p78
      $region46: #{mdta_forward.3} parent=43 // pred_check_branch
        %234 = sbr.rel (%p232) target = $region48
      $region47: #{mdta_forward.3} parent=43 // pred_region
        %p235 = scmp.lt.s32.totalorder %s20, 1
        %s236 = scalar_select %p235, %s20, 1
        %s237 = smul.addr %s236, 4
        %s238 = scalar_lea.vmem %s1, %s237
      $region48: #{mdta_forward.3} parent=43 // pred_fallthru
        _
      // Predicated region
      $region49: #{mdta_forward.3} parent=43 // pred_check
        %p239 = pneg %p104
      $region50: #{mdta_forward.3} parent=43 // pred_check_branch
        %241 = sbr.rel (%p239) target = $region52
      $region51: #{mdta_forward.3} parent=43 // pred_region
        %p242 = scmp.lt.s32.totalorder %s20, 1
        %s243 = scalar_select %p242, %s20, 1
        %s244 = smul.addr %s243, 4
        %s245 = scalar_lea.vmem %s2, %s244
      $region52: #{mdta_forward.3} parent=43 // pred_fallthru
        _
    $region44: #{mdta_forward.3} parent=5 // pred_fallthru
      _
  $region6: #{mdta_forward.3} parent=0 // loop_footer
    %s13 = sadd.s32 1, %s9
  $region7: #{mdta_forward.3} parent=0 // loop_footer_branch
    %8 = sbr.rel target = $region3
  $region8: #{mdta_forward.3} parent=0 // loop_exit
    _

// kernel: mdta_forward.5
$region0: #{mdta_forward.5}
  #allocation0 [shape = 'u32[]', space=smem, size = 0x4, offset = 0x4, fixed_abs, tag = 'smem constant byte address 0x4 - core index']
  #allocation1 [shape = 'u32[144,128]{1,0:T(1,128)}', space=vmem, size = 0x12000, scoped, tag = 'internal scratch']
  %s0 = inlined_call_operand.vmem [shape: f32[2,4,4], index: 0, kind: input, shape index: {}]
  %s1 = inlined_call_operand.vmem [shape: f32[2,256,4], index: 1, kind: input, shape index: {}]
  %s2 = inlined_call_operand.vmem [shape: f32[1,4], index: 2, kind: input, shape index: {}]
  %s3 = inlined_call_operand.vmem [shape: f32[2,256,4], index: 3, kind: output, shape index: {}]
  %s4 = sld [smem:[#allocation0]]
  $region45: #{mdta_forward.5} parent=0
    _
  %s6 = ssub.s32 1, %s4
  %s7 = scalar_select 0, %s6, %s4
  loop: start=0, step=1, limit=6
  $region2: #{mdta_forward.5} parent=0 // loop_pre_header
    _
  $region3: #{mdta_forward.5} parent=0 // loop_header
    %s9 = sphi 0, %s13
    %p10 = scmp.ge.s32.totalorder %s9, 6
    %s16 = sphi 0, %s28
    %s17 = sphi 0, %s24
    %s18 = sphi 0, %s16
    %s19 = sphi 0, %s17
    %s20 = sphi 0, %s18
    %s21 = sphi 0, %s19
    %s31 = sphi 0, %s33
    %s34 = sphi 0, %s31
    %s35 = sphi 0, %s34
    %s51 = sphi 0, %s35
    %s59 = sphi 0, %s61
    %s62 = sphi 0, %s59
    %s63 = sphi 0, %s62
    %s79 = sphi 0, %s63
    %s83 = sphi 0, %s83
    %s85 = sphi 0, %s83
    %s86 = sphi 0, %s85
    %s100 = sphi 0, %s86
    %s108 = sphi 0, %s110
    %s111 = sphi 0, %s108
    %s112 = sphi 0, %s111
    %s128 = sphi 0, %s112
  $region4: #{mdta_forward.5} parent=0 // loop_header_branch
    %12 = sbr.rel (%p10) target = $region8
  $region5: #{mdta_forward.5} parent=0 // loop_body
    %s14 = ssub.s32 %s9, 1
    %s15 = ssub.s32 %s9, 2
    %s22 = sadd.s32 1, %s17
    %p23 = scmp.ge.s32.totalorder %s22, 2
    %s24 = scalar_select %p23, 0, %s22
    %s25 = sadd.s32 1, %s16
    %s26 = scalar_select %p23, %s25, %s16
    %p27 = scmp.ge.s32.totalorder %s26, 2
    %s28 = scalar_select %p27, 0, %s26
    %s29 = ssub.s32 %s16, %s28
    %p30 = scmp.eq.s32.totalorder %s29, 0
    %s32 = sadd.s32 %s31, 1
    %s33 = scalar_select %p30, %s31, %s32
    %p36 = pneg %p30
    %p37 = scmp.eq.s32.totalorder %s9, 3
    %p38 = por %p36, %p37
    %p39 = scmp.ne.s32.totalorder %s31, %s34
    %p40 = scmp.eq.s32.totalorder %s9, 0
    %p41 = por %p39, %p40
    %p42 = scmp.ne.s32.totalorder %s31, %s34
    %p43 = scmp.eq.s32.totalorder %s14, 3
    %p44 = por %p42, %p43
    %p45 = scmp.ne.s32.totalorder %s34, %s35
    %p46 = scmp.eq.s32.totalorder %s14, 0
    %p47 = por %p45, %p46
    %p48 = scmp.ne.s32.totalorder %s34, %s35
    %p49 = scmp.eq.s32.totalorder %s15, 3
    %p50 = por %p48, %p49
    %p52 = scmp.ne.s32.totalorder %s35, %s51
    %p53 = scmp.eq.s32.totalorder %s15, 0
    %p54 = por %p52, %p53
    %s55 = ssub.s32 %s16, %s28
    %s56 = ssub.s32 %s17, %s24
    %s57 = sor.u32 %s55, %s56
    %p58 = scmp.eq.s32.totalorder %s57, 0
    %s60 = sadd.s32 %s59, 1
    %s61 = scalar_select %p58, %s59, %s60
    %p64 = pneg %p58
    %p65 = scmp.eq.s32.totalorder %s9, 3
    %p66 = por %p64, %p65
    %p67 = scmp.ne.s32.totalorder %s59, %s62
    %p68 = scmp.eq.s32.totalorder %s9, 0
    %p69 = por %p67, %p68
    %p70 = scmp.ne.s32.totalorder %s59, %s62
    %p71 = scmp.eq.s32.totalorder %s14, 3
    %p72 = por %p70, %p71
    %p73 = scmp.ne.s32.totalorder %s62, %s63
    %p74 = scmp.eq.s32.totalorder %s14, 0
    %p75 = por %p73, %p74
    %p76 = scmp.ne.s32.totalorder %s62, %s63
    %p77 = scmp.eq.s32.totalorder %s15, 3
    %p78 = por %p76, %p77
    %p80 = scmp.ne.s32.totalorder %s63, %s79
    %p81 = scmp.eq.s32.totalorder %s15, 0
    %p82 = por %p80, %p81
    %s84 = sadd.s32 %s83, 1
    %p87 = scmp.eq.s32.totalorder %s9, 3
    %p88 = scmp.ne.s32.totalorder %s83, %s85
    %p89 = scmp.eq.s32.totalorder %s9, 0
    %p90 = por %p88, %p89
    %p91 = scmp.ne.s32.totalorder %s83, %s85
    %p92 = scmp.eq.s32.totalorder %s14, 3
    %p93 = por %p91, %p92
    %p94 = scmp.ne.s32.totalorder %s85, %s86
    %p95 = scmp.eq.s32.totalorder %s14, 0
    %p96 = por %p94, %p95
    %p97 = scmp.ne.s32.totalorder %s85, %s86
    %p98 = scmp.eq.s32.totalorder %s15, 3
    %p99 = por %p97, %p98
    %p101 = scmp.ne.s32.totalorder %s86, %s100
    %p102 = scmp.eq.s32.totalorder %s15, 0
    %p103 = por %p101, %p102
    %s104 = ssub.s32 %s16, %s28
    %s105 = ssub.s32 %s17, %s24
    %s106 = sor.u32 %s104, %s105
    %p107 = scmp.eq.s32.totalorder %s106, 0
    %s109 = sadd.s32 %s108, 1
    %s110 = scalar_select %p107, %s108, %s109
    %p113 = pneg %p107
    %p114 = scmp.eq.s32.totalorder %s9, 3
    %p115 = por %p113, %p114
    %p116 = scmp.ne.s32.totalorder %s108, %s111
    %p117 = scmp.eq.s32.totalorder %s9, 0
    %p118 = por %p116, %p117
    %p119 = scmp.ne.s32.totalorder %s108, %s111
    %p120 = scmp.eq.s32.totalorder %s14, 3
    %p121 = por %p119, %p120
    %p122 = scmp.ne.s32.totalorder %s111, %s112
    %p123 = scmp.eq.s32.totalorder %s14, 0
    %p124 = por %p122, %p123
    %p125 = scmp.ne.s32.totalorder %s111, %s112
    %p126 = scmp.eq.s32.totalorder %s15, 3
    %p127 = por %p125, %p126
    %p129 = scmp.ne.s32.totalorder %s112, %s128
    %p130 = scmp.eq.s32.totalorder %s15, 0
    %p131 = por %p129, %p130
    %p132 = scmp.le.s32.totalorder 1, %s9
    %p133 = scmp.lt.s32.totalorder %s9, 5
    %p134 = pnand %p132, %p133
    %p135 = pneg %p134
    // Predicated region
    $region9: #{mdta_forward.5} parent=5 // pred_check
      _
    $region10: #{mdta_forward.5} parent=5 // pred_check_branch
      %137 = sbr.rel (%p134) target = $region12
    $region11: #{mdta_forward.5} parent=5 // pred_region
      %s138 = ssub.s32 %s9, 1
      // Predicated region
      $region13: #{mdta_forward.5} parent=11 // pred_check
        %p139 = pneg %p96
      $region14: #{mdta_forward.5} parent=11 // pred_check_branch
        %141 = sbr.rel (%p139) target = $region16
      $region15: #{mdta_forward.5} parent=11 // pred_region
        _
      $region16: #{mdta_forward.5} parent=11 // pred_fallthru
        _
    $region12: #{mdta_forward.5} parent=5 // pred_fallthru
      _
    %p142 = scmp.lt.s32.totalorder %s9, 4
    // Predicated region
    $region17: #{mdta_forward.5} parent=5 // pred_check
      %p143 = pneg %p142
    $region18: #{mdta_forward.5} parent=5 // pred_check_branch
      %145 = sbr.rel (%p143) target = $region20
    $region19: #{mdta_forward.5} parent=5 // pred_region
      // Predicated region
      $region21: #{mdta_forward.5} parent=19 // pred_check
        %p146 = pneg %p41
      $region22: #{mdta_forward.5} parent=19 // pred_check_branch
        %148 = sbr.rel (%p146) target = $region24
      $region23: #{mdta_forward.5} parent=19 // pred_region
        %p149 = scmp.lt.s32.totalorder %s16, 1
        %s150 = scalar_select %p149, %s16, 1
        %s151 = smul.addr %s150, 4
        %s152 = scalar_lea.vmem %s0, %s151
      $region24: #{mdta_forward.5} parent=19 // pred_fallthru
        _
      // Predicated region
      $region25: #{mdta_forward.5} parent=19 // pred_check
        %p153 = pneg %p69
      $region26: #{mdta_forward.5} parent=19 // pred_check_branch
        %155 = sbr.rel (%p153) target = $region28
      $region27: #{mdta_forward.5} parent=19 // pred_region
        %s156 = smul.u32 16, %s17
        %p157 = scmp.lt.s32.totalorder %s16, 1
        %s158 = scalar_select %p157, %s16, 1
        %p159 = scmp.lt.s32.totalorder %s156, 31
        %s160 = scalar_select %p159, %s156, 31
        %s161 = smul.addr %s158, 32
        %s162 = sadd.s32 %s160, %s161
        %s163 = smul.addr %s162, 8
        %s164 = scalar_lea.vmem %s1, %s163
        %s165 = smul.u32 16, %s17
      $region28: #{mdta_forward.5} parent=19 // pred_fallthru
        _
    $region20: #{mdta_forward.5} parent=5 // pred_fallthru
      _
    %p166 = scmp.le.s32.totalorder 1, %s9
    %p167 = scmp.lt.s32.totalorder %s9, 5
    %p168 = pnand %p166, %p167
    %p169 = pneg %p168
    // Predicated region
    $region29: #{mdta_forward.5} parent=5 // pred_check
      _
    $region30: #{mdta_forward.5} parent=5 // pred_check_branch
      %171 = sbr.rel (%p168) target = $region32
    $region31: #{mdta_forward.5} parent=5 // pred_region
      %s172 = ssub.s32 %s9, 1
      %p173 = scmp.lt.s32.totalorder %s18, 1
      %s174 = scalar_select %p173, %s18, 1
      %s175 = smul.addr %s174, 4
      %s176 = scalar_lea.vmem %s0, %s175
      %p177 = pneg %p47
      %p178 = pneg %p44
      %s179 = smul.u32 16, %s19
      %p180 = scmp.lt.s32.totalorder %s18, 1
      %s181 = scalar_select %p180, %s18, 1
      %p182 = scmp.lt.s32.totalorder %s179, 31
      %s183 = scalar_select %p182, %s179, 31
      %s184 = smul.addr %s181, 32
      %s185 = sadd.s32 %s183, %s184
      %s186 = smul.addr %s185, 8
      %s187 = scalar_lea.vmem %s1, %s186
      %p188 = pneg %p75
      %p189 = pneg %p72
      %p190 = pneg %p96
      %p191 = pneg %p93
      %p192 = pneg %p124
      %p193 = pneg %p121
      %s194 = smul.u32 16, %s19
      %p195 = scmp.lt.s32.totalorder %s18, 1
      %s196 = scalar_select %p195, %s18, 1
      %p197 = scmp.lt.s32.totalorder %s194, 31
      %s198 = scalar_select %p197, %s194, 31
      %s199 = smul.addr %s196, 32
      %s200 = sadd.s32 %s198, %s199
      %s201 = smul.addr %s200, 8
      %s202 = scalar_lea.vmem %s3, %s201
      %p203 = scmp.lt.s32.totalorder %s18, 1
      %s204 = scalar_select %p203, %s18, 1
      %s205 = smul.addr %s204, 4
      %s206 = scalar_lea.vmem %s0, %s205
      %s207 = smul.u32 16, %s19
      %p208 = scmp.lt.s32.totalorder %s18, 1
      %s209 = scalar_select %p208, %s18, 1
      %p210 = scmp.lt.s32.totalorder %s207, 31
      %s211 = scalar_select %p210, %s207, 31
      %s212 = smul.addr %s209, 32
      %s213 = sadd.s32 %s211, %s212
      %s214 = smul.addr %s213, 8
      %s215 = scalar_lea.vmem %s1, %s214
      %s216 = smul.u32 16, %s19
      %s217 = smul.u32 16, %s19
      %p218 = scmp.lt.s32.totalorder %s18, 1
      %s219 = scalar_select %p218, %s18, 1
      %p220 = scmp.lt.s32.totalorder %s217, 31
      %s221 = scalar_select %p220, %s217, 31
      %s222 = smul.addr %s219, 32
      %s223 = sadd.s32 %s221, %s222
      %s224 = smul.addr %s223, 8
      %s225 = scalar_lea.vmem %s3, %s224
      %s226 = smul.u32 16, %s19
      %v227 = vld [vmem:[%s215] sm:$0xff]
      %v228 = vld [vmem:[%s215 + $0x8] sm:$0xff]
      %v229 = vld [vmem:[%s215 + $0x10] sm:$0xff]
      %v230 = vld [vmem:[%s215 + $0x18] sm:$0xff]
      %v231 = vld [vmem:[%s215 + $0x20] sm:$0xff]
      %v232 = vld [vmem:[%s215 + $0x28] sm:$0xff]
      %v233 = vld [vmem:[%s215 + $0x30] sm:$0xff]
      %v234 = vld [vmem:[%s215 + $0x38] sm:$0xff]
      %v235 = vld [vmem:[%s215 + $0x40] sm:$0xff]
      %v236 = vld [vmem:[%s215 + $0x48] sm:$0xff]
      %v237 = vld [vmem:[%s215 + $0x50] sm:$0xff]
      %v238 = vld [vmem:[%s215 + $0x58] sm:$0xff]
      %v239 = vld [vmem:[%s215 + $0x60] sm:$0xff]
      %v240 = vld [vmem:[%s215 + $0x68] sm:$0xff]
      %v241 = vld [vmem:[%s215 + $0x70] sm:$0xff]
      %v242 = vld [vmem:[%s215 + $0x78] sm:$0xff]
      %v243 = vld [vmem:[%s206] sm:$0xf]
      %v244 = vld [vmem:[%s2] sm:$0x1]
      %v246 = vlaneseq
      %v247 = vshrl.u32 %v246, 7
      %v248 = vsub.s32 0, %v247
      %v249 = vrot.slane %v244, %v248
      %vm251 = vcmask 31744
      %v253 = vsel %vm251, %v227, 0
      %v256 = vsel %vm251, %v228, 0
      %v259 = vsel %vm251, %v229, 0
      %v262 = vsel %vm251, %v230, 0
      %v265 = vsel %vm251, %v231, 0
      %v268 = vsel %vm251, %v232, 0
      %v271 = vsel %vm251, %v233, 0
      %v274 = vsel %vm251, %v234, 0
      %v277 = vsel %vm251, %v235, 0
      %v280 = vsel %vm251, %v236, 0
      %v283 = vsel %vm251, %v237, 0
      %v286 = vsel %vm251, %v238, 0
      %v289 = vsel %vm251, %v239, 0
      %v292 = vsel %vm251, %v240, 0
      %v295 = vsel %vm251, %v241, 0
      %v298 = vsel %vm251, %v242, 0
      %v301 = vsel %vm251, %v243, 0
      %303 = vmatprep.subr.mxu0 0.0
      %304 = vmatpush1.xpose.msra.mxu0 %v301
      %305 = vmatprep.subr.mxu0 0.0
      %306 = vmatpush1.xpose.msra.mxu0 0.0
      %307 = vmatprep.subr.mxu0 0.0
      %308 = vmatpush1.xpose.msra.mxu0 0.0
      %309 = vmatprep.subr.mxu0 0.0
      %310 = vmatpush1.xpose.msra.mxu0 0.0
      %311 = vmatprep.subr.mxu0 0.0
      %312 = vmatpush1.xpose.msra.mxu0 0.0
      %313 = vmatprep.subr.mxu0 0.0
      %314 = vmatpush1.xpose.msra.mxu0 0.0
      %315 = vmatprep.subr.mxu0 0.0
      %316 = vmatpush1.xpose.msra.mxu0 0.0
      %317 = vmatprep.subr.mxu0 0.0
      %318 = vmatpush1.xpose.msra.mxu0 0.0
      %319 = vmatprep.subr.mxu0 0.0
      %320 = vmatpush1.xpose.msra.mxu0 0.0
      %321 = vmatprep.subr.mxu0 0.0
      %322 = vmatpush1.xpose.msra.mxu0 0.0
      %323 = vmatprep.subr.mxu0 0.0
      %324 = vmatpush1.xpose.msra.mxu0 0.0
      %325 = vmatprep.subr.mxu0 0.0
      %326 = vmatpush1.xpose.msra.mxu0 0.0
      %327 = vmatprep.subr.mxu0 0.0
      %328 = vmatpush1.xpose.msra.mxu0 0.0
      %329 = vmatprep.subr.mxu0 0.0
      %330 = vmatpush1.xpose.msra.mxu0 0.0
      %331 = vmatprep.subr.mxu0 0.0
      %332 = vmatpush1.xpose.msra.mxu0 0.0
      %333 = vmatprep.subr.mxu0 0.0
      %334 = vmatpush1.xpose.msra.mxu0 0.0
      %335 = vmatprep.subr.mxu0 0.0
      %336 = vmatpush1.xpose.msra.mxu0 0.0
      %337 = vmatprep.subr.mxu0 0.0
      %338 = vmatpush1.xpose.msra.mxu0 0.0
      %339 = vmatprep.subr.mxu0 0.0
      %340 = vmatpush1.xpose.msra.mxu0 0.0
      %341 = vmatprep.subr.mxu0 0.0
      %342 = vmatpush1.xpose.msra.mxu0 0.0
      %343 = vmatprep.subr.mxu0 0.0
      %344 = vmatpush1.xpose.msra.mxu0 0.0
      %345 = vmatprep.subr.mxu0 0.0
      %346 = vmatpush1.xpose.msra.mxu0 0.0
      %347 = vmatprep.subr.mxu0 0.0
      %348 = vmatpush1.xpose.msra.mxu0 0.0
      %349 = vmatprep.subr.mxu0 0.0
      %350 = vmatpush1.xpose.msra.mxu0 0.0
      %351 = vmatprep.subr.mxu0 0.0
      %352 = vmatpush1.xpose.msra.mxu0 0.0
      %353 = vmatprep.subr.mxu0 0.0
      %354 = vmatpush1.xpose.msra.mxu0 0.0
      %355 = vmatprep.subr.mxu0 0.0
      %356 = vmatpush1.xpose.msra.mxu0 0.0
      %357 = vmatprep.subr.mxu0 0.0
      %358 = vmatpush1.xpose.msra.mxu0 0.0
      %359 = vmatprep.subr.mxu0 0.0
      %360 = vmatpush1.xpose.msra.mxu0 0.0
      %361 = vmatprep.subr.mxu0 0.0
      %362 = vmatpush1.xpose.msra.mxu0 0.0
      %363 = vmatprep.subr.mxu0 0.0
      %364 = vmatpush1.xpose.msra.mxu0 0.0
      %365 = vmatprep.subr.mxu0 0.0
      %366 = vmatpush1.xpose.msra.mxu0 0.0
      %367 = vmatprep.mubr.f32.mxu0 0.0
      %368 = vmatmul.mubr.f32.gmra.mrb[0].mxu0 %v253
      %v369 = vpop.f32.mrb[0].mxu0
      %v370 = vadd.f32 %v249, %v369
      %v371 = vpop.f32.mrb[0].mxu0
      %372 = vmatprep.mubr.f32.mxu0 0.0
      %373 = vmatmul.mubr.f32.gmra.mrb[0].mxu0 %v256
      %v374 = vpop.f32.mrb[0].mxu0
      %v375 = vadd.f32 %v249, %v374
      %v376 = vpop.f32.mrb[0].mxu0
      %377 = vmatprep.mubr.f32.mxu0 0.0
      %378 = vmatmul.mubr.f32.gmra.mrb[0].mxu0 %v259
      %v379 = vpop.f32.mrb[0].mxu0
      %v380 = vadd.f32 %v249, %v379
      %v381 = vpop.f32.mrb[0].mxu0
      %382 = vmatprep.mubr.f32.mxu0 0.0
      %383 = vmatmul.mubr.f32.gmra.mrb[0].mxu0 %v262
      %v384 = vpop.f32.mrb[0].mxu0
      %v385 = vadd.f32 %v249, %v384
      %v386 = vpop.f32.mrb[0].mxu0
      %387 = vmatprep.mubr.f32.mxu0 0.0
      %388 = vmatmul.mubr.f32.gmra.mrb[0].mxu0 %v265
      %v389 = vpop.f32.mrb[0].mxu0
      %v390 = vadd.f32 %v249, %v389
      %v391 = vpop.f32.mrb[0].mxu0
      %392 = vmatprep.mubr.f32.mxu0 0.0
      %393 = vmatmul.mubr.f32.gmra.mrb[0].mxu0 %v268
      %v394 = vpop.f32.mrb[0].mxu0
      %v395 = vadd.f32 %v249, %v394
      %v396 = vpop.f32.mrb[0].mxu0
      %397 = vmatprep.mubr.f32.mxu0 0.0
      %398 = vmatmul.mubr.f32.gmra.mrb[0].mxu0 %v271
      %v399 = vpop.f32.mrb[0].mxu0
      %v400 = vadd.f32 %v249, %v399
      %v401 = vpop.f32.mrb[0].mxu0
      %402 = vmatprep.mubr.f32.mxu0 0.0
      %403 = vmatmul.mubr.f32.gmra.mrb[0].mxu0 %v274
      %v404 = vpop.f32.mrb[0].mxu0
      %v405 = vadd.f32 %v249, %v404
      %v406 = vpop.f32.mrb[0].mxu0
      %407 = vmatprep.mubr.f32.mxu0 0.0
      %408 = vmatmul.mubr.f32.gmra.mrb[0].mxu0 %v277
      %v409 = vpop.f32.mrb[0].mxu0
      %v410 = vadd.f32 %v249, %v409
      %v411 = vpop.f32.mrb[0].mxu0
      %412 = vmatprep.mubr.f32.mxu0 0.0
      %413 = vmatmul.mubr.f32.gmra.mrb[0].mxu0 %v280
      %v414 = vpop.f32.mrb[0].mxu0
      %v415 = vadd.f32 %v249, %v414
      %v416 = vpop.f32.mrb[0].mxu0
      %417 = vmatprep.mubr.f32.mxu0 0.0
      %418 = vmatmul.mubr.f32.gmra.mrb[0].mxu0 %v283
      %v419 = vpop.f32.mrb[0].mxu0
      %v420 = vadd.f32 %v249, %v419
      %v421 = vpop.f32.mrb[0].mxu0
      %422 = vmatprep.mubr.f32.mxu0 0.0
      %423 = vmatmul.mubr.f32.gmra.mrb[0].mxu0 %v286
      %v424 = vpop.f32.mrb[0].mxu0
      %v425 = vadd.f32 %v249, %v424
      %v426 = vpop.f32.mrb[0].mxu0
      %427 = vmatprep.mubr.f32.mxu0 0.0
      %428 = vmatmul.mubr.f32.gmra.mrb[0].mxu0 %v289
      %v429 = vpop.f32.mrb[0].mxu0
      %v430 = vadd.f32 %v249, %v429
      %v431 = vpop.f32.mrb[0].mxu0
      %432 = vmatprep.mubr.f32.mxu0 0.0
      %433 = vmatmul.mubr.f32.gmra.mrb[0].mxu0 %v292
      %v434 = vpop.f32.mrb[0].mxu0
      %v435 = vadd.f32 %v249, %v434
      %v436 = vpop.f32.mrb[0].mxu0
      %437 = vmatprep.mubr.f32.mxu0 0.0
      %438 = vmatmul.mubr.f32.gmra.mrb[0].mxu0 %v295
      %v439 = vpop.f32.mrb[0].mxu0
      %v440 = vadd.f32 %v249, %v439
      %v441 = vpop.f32.mrb[0].mxu0
      %442 = vmatprep.mubr.f32.mxu0 0.0
      %443 = vmatmul.mubr.f32.gmra.mrb[0].mxu0 %v298
      %v444 = vpop.f32.mrb[0].mxu0
      %v445 = vadd.f32 %v249, %v444
      %v446 = vpop.f32.mrb[0].mxu0
      %447 = vdwg.mxu0
      %448 = vst.msk [vmem:[%s225] sm:$0xff] %vm251, %v370
      %449 = vst.msk [vmem:[%s225 + $0x8] sm:$0xff] %vm251, %v375
      %450 = vst.msk [vmem:[%s225 + $0x10] sm:$0xff] %vm251, %v380
      %451 = vst.msk [vmem:[%s225 + $0x18] sm:$0xff] %vm251, %v385
      %452 = vst.msk [vmem:[%s225 + $0x20] sm:$0xff] %vm251, %v390
      %453 = vst.msk [vmem:[%s225 + $0x28] sm:$0xff] %vm251, %v395
      %454 = vst.msk [vmem:[%s225 + $0x30] sm:$0xff] %vm251, %v400
      %455 = vst.msk [vmem:[%s225 + $0x38] sm:$0xff] %vm251, %v405
      %456 = vst.msk [vmem:[%s225 + $0x40] sm:$0xff] %vm251, %v410
      %457 = vst.msk [vmem:[%s225 + $0x48] sm:$0xff] %vm251, %v415
      %458 = vst.msk [vmem:[%s225 + $0x50] sm:$0xff] %vm251, %v420
      %459 = vst.msk [vmem:[%s225 + $0x58] sm:$0xff] %vm251, %v425
      %460 = vst.msk [vmem:[%s225 + $0x60] sm:$0xff] %vm251, %v430
      %461 = vst.msk [vmem:[%s225 + $0x68] sm:$0xff] %vm251, %v435
      %462 = vst.msk [vmem:[%s225 + $0x70] sm:$0xff] %vm251, %v440
      %463 = vst.msk [vmem:[%s225 + $0x78] sm:$0xff] %vm251, %v445
      %s464 = smul.u32 16, %s19
      %p465 = scmp.lt.s32.totalorder %s18, 1
      %s466 = scalar_select %p465, %s18, 1
      %p467 = scmp.lt.s32.totalorder %s464, 31
      %s468 = scalar_select %p467, %s464, 31
      %s469 = smul.addr %s466, 32
      %s470 = sadd.s32 %s468, %s469
      %s471 = smul.addr %s470, 8
      %s472 = scalar_lea.vmem %s3, %s471
      // Predicated region
      $region33: #{mdta_forward.5} parent=31 // pred_check
        %p473 = pneg %p121
      $region34: #{mdta_forward.5} parent=31 // pred_check_branch
        %475 = sbr.rel (%p473) target = $region36
      $region35: #{mdta_forward.5} parent=31 // pred_region
        %s476 = smul.u32 16, %s19
      $region36: #{mdta_forward.5} parent=31 // pred_fallthru
        _
    $region32: #{mdta_forward.5} parent=5 // pred_fallthru
      _
    %p477 = scmp.le.s32.totalorder 2, %s9
    // Predicated region
    $region37: #{mdta_forward.5} parent=5 // pred_check
      %p478 = pneg %p477
    $region38: #{mdta_forward.5} parent=5 // pred_check_branch
      %480 = sbr.rel (%p478) target = $region40
    $region39: #{mdta_forward.5} parent=5 // pred_region
      %s481 = ssub.s32 %s9, 2
      // Predicated region
      $region41: #{mdta_forward.5} parent=39 // pred_check
        %p482 = pneg %p127
      $region42: #{mdta_forward.5} parent=39 // pred_check_branch
        %484 = sbr.rel (%p482) target = $region44
      $region43: #{mdta_forward.5} parent=39 // pred_region
        %s485 = smul.u32 16, %s21
        %p486 = scmp.lt.s32.totalorder %s20, 1
        %s487 = scalar_select %p486, %s20, 1
        %p488 = scmp.lt.s32.totalorder %s485, 31
        %s489 = scalar_select %p488, %s485, 31
        %s490 = smul.addr %s487, 32
        %s491 = sadd.s32 %s489, %s490
        %s492 = smul.addr %s491, 8
        %s493 = scalar_lea.vmem %s3, %s492
      $region44: #{mdta_forward.5} parent=39 // pred_fallthru
        _
    $region40: #{mdta_forward.5} parent=5 // pred_fallthru
      _
  $region6: #{mdta_forward.5} parent=0 // loop_footer
    %s13 = sadd.s32 1, %s9
  $region7: #{mdta_forward.5} parent=0 // loop_footer_branch
    %8 = sbr.rel target = $region3
  $region8: #{mdta_forward.5} parent=0 // loop_exit
    _

// kernel: mdta_forward.4
$region0: #{mdta_forward.4}
  #allocation0 [shape = 'u32[]', space=smem, size = 0x4, offset = 0x4, fixed_abs, tag = 'smem constant byte address 0x4 - core index']
  #allocation1 [shape = 'u32[144,128]{1,0:T(1,128)}', space=vmem, size = 0x12000, scoped, tag = 'internal scratch']
  #allocation2 [shape = 'f32[4,4]{1,0:T(4,128)}', space=vmem, size = 0x800, scoped, tag = 'scratch operand']
  %s0 = inlined_call_operand.vmem [shape: f32[2,18,18,5], index: 0, kind: input, shape index: {}]
  %s1 = inlined_call_operand.vmem [shape: f32[2,1,5], index: 1, kind: input, shape index: {}]
  %s2 = inlined_call_operand.vmem [shape: f32[9,5,12], index: 2, kind: input, shape index: {}]
  %s3 = inlined_call_operand.vmem [shape: f32[4,4], index: 3, kind: input, shape index: {}]
  %s4 = inlined_call_operand.vmem [shape: f32[2,4,4], index: 4, kind: output, shape index: {0}]
  %s5 = inlined_call_operand.vmem [shape: f32[2,256,4], index: 5, kind: output, shape index: {1}]
  %6 = xla_tuple %s4, %s5
  %s7 = sld [smem:[#allocation0]]
  $region65: #{mdta_forward.4} parent=0
    _
  %s9 = ssub.s32 1, %s7
  %s10 = scalar_select 0, %s9, %s7
  loop: start=0, step=1, limit=6
  $region2: #{mdta_forward.4} parent=0 // loop_pre_header
    _
  $region3: #{mdta_forward.4} parent=0 // loop_header
    %s12 = sphi 0, %s16
    %p13 = scmp.ge.s32.totalorder %s12, 6
    %s19 = sphi 0, %s31
    %s20 = sphi 0, %s27
    %s21 = sphi 0, %s19
    %s22 = sphi 0, %s20
    %s23 = sphi 0, %s21
    %s24 = sphi 0, %s22
    %s34 = sphi 0, %s36
    %s37 = sphi 0, %s34
    %s38 = sphi 0, %s37
    %s54 = sphi 0, %s38
    %s60 = sphi 0, %s62
    %s63 = sphi 0, %s60
    %s64 = sphi 0, %s63
    %s80 = sphi 0, %s64
    %s84 = sphi 0, %s84
    %s86 = sphi 0, %s84
    %s87 = sphi 0, %s86
    %s101 = sphi 0, %s87
    %s105 = sphi 0, %s105
    %s107 = sphi 0, %s105
    %s108 = sphi 0, %s107
    %s122 = sphi 0, %s108
    %s128 = sphi 0, %s130
    %s131 = sphi 0, %s128
    %s132 = sphi 0, %s131
    %s148 = sphi 0, %s132
    %s156 = sphi 0, %s158
    %s159 = sphi 0, %s156
    %s160 = sphi 0, %s159
    %s176 = sphi 0, %s160
  $region4: #{mdta_forward.4} parent=0 // loop_header_branch
    %15 = sbr.rel (%p13) target = $region8
  $region5: #{mdta_forward.4} parent=0 // loop_body
    %s17 = ssub.s32 %s12, 1
    %s18 = ssub.s32 %s12, 2
    %s25 = sadd.s32 1, %s20
    %p26 = scmp.ge.s32.totalorder %s25, 2
    %s27 = scalar_select %p26, 0, %s25
    %s28 = sadd.s32 1, %s19
    %s29 = scalar_select %p26, %s28, %s19
    %p30 = scmp.ge.s32.totalorder %s29, 2
    %s31 = scalar_select %p30, 0, %s29
    %s32 = ssub.s32 %s19, %s31
    %p33 = scmp.eq.s32.totalorder %s32, 0
    %s35 = sadd.s32 %s34, 1
    %s36 = scalar_select %p33, %s34, %s35
    %p39 = pneg %p33
    %p40 = scmp.eq.s32.totalorder %s12, 3
    %p41 = por %p39, %p40
    %p42 = scmp.ne.s32.totalorder %s34, %s37
    %p43 = scmp.eq.s32.totalorder %s12, 0
    %p44 = por %p42, %p43
    %p45 = scmp.ne.s32.totalorder %s34, %s37
    %p46 = scmp.eq.s32.totalorder %s17, 3
    %p47 = por %p45, %p46
    %p48 = scmp.ne.s32.totalorder %s37, %s38
    %p49 = scmp.eq.s32.totalorder %s17, 0
    %p50 = por %p48, %p49
    %p51 = scmp.ne.s32.totalorder %s37, %s38
    %p52 = scmp.eq.s32.totalorder %s18, 3
    %p53 = por %p51, %p52
    %p55 = scmp.ne.s32.totalorder %s38, %s54
    %p56 = scmp.eq.s32.totalorder %s18, 0
    %p57 = por %p55, %p56
    %s58 = ssub.s32 %s19, %s31
    %p59 = scmp.eq.s32.totalorder %s58, 0
    %s61 = sadd.s32 %s60, 1
    %s62 = scalar_select %p59, %s60, %s61
    %p65 = pneg %p59
    %p66 = scmp.eq.s32.totalorder %s12, 3
    %p67 = por %p65, %p66
    %p68 = scmp.ne.s32.totalorder %s60, %s63
    %p69 = scmp.eq.s32.totalorder %s12, 0
    %p70 = por %p68, %p69
    %p71 = scmp.ne.s32.totalorder %s60, %s63
    %p72 = scmp.eq.s32.totalorder %s17, 3
    %p73 = por %p71, %p72
    %p74 = scmp.ne.s32.totalorder %s63, %s64
    %p75 = scmp.eq.s32.totalorder %s17, 0
    %p76 = por %p74, %p75
    %p77 = scmp.ne.s32.totalorder %s63, %s64
    %p78 = scmp.eq.s32.totalorder %s18, 3
    %p79 = por %p77, %p78
    %p81 = scmp.ne.s32.totalorder %s64, %s80
    %p82 = scmp.eq.s32.totalorder %s18, 0
    %p83 = por %p81, %p82
    %s85 = sadd.s32 %s84, 1
    %p88 = scmp.eq.s32.totalorder %s12, 3
    %p89 = scmp.ne.s32.totalorder %s84, %s86
    %p90 = scmp.eq.s32.totalorder %s12, 0
    %p91 = por %p89, %p90
    %p92 = scmp.ne.s32.totalorder %s84, %s86
    %p93 = scmp.eq.s32.totalorder %s17, 3
    %p94 = por %p92, %p93
    %p95 = scmp.ne.s32.totalorder %s86, %s87
    %p96 = scmp.eq.s32.totalorder %s17, 0
    %p97 = por %p95, %p96
    %p98 = scmp.ne.s32.totalorder %s86, %s87
    %p99 = scmp.eq.s32.totalorder %s18, 3
    %p100 = por %p98, %p99
    %p102 = scmp.ne.s32.totalorder %s87, %s101
    %p103 = scmp.eq.s32.totalorder %s18, 0
    %p104 = por %p102, %p103
    %s106 = sadd.s32 %s105, 1
    %p109 = scmp.eq.s32.totalorder %s12, 3
    %p110 = scmp.ne.s32.totalorder %s105, %s107
    %p111 = scmp.eq.s32.totalorder %s12, 0
    %p112 = por %p110, %p111
    %p113 = scmp.ne.s32.totalorder %s105, %s107
    %p114 = scmp.eq.s32.totalorder %s17, 3
    %p115 = por %p113, %p114
    %p116 = scmp.ne.s32.totalorder %s107, %s108
    %p117 = scmp.eq.s32.totalorder %s17, 0
    %p118 = por %p116, %p117
    %p119 = scmp.ne.s32.totalorder %s107, %s108
    %p120 = scmp.eq.s32.totalorder %s18, 3
    %p121 = por %p119, %p120
    %p123 = scmp.ne.s32.totalorder %s108, %s122
    %p124 = scmp.eq.s32.totalorder %s18, 0
    %p125 = por %p123, %p124
    %s126 = ssub.s32 %s19, %s31
    %p127 = scmp.eq.s32.totalorder %s126, 0
    %s129 = sadd.s32 %s128, 1
    %s130 = scalar_select %p127, %s128, %s129
    %p133 = pneg %p127
    %p134 = scmp.eq.s32.totalorder %s12, 3
    %p135 = por %p133, %p134
    %p136 = scmp.ne.s32.totalorder %s128, %s131
    %p137 = scmp.eq.s32.totalorder %s12, 0
    %p138 = por %p136, %p137
    %p139 = scmp.ne.s32.totalorder %s128, %s131
    %p140 = scmp.eq.s32.totalorder %s17, 3
    %p141 = por %p139, %p140
    %p142 = scmp.ne.s32.totalorder %s131, %s132
    %p143 = scmp.eq.s32.totalorder %s17, 0
    %p144 = por %p142, %p143
    %p145 = scmp.ne.s32.totalorder %s131, %s132
    %p146 = scmp.eq.s32.totalorder %s18, 3
    %p147 = por %p145, %p146
    %p149 = scmp.ne.s32.totalorder %s132, %s148
    %p150 = scmp.eq.s32.totalorder %s18, 0
    %p151 = por %p149, %p150
    %s152 = ssub.s32 %s19, %s31
    %s153 = ssub.s32 %s20, %s27
    %s154 = sor.u32 %s152, %s153
    %p155 = scmp.eq.s32.totalorder %s154, 0
    %s157 = sadd.s32 %s156, 1
    %s158 = scalar_select %p155, %s156, %s157
    %p161 = pneg %p155
    %p162 = scmp.eq.s32.totalorder %s12, 3
    %p163 = por %p161, %p162
    %p164 = scmp.ne.s32.totalorder %s156, %s159
    %p165 = scmp.eq.s32.totalorder %s12, 0
    %p166 = por %p164, %p165
    %p167 = scmp.ne.s32.totalorder %s156, %s159
    %p168 = scmp.eq.s32.totalorder %s17, 3
    %p169 = por %p167, %p168
    %p170 = scmp.ne.s32.totalorder %s159, %s160
    %p171 = scmp.eq.s32.totalorder %s17, 0
    %p172 = por %p170, %p171
    %p173 = scmp.ne.s32.totalorder %s159, %s160
    %p174 = scmp.eq.s32.totalorder %s18, 3
    %p175 = por %p173, %p174
    %p177 = scmp.ne.s32.totalorder %s160, %s176
    %p178 = scmp.eq.s32.totalorder %s18, 0
    %p179 = por %p177, %p178
    %p180 = scmp.le.s32.totalorder 1, %s12
    %p181 = scmp.lt.s32.totalorder %s12, 5
    %p182 = pnand %p180, %p181
    %p183 = pneg %p182
    // Predicated region
    $region9: #{mdta_forward.4} parent=5 // pred_check
      _
    $region10: #{mdta_forward.4} parent=5 // pred_check_branch
      %185 = sbr.rel (%p182) target = $region12
    $region11: #{mdta_forward.4} parent=5 // pred_region
      %s186 = ssub.s32 %s12, 1
      // Predicated region
      $region13: #{mdta_forward.4} parent=11 // pred_check
        %p187 = pneg %p97
      $region14: #{mdta_forward.4} parent=11 // pred_check_branch
        %189 = sbr.rel (%p187) target = $region16
      $region15: #{mdta_forward.4} parent=11 // pred_region
        _
      $region16: #{mdta_forward.4} parent=11 // pred_fallthru
        _
      // Predicated region
      $region17: #{mdta_forward.4} parent=11 // pred_check
        %p190 = pneg %p118
      $region18: #{mdta_forward.4} parent=11 // pred_check_branch
        %192 = sbr.rel (%p190) target = $region20
      $region19: #{mdta_forward.4} parent=11 // pred_region
        _
      $region20: #{mdta_forward.4} parent=11 // pred_fallthru
        _
    $region12: #{mdta_forward.4} parent=5 // pred_fallthru
      _
    %p193 = scmp.lt.s32.totalorder %s12, 4
    // Predicated region
    $region21: #{mdta_forward.4} parent=5 // pred_check
      %p194 = pneg %p193
    $region22: #{mdta_forward.4} parent=5 // pred_check_branch
      %196 = sbr.rel (%p194) target = $region24
    $region23: #{mdta_forward.4} parent=5 // pred_region
      // Predicated region
      $region25: #{mdta_forward.4} parent=23 // pred_check
        %p197 = pneg %p44
      $region26: #{mdta_forward.4} parent=23 // pred_check_branch
        %199 = sbr.rel (%p197) target = $region28
      $region27: #{mdta_forward.4} parent=23 // pred_region
        %p200 = scmp.lt.s32.totalorder %s19, 1
        %s201 = scalar_select %p200, %s19, 1
        %s202 = smul.addr %s201, 54
        %s203 = smul.addr %s202, 8
        %s204 = scalar_lea.vmem %s0, %s203
      $region28: #{mdta_forward.4} parent=23 // pred_fallthru
        _
      // Predicated region
      $region29: #{mdta_forward.4} parent=23 // pred_check
        %p205 = pneg %p70
      $region30: #{mdta_forward.4} parent=23 // pred_check_branch
        %207 = sbr.rel (%p205) target = $region32
      $region31: #{mdta_forward.4} parent=23 // pred_region
        %p208 = scmp.lt.s32.totalorder %s19, 1
        %s209 = scalar_select %p208, %s19, 1
        %s210 = scalar_lea.vmem %s1, %s209
      $region32: #{mdta_forward.4} parent=23 // pred_fallthru
        _
    $region24: #{mdta_forward.4} parent=5 // pred_fallthru
      _
    %p211 = scmp.le.s32.totalorder 1, %s12
    %p212 = scmp.lt.s32.totalorder %s12, 5
    %p213 = pnand %p211, %p212
    %p214 = pneg %p213
    // Predicated region
    $region33: #{mdta_forward.4} parent=5 // pred_check
      _
    $region34: #{mdta_forward.4} parent=5 // pred_check_branch
      %216 = sbr.rel (%p213) target = $region36
    $region35: #{mdta_forward.4} parent=5 // pred_region
      %s217 = ssub.s32 %s12, 1
      %p218 = scmp.lt.s32.totalorder %s21, 1
      %s219 = scalar_select %p218, %s21, 1
      %s220 = smul.addr %s219, 54
      %s221 = smul.addr %s220, 8
      %s222 = scalar_lea.vmem %s0, %s221
      %p223 = pneg %p50
      %p224 = pneg %p47
      %p225 = scmp.lt.s32.totalorder %s21, 1
      %s226 = scalar_select %p225, %s21, 1
      %s227 = scalar_lea.vmem %s1, %s226
      %p228 = pneg %p76
      %p229 = pneg %p73
      %p230 = pneg %p97
      %p231 = pneg %p94
      %p232 = pneg %p118
      %p233 = pneg %p115
      %p234 = pneg %p144
      %p235 = pneg %p141
      %p236 = scmp.lt.s32.totalorder %s21, 1
      %s237 = scalar_select %p236, %s21, 1
      %s238 = smul.addr %s237, 4
      %s239 = scalar_lea.vmem %s4, %s238
      %p240 = pneg %p172
      %p241 = pneg %p169
      %s242 = smul.u32 16, %s22
      %p243 = scmp.lt.s32.totalorder %s21, 1
      %s244 = scalar_select %p243, %s21, 1
      %p245 = scmp.lt.s32.totalorder %s242, 31
      %s246 = scalar_select %p245, %s242, 31
      %s247 = smul.addr %s244, 32
      %s248 = sadd.s32 %s246, %s247
      %s249 = smul.addr %s248, 8
      %s250 = scalar_lea.vmem %s5, %s249
      %p251 = scmp.lt.s32.totalorder %s21, 1
      %s252 = scalar_select %p251, %s21, 1
      %s253 = smul.addr %s252, 54
      %s254 = smul.addr %s253, 8
      %s255 = scalar_lea.vmem %s0, %s254
      %p256 = scmp.lt.s32.totalorder %s21, 1
      %s257 = scalar_select %p256, %s21, 1
      %s258 = scalar_lea.vmem %s1, %s257
      %p259 = scmp.lt.s32.totalorder %s21, 1
      %s260 = scalar_select %p259, %s21, 1
      %s261 = smul.addr %s260, 4
      %s262 = scalar_lea.vmem %s4, %s261
      %s263 = smul.u32 16, %s22
      %p264 = scmp.lt.s32.totalorder %s21, 1
      %s265 = scalar_select %p264, %s21, 1
      %p266 = scmp.lt.s32.totalorder %s263, 31
      %s267 = scalar_select %p266, %s263, 31
      %s268 = smul.addr %s265, 32
      %s269 = sadd.s32 %s267, %s268
      %s270 = smul.addr %s269, 8
      %s271 = scalar_lea.vmem %s5, %s270
      %s272 = smul.u32 16, %s22
      %p273 = scmp.eq.s32.totalorder %s22, 0
      // Predicated region
      $region37: #{mdta_forward.4} parent=35 // pred_check
        %p274 = pneg %p273
      $region38: #{mdta_forward.4} parent=35 // pred_check_branch
        %276 = sbr.rel (%p274) target = $region40
      $region39: #{mdta_forward.4} parent=35 // pred_region
        %vm277 = vcmask 27648
        %278 = vst.msk [vmem:[#allocation2] sm:$0xf] %vm277, 0.0
      $region40: #{mdta_forward.4} parent=35 // pred_fallthru
        _
      %s279 = smul.u32 %s22, 8
      %s280 = smul.u32 %s279, 24
      %s281 = scalar_lea.vmem %s255, %s280
      %v282 = vld [vmem:[%s281] sm:$0xff]
      %v283 = vld [vmem:[%s281 + $0x8] sm:$0xff]
      %v284 = vld [vmem:[%s281 + $0x10] sm:$0x3]
      %v285 = vld [vmem:[%s281 + $0x18] sm:$0xff]
      %v286 = vld [vmem:[%s281 + $0x20] sm:$0xff]
      %v287 = vld [vmem:[%s281 + $0x28] sm:$0x3]
      %v288 = vld [vmem:[%s281 + $0x30] sm:$0xff]
      %v289 = vld [vmem:[%s281 + $0x38] sm:$0xff]
      %v290 = vld [vmem:[%s281 + $0x40] sm:$0x3]
      %v291 = vld [vmem:[%s281 + $0x48] sm:$0xff]
      %v292 = vld [vmem:[%s281 + $0x50] sm:$0xff]
      %v293 = vld [vmem:[%s281 + $0x58] sm:$0x3]
      %v294 = vld [vmem:[%s281 + $0x60] sm:$0xff]
      %v295 = vld [vmem:[%s281 + $0x68] sm:$0xff]
      %v296 = vld [vmem:[%s281 + $0x70] sm:$0x3]
      %v297 = vld [vmem:[%s281 + $0x78] sm:$0xff]
      %v298 = vld [vmem:[%s281 + $0x80] sm:$0xff]
      %v299 = vld [vmem:[%s281 + $0x88] sm:$0x3]
      %v300 = vld [vmem:[%s281 + $0x90] sm:$0xff]
      %v301 = vld [vmem:[%s281 + $0x98] sm:$0xff]
      %v302 = vld [vmem:[%s281 + $0xa0] sm:$0x3]
      %v303 = vld [vmem:[%s281 + $0xa8] sm:$0xff]
      %v304 = vld [vmem:[%s281 + $0xb0] sm:$0xff]
      %v305 = vld [vmem:[%s281 + $0xb8] sm:$0x3]
      %v306 = vld [vmem:[%s281 + $0xc0] sm:$0xff]
      %v307 = vld [vmem:[%s281 + $0xc8] sm:$0xff]
      %v308 = vld [vmem:[%s281 + $0xd0] sm:$0x3]
      %v309 = vld [vmem:[%s281 + $0xd8] sm:$0xff]
      %v310 = vld [vmem:[%s281 + $0xe0] sm:$0xff]
      %v311 = vld [vmem:[%s281 + $0xe8] sm:$0x3]
      %v312 = vld [vmem:[%s258] sm:$0x1]
      %v314 = vlaneseq
      %v315 = vshrl.u32 %v314, 7
      %v316 = vsub.s32 0, %v315
      %v317 = vrot.slane %v312, %v316
      %v319 = vmul.f32 %v282, %v317
      %v320 = vmul.f32 %v283, %v317
      %v321 = vmul.f32 %v284, %v317
      %v322 = vmul.f32 %v285, %v317
      %v323 = vmul.f32 %v286, %v317
      %v324 = vmul.f32 %v287, %v317
      %v325 = vmul.f32 %v288, %v317
      %v326 = vmul.f32 %v289, %v317
      %v327 = vmul.f32 %v290, %v317
      %v328 = vmul.f32 %v291, %v317
      %v329 = vmul.f32 %v292, %v317
      %v330 = vmul.f32 %v293, %v317
      %v331 = vmul.f32 %v294, %v317
      %v332 = vmul.f32 %v295, %v317
      %v333 = vmul.f32 %v296, %v317
      %v334 = vmul.f32 %v297, %v317
      %v335 = vmul.f32 %v298, %v317
      %v336 = vmul.f32 %v299, %v317
      %v337 = vmul.f32 %v300, %v317
      %v338 = vmul.f32 %v301, %v317
      %v339 = vmul.f32 %v302, %v317
      %v340 = vmul.f32 %v303, %v317
      %v341 = vmul.f32 %v304, %v317
      %v342 = vmul.f32 %v305, %v317
      %v343 = vmul.f32 %v306, %v317
      %v344 = vmul.f32 %v307, %v317
      %v345 = vmul.f32 %v308, %v317
      %v346 = vmul.f32 %v309, %v317
      %v347 = vmul.f32 %v310, %v317
      %v348 = vmul.f32 %v311, %v317
      %v349 = vld [vmem:[%s2] sm:$0x1f]
      %vm374 = vcmask 1046528
      %v375 = vrot.slane %v319, 1
      %v376 = vrot.slane %v320, 1
      %v377 = vsel %vm374, %v375, %v376
      %v378 = vrot.slane %v321, 1
      %v379 = vsel %vm374, %v376, %v378
      %v380 = vrot.slane %v322, 1
      %v381 = vrot.slane %v323, 1
      %v382 = vsel %vm374, %v380, %v381
      %v383 = vrot.slane %v324, 1
      %v384 = vsel %vm374, %v381, %v383
      %v385 = vrot.slane %v325, 1
      %v386 = vrot.slane %v326, 1
      %v387 = vsel %vm374, %v385, %v386
      %v388 = vrot.slane %v327, 1
      %v389 = vsel %vm374, %v386, %v388
      %v390 = vrot.slane %v328, 1
      %v391 = vrot.slane %v329, 1
      %v392 = vsel %vm374, %v390, %v391
      %v393 = vrot.slane %v330, 1
      %v394 = vsel %vm374, %v391, %v393
      %v395 = vrot.slane %v331, 1
      %v396 = vrot.slane %v332, 1
      %v397 = vsel %vm374, %v395, %v396
      %v398 = vrot.slane %v333, 1
      %v399 = vsel %vm374, %v396, %v398
      %v400 = vrot.slane %v334, 1
      %v401 = vrot.slane %v335, 1
      %v402 = vsel %vm374, %v400, %v401
      %v403 = vrot.slane %v336, 1
      %v404 = vsel %vm374, %v401, %v403
      %v405 = vrot.slane %v337, 1
      %v406 = vrot.slane %v338, 1
      %v407 = vsel %vm374, %v405, %v406
      %v408 = vrot.slane %v339, 1
      %v409 = vsel %vm374, %v406, %v408
      %v410 = vrot.slane %v340, 1
      %v411 = vrot.slane %v341, 1
      %v412 = vsel %vm374, %v410, %v411
      %v413 = vrot.slane %v342, 1
      %v414 = vsel %vm374, %v411, %v413
      %s415 = scalar_lea.vmem %s2, 8
      %v416 = vld [vmem:[%s415] sm:$0x1f]
      %vm417 = vcmask 39936
      %v418 = vsel %vm417, %v377, 0
      %v420 = vsel %vm417, %v379, 0
      %v422 = vsel %vm417, %v382, 0
      %v424 = vsel %vm417, %v384, 0
      %v426 = vsel %vm417, %v387, 0
      %v428 = vsel %vm417, %v389, 0
      %v430 = vsel %vm417, %v392, 0
      %v432 = vsel %vm417, %v394, 0
      %v434 = vsel %vm417, %v397, 0
      %v436 = vsel %vm417, %v399, 0
      %v438 = vsel %vm417, %v402, 0
      %v440 = vsel %vm417, %v404, 0
      %v442 = vsel %vm417, %v407, 0
      %v444 = vsel %vm417, %v409, 0
      %v446 = vsel %vm417, %v412, 0
      %v448 = vsel %vm417, %v414, 0
      %vm450 = vcmask 1044480
      %v452 = vsel %vm450, %v416, 0
      %454 = vmatprep.subr.mxu0 0.0
      %455 = vmatpush1.msra.mxu0 %v452
      %456 = vmatprep.subr.mxu0 0.0
      %457 = vmatpush1.msra.mxu0 0.0
      %458 = vmatprep.subr.mxu0 0.0
      %459 = vmatpush1.msra.mxu0 0.0
      %460 = vmatprep.subr.mxu0 0.0
      %461 = vmatpush1.msra.mxu0 0.0
      %462 = vmatprep.subr.mxu0 0.0
      %463 = vmatpush1.msra.mxu0 0.0
      %464 = vmatprep.subr.mxu0 0.0
      %465 = vmatpush1.msra.mxu0 0.0
      %466 = vmatprep.subr.mxu0 0.0
      %467 = vmatpush1.msra.mxu0 0.0
      %468 = vmatprep.subr.mxu0 0.0
      %469 = vmatpush1.msra.mxu0 0.0
      %470 = vmatprep.subr.mxu0 0.0
      %471 = vmatpush1.msra.mxu0 0.0
      %472 = vmatprep.subr.mxu0 0.0
      %473 = vmatpush1.msra.mxu0 0.0
      %474 = vmatprep.subr.mxu0 0.0
      %475 = vmatpush1.msra.mxu0 0.0
      %476 = vmatprep.subr.mxu0 0.0
      %477 = vmatpush1.msra.mxu0 0.0
      %478 = vmatprep.subr.mxu0 0.0
      %479 = vmatpush1.msra.mxu0 0.0
      %480 = vmatprep.subr.mxu0 0.0
      %481 = vmatpush1.msra.mxu0 0.0
      %482 = vmatprep.subr.mxu0 0.0
      %483 = vmatpush1.msra.mxu0 0.0
      %484 = vmatprep.subr.mxu0 0.0
      %485 = vmatpush1.msra.mxu0 0.0
      %486 = vmatprep.subr.mxu0 0.0
      %487 = vmatpush1.msra.mxu0 0.0
      %488 = vmatprep.subr.mxu0 0.0
      %489 = vmatpush1.msra.mxu0 0.0
      %490 = vmatprep.subr.mxu0 0.0
      %491 = vmatpush1.msra.mxu0 0.0
      %492 = vmatprep.subr.mxu0 0.0
      %493 = vmatpush1.msra.mxu0 0.0
      %494 = vmatprep.subr.mxu0 0.0
      %495 = vmatpush1.msra.mxu0 0.0
      %496 = vmatprep.subr.mxu0 0.0
      %497 = vmatpush1.msra.mxu0 0.0
      %498 = vmatprep.subr.mxu0 0.0
      %499 = vmatpush1.msra.mxu0 0.0
      %500 = vmatprep.subr.mxu0 0.0
      %501 = vmatpush1.msra.mxu0 0.0
      %502 = vmatprep.subr.mxu0 0.0
      %503 = vmatpush1.msra.mxu0 0.0
      %504 = vmatprep.subr.mxu0 0.0
      %505 = vmatpush1.msra.mxu0 0.0
      %506 = vmatprep.subr.mxu0 0.0
      %507 = vmatpush1.msra.mxu0 0.0
      %508 = vmatprep.subr.mxu0 0.0
      %509 = vmatpush1.msra.mxu0 0.0
      %510 = vmatprep.subr.mxu0 0.0
      %511 = vmatpush1.msra.mxu0 0.0
      %512 = vmatprep.subr.mxu0 0.0
      %513 = vmatpush1.msra.mxu0 0.0
      %514 = vmatprep.subr.mxu0 0.0
      %515 = vmatpush1.msra.mxu0 0.0
      %516 = vmatprep.subr.mxu0 0.0
      %517 = vmatpush1.msra.mxu0 0.0
      %518 = vmatprep.mubr.f32.mxu0 0.0
      %519 = vmatmul.mubr.f32.gmra.mrb[0].mxu0 %v418
      %v520 = vpop.f32.mrb[0].mxu0
      %v521 = vadd.f32 0.0, %v520
      %v522 = vpop.f32.mrb[0].mxu0
      %523 = vmatprep.mubr.f32.mxu0 0.0
      %524 = vmatmul.mubr.f32.gmra.mrb[0].mxu0 %v420
      %v525 = vpop.f32.mrb[0].mxu0
      %v526 = vadd.f32 0.0, %v525
      %v527 = vpop.f32.mrb[0].mxu0
      %528 = vmatprep.mubr.f32.mxu0 0.0
      %529 = vmatmul.mubr.f32.gmra.mrb[0].mxu0 %v422
      %v530 = vpop.f32.mrb[0].mxu0
      %v531 = vadd.f32 0.0, %v530
      %v532 = vpop.f32.mrb[0].mxu0
      %533 = vmatprep.mubr.f32.mxu0 0.0
      %534 = vmatmul.mubr.f32.gmra.mrb[0].mxu0 %v424
      %v535 = vpop.f32.mrb[0].mxu0
      %v536 = vadd.f32 0.0, %v535
      %v537 = vpop.f32.mrb[0].mxu0
      %538 = vmatprep.mubr.f32.mxu0 0.0
      %539 = vmatmul.mubr.f32.gmra.mrb[0].mxu0 %v426
      %v540 = vpop.f32.mrb[0].mxu0
      %v541 = vadd.f32 0.0, %v540
      %v542 = vpop.f32.mrb[0].mxu0
      %543 = vmatprep.mubr.f32.mxu0 0.0
      %544 = vmatmul.mubr.f32.gmra.mrb[0].mxu0 %v428
      %v545 = vpop.f32.mrb[0].mxu0
      %v546 = vadd.f32 0.0, %v545
      %v547 = vpop.f32.mrb[0].mxu0
      %548 = vmatprep.mubr.f32.mxu0 0.0
      %549 = vmatmul.mubr.f32.gmra.mrb[0].mxu0 %v430
      %v550 = vpop.f32.mrb[0].mxu0
      %v551 = vadd.f32 0.0, %v550
      %v552 = vpop.f32.mrb[0].mxu0
      %553 = vmatprep.mubr.f32.mxu0 0.0
      %554 = vmatmul.mubr.f32.gmra.mrb[0].mxu0 %v432
      %v555 = vpop.f32.mrb[0].mxu0
      %v556 = vadd.f32 0.0, %v555
      %v557 = vpop.f32.mrb[0].mxu0
      %558 = vmatprep.mubr.f32.mxu0 0.0
      %559 = vmatmul.mubr.f32.gmra.mrb[0].mxu0 %v434
      %v560 = vpop.f32.mrb[0].mxu0
      %v561 = vadd.f32 0.0, %v560
      %v562 = vpop.f32.mrb[0].mxu0
      %563 = vmatprep.mubr.f32.mxu0 0.0
      %564 = vmatmul.mubr.f32.gmra.mrb[0].mxu0 %v436
      %v565 = vpop.f32.mrb[0].mxu0
      %v566 = vadd.f32 0.0, %v565
      %v567 = vpop.f32.mrb[0].mxu0
      %568 = vmatprep.mubr.f32.mxu0 0.0
      %569 = vmatmul.mubr.f32.gmra.mrb[0].mxu0 %v438
      %v570 = vpop.f32.mrb[0].mxu0
      %v571 = vadd.f32 0.0, %v570
      %v572 = vpop.f32.mrb[0].mxu0
      %573 = vmatprep.mubr.f32.mxu0 0.0
      %574 = vmatmul.mubr.f32.gmra.mrb[0].mxu0 %v440
      %v575 = vpop.f32.mrb[0].mxu0
      %v576 = vadd.f32 0.0, %v575
      %v577 = vpop.f32.mrb[0].mxu0
      %578 = vmatprep.mubr.f32.mxu0 0.0
      %579 = vmatmul.mubr.f32.gmra.mrb[0].mxu0 %v442
      %v580 = vpop.f32.mrb[0].mxu0
      %v581 = vadd.f32 0.0, %v580
      %v582 = vpop.f32.mrb[0].mxu0
      %583 = vmatprep.mubr.f32.mxu0 0.0
      %584 = vmatmul.mubr.f32.gmra.mrb[0].mxu0 %v444
      %v585 = vpop.f32.mrb[0].mxu0
      %v586 = vadd.f32 0.0, %v585
      %v587 = vpop.f32.mrb[0].mxu0
      %588 = vmatprep.mubr.f32.mxu0 0.0
      %589 = vmatmul.mubr.f32.gmra.mrb[0].mxu0 %v446
      %v590 = vpop.f32.mrb[0].mxu0
      %v591 = vadd.f32 0.0, %v590
      %v592 = vpop.f32.mrb[0].mxu0
      %593 = vmatprep.mubr.f32.mxu0 0.0
      %594 = vmatmul.mubr.f32.gmra.mrb[0].mxu0 %v448
      %v595 = vpop.f32.mrb[0].mxu0
      %v596 = vadd.f32 0.0, %v595
      %v597 = vpop.f32.mrb[0].mxu0
      %598 = vdwg.mxu0
      %v599 = vsel %vm417, %v319, 0
      %v601 = vsel %vm417, %v320, 0
      %v603 = vsel %vm417, %v322, 0
      %v605 = vsel %vm417, %v323, 0
      %v607 = vsel %vm417, %v325, 0
      %v609 = vsel %vm417, %v326, 0
      %v611 = vsel %vm417, %v328, 0
      %v613 = vsel %vm417, %v329, 0
      %v615 = vsel %vm417, %v331, 0
      %v617 = vsel %vm417, %v332, 0
      %v619 = vsel %vm417, %v334, 0
      %v621 = vsel %vm417, %v335, 0
      %v623 = vsel %vm417, %v337, 0
      %v625 = vsel %vm417, %v338, 0
      %v627 = vsel %vm417, %v340, 0
      %v629 = vsel %vm417, %v341, 0
      %v632 = vsel %vm450, %v349, 0
      %634 = vmatprep.subr.mxu0 0.0
      %635 = vmatpush1.msra.mxu0 %v632
      %636 = vmatprep.subr.mxu0 0.0
      %637 = vmatpush1.msra.mxu0 0.0
      %638 = vmatprep.subr.mxu0 0.0
      %639 = vmatpush1.msra.mxu0 0.0
      %640 = vmatprep.subr.mxu0 0.0
      %641 = vmatpush1.msra.mxu0 0.0
      %642 = vmatprep.subr.mxu0 0.0
      %643 = vmatpush1.msra.mxu0 0.0
      %644 = vmatprep.subr.mxu0 0.0
      %645 = vmatpush1.msra.mxu0 0.0
      %646 = vmatprep.subr.mxu0 0.0
      %647 = vmatpush1.msra.mxu0 0.0
      %648 = vmatprep.subr.mxu0 0.0
      %649 = vmatpush1.msra.mxu0 0.0
      %650 = vmatprep.subr.mxu0 0.0
      %651 = vmatpush1.msra.mxu0 0.0
      %652 = vmatprep.subr.mxu0 0.0
      %653 = vmatpush1.msra.mxu0 0.0
      %654 = vmatprep.subr.mxu0 0.0
      %655 = vmatpush1.msra.mxu0 0.0
      %656 = vmatprep.subr.mxu0 0.0
      %657 = vmatpush1.msra.mxu0 0.0
      %658 = vmatprep.subr.mxu0 0.0
      %659 = vmatpush1.msra.mxu0 0.0
      %660 = vmatprep.subr.mxu0 0.0
      %661 = vmatpush1.msra.mxu0 0.0
      %662 = vmatprep.subr.mxu0 0.0
      %663 = vmatpush1.msra.mxu0 0.0
      %664 = vmatprep.subr.mxu0 0.0
      %665 = vmatpush1.msra.mxu0 0.0
      %666 = vmatprep.subr.mxu0 0.0
      %667 = vmatpush1.msra.mxu0 0.0
      %668 = vmatprep.subr.mxu0 0.0
      %669 = vmatpush1.msra.mxu0 0.0
      %670 = vmatprep.subr.mxu0 0.0
      %671 = vmatpush1.msra.mxu0 0.0
      %672 = vmatprep.subr.mxu0 0.0
      %673 = vmatpush1.msra.mxu0 0.0
      %674 = vmatprep.subr.mxu0 0.0
      %675 = vmatpush1.msra.mxu0 0.0
      %676 = vmatprep.subr.mxu0 0.0
      %677 = vmatpush1.msra.mxu0 0.0
      %678 = vmatprep.subr.mxu0 0.0
      %679 = vmatpush1.msra.mxu0 0.0
      %680 = vmatprep.subr.mxu0 0.0
      %681 = vmatpush1.msra.mxu0 0.0
      %682 = vmatprep.subr.mxu0 0.0
      %683 = vmatpush1.msra.mxu0 0.0
      %684 = vmatprep.subr.mxu0 0.0
      %685 = vmatpush1.msra.mxu0 0.0
      %686 = vmatprep.subr.mxu0 0.0
      %687 = vmatpush1.msra.mxu0 0.0
      %688 = vmatprep.subr.mxu0 0.0
      %689 = vmatpush1.msra.mxu0 0.0
      %690 = vmatprep.subr.mxu0 0.0
      %691 = vmatpush1.msra.mxu0 0.0
      %692 = vmatprep.subr.mxu0 0.0
      %693 = vmatpush1.msra.mxu0 0.0
      %694 = vmatprep.subr.mxu0 0.0
      %695 = vmatpush1.msra.mxu0 0.0
      %696 = vmatprep.subr.mxu0 0.0
      %697 = vmatpush1.msra.mxu0 0.0
      %698 = vmatprep.mubr.f32.mxu0 0.0
      %699 = vmatmul.mubr.f32.gmra.mrb[0].mxu0 %v599
      %v700 = vpop.f32.mrb[0].mxu0
      %v701 = vadd.f32 %v521, %v700
      %v702 = vpop.f32.mrb[0].mxu0
      %703 = vmatprep.mubr.f32.mxu0 0.0
      %704 = vmatmul.mubr.f32.gmra.mrb[0].mxu0 %v601
      %v705 = vpop.f32.mrb[0].mxu0
      %v706 = vadd.f32 %v526, %v705
      %v707 = vpop.f32.mrb[0].mxu0
      %708 = vmatprep.mubr.f32.mxu0 0.0
      %709 = vmatmul.mubr.f32.gmra.mrb[0].mxu0 %v603
      %v710 = vpop.f32.mrb[0].mxu0
      %v711 = vadd.f32 %v531, %v710
      %v712 = vpop.f32.mrb[0].mxu0
      %713 = vmatprep.mubr.f32.mxu0 0.0
      %714 = vmatmul.mubr.f32.gmra.mrb[0].mxu0 %v605
      %v715 = vpop.f32.mrb[0].mxu0
      %v716 = vadd.f32 %v536, %v715
      %v717 = vpop.f32.mrb[0].mxu0
      %718 = vmatprep.mubr.f32.mxu0 0.0
      %719 = vmatmul.mubr.f32.gmra.mrb[0].mxu0 %v607
      %v720 = vpop.f32.mrb[0].mxu0
      %v721 = vadd.f32 %v541, %v720
      %v722 = vpop.f32.mrb[0].mxu0
      %723 = vmatprep.mubr.f32.mxu0 0.0
      %724 = vmatmul.mubr.f32.gmra.mrb[0].mxu0 %v609
      %v725 = vpop.f32.mrb[0].mxu0
      %v726 = vadd.f32 %v546, %v725
      %v727 = vpop.f32.mrb[0].mxu0
      %728 = vmatprep.mubr.f32.mxu0 0.0
      %729 = vmatmul.mubr.f32.gmra.mrb[0].mxu0 %v611
      %v730 = vpop.f32.mrb[0].mxu0
      %v731 = vadd.f32 %v551, %v730
      %v732 = vpop.f32.mrb[0].mxu0
      %733 = vmatprep.mubr.f32.mxu0 0.0
      %734 = vmatmul.mubr.f32.gmra.mrb[0].mxu0 %v613
      %v735 = vpop.f32.mrb[0].mxu0
      %v736 = vadd.f32 %v556, %v735
      %v737 = vpop.f32.mrb[0].mxu0
      %738 = vmatprep.mubr.f32.mxu0 0.0
      %739 = vmatmul.mubr.f32.gmra.mrb[0].mxu0 %v615
      %v740 = vpop.f32.mrb[0].mxu0
      %v741 = vadd.f32 %v561, %v740
      %v742 = vpop.f32.mrb[0].mxu0
      %743 = vmatprep.mubr.f32.mxu0 0.0
      %744 = vmatmul.mubr.f32.gmra.mrb[0].mxu0 %v617
      %v745 = vpop.f32.mrb[0].mxu0
      %v746 = vadd.f32 %v566, %v745
      %v747 = vpop.f32.mrb[0].mxu0
      %748 = vmatprep.mubr.f32.mxu0 0.0
      %749 = vmatmul.mubr.f32.gmra.mrb[0].mxu0 %v619
      %v750 = vpop.f32.mrb[0].mxu0
      %v751 = vadd.f32 %v571, %v750
      %v752 = vpop.f32.mrb[0].mxu0
      %753 = vmatprep.mubr.f32.mxu0 0.0
      %754 = vmatmul.mubr.f32.gmra.mrb[0].mxu0 %v621
      %v755 = vpop.f32.mrb[0].mxu0
      %v756 = vadd.f32 %v576, %v755
      %v757 = vpop.f32.mrb[0].mxu0
      %758 = vmatprep.mubr.f32.mxu0 0.0
      %759 = vmatmul.mubr.f32.gmra.mrb[0].mxu0 %v623
      %v760 = vpop.f32.mrb[0].mxu0
      %v761 = vadd.f32 %v581, %v760
      %v762 = vpop.f32.mrb[0].mxu0
      %763 = vmatprep.mubr.f32.mxu0 0.0
      %764 = vmatmul.mubr.f32.gmra.mrb[0].mxu0 %v625
      %v765 = vpop.f32.mrb[0].mxu0
      %v766 = vadd.f32 %v586, %v765
      %v767 = vpop.f32.mrb[0].mxu0
      %768 = vmatprep.mubr.f32.mxu0 0.0
      %769 = vmatmul.mubr.f32.gmra.mrb[0].mxu0 %v627
      %v770 = vpop.f32.mrb[0].mxu0
      %v771 = vadd.f32 %v591, %v770
      %v772 = vpop.f32.mrb[0].mxu0
      %773 = vmatprep.mubr.f32.mxu0 0.0
      %774 = vmatmul.mubr.f32.gmra.mrb[0].mxu0 %v629
      %v775 = vpop.f32.mrb[0].mxu0
      %v776 = vadd.f32 %v596, %v775
      %v777 = vpop.f32.mrb[0].mxu0
      %778 = vdwg.mxu0
      %vm779 = vcmask 1045504
      %v780 = vrot.slane %v319, 2
      %v781 = vrot.slane %v320, 2
      %v782 = vsel %vm779, %v780, %v781
      %v783 = vrot.slane %v321, 2
      %v784 = vsel %vm779, %v781, %v783
      %v785 = vrot.slane %v322, 2
      %v786 = vrot.slane %v323, 2
      %v787 = vsel %vm779, %v785, %v786
      %v788 = vrot.slane %v324, 2
      %v789 = vsel %vm779, %v786, %v788
      %v790 = vrot.slane %v325, 2
      %v791 = vrot.slane %v326, 2
      %v792 = vsel %vm779, %v790, %v791
      %v793 = vrot.slane %v327, 2
      %v794 = vsel %vm779, %v791, %v793
      %v795 = vrot.slane %v328, 2
      %v796 = vrot.slane %v329, 2
      %v797 = vsel %vm779, %v795, %v796
      %v798 = vrot.slane %v330, 2
      %v799 = vsel %vm779, %v796, %v798
      %v800 = vrot.slane %v331, 2
      %v801 = vrot.slane %v332, 2
      %v802 = vsel %vm779, %v800, %v801
      %v803 = vrot.slane %v333, 2
      %v804 = vsel %vm779, %v801, %v803
      %v805 = vrot.slane %v334, 2
      %v806 = vrot.slane %v335, 2
      %v807 = vsel %vm779, %v805, %v806
      %v808 = vrot.slane %v336, 2
      %v809 = vsel %vm779, %v806, %v808
      %v810 = vrot.slane %v337, 2
      %v811 = vrot.slane %v338, 2
      %v812 = vsel %vm779, %v810, %v811
      %v813 = vrot.slane %v339, 2
      %v814 = vsel %vm779, %v811, %v813
      %v815 = vrot.slane %v340, 2
      %v816 = vrot.slane %v341, 2
      %v817 = vsel %vm779, %v815, %v816
      %v818 = vrot.slane %v342, 2
      %v819 = vsel %vm779, %v816, %v818
      %s820 = scalar_lea.vmem %s2, 16
      %v821 = vld [vmem:[%s820] sm:$0x1f]
      %v822 = vsel %vm417, %v782, 0
      %v824 = vsel %vm417, %v784, 0
      %v826 = vsel %vm417, %v787, 0
      %v828 = vsel %vm417, %v789, 0
      %v830 = vsel %vm417, %v792, 0
      %v832 = vsel %vm417, %v794, 0
      %v834 = vsel %vm417, %v797, 0
      %v836 = vsel %vm417, %v799, 0
      %v838 = vsel %vm417, %v802, 0
      %v840 = vsel %vm417, %v804, 0
      %v842 = vsel %vm417, %v807, 0
      %v844 = vsel %vm417, %v809, 0
      %v846 = vsel %vm417, %v812, 0
      %v848 = vsel %vm417, %v814, 0
      %v850 = vsel %vm417, %v817, 0
      %v852 = vsel %vm417, %v819, 0
      %v855 = vsel %vm450, %v821, 0
      %857 = vmatprep.subr.mxu0 0.0
      %858 = vmatpush1.msra.mxu0 %v855
      %859 = vmatprep.subr.mxu0 0.0
      %860 = vmatpush1.msra.mxu0 0.0
      %861 = vmatprep.subr.mxu0 0.0
      %862 = vmatpush1.msra.mxu0 0.0
      %863 = vmatprep.subr.mxu0 0.0
      %864 = vmatpush1.msra.mxu0 0.0
      %865 = vmatprep.subr.mxu0 0.0
      %866 = vmatpush1.msra.mxu0 0.0
      %867 = vmatprep.subr.mxu0 0.0
      %868 = vmatpush1.msra.mxu0 0.0
      %869 = vmatprep.subr.mxu0 0.0
      %870 = vmatpush1.msra.mxu0 0.0
      %871 = vmatprep.subr.mxu0 0.0
      %872 = vmatpush1.msra.mxu0 0.0
      %873 = vmatprep.subr.mxu0 0.0
      %874 = vmatpush1.msra.mxu0 0.0
      %875 = vmatprep.subr.mxu0 0.0
      %876 = vmatpush1.msra.mxu0 0.0
      %877 = vmatprep.subr.mxu0 0.0
      %878 = vmatpush1.msra.mxu0 0.0
      %879 = vmatprep.subr.mxu0 0.0
      %880 = vmatpush1.msra.mxu0 0.0
      %881 = vmatprep.subr.mxu0 0.0
      %882 = vmatpush1.msra.mxu0 0.0
      %883 = vmatprep.subr.mxu0 0.0
      %884 = vmatpush1.msra.mxu0 0.0
      %885 = vmatprep.subr.mxu0 0.0
      %886 = vmatpush1.msra.mxu0 0.0
      %887 = vmatprep.subr.mxu0 0.0
      %888 = vmatpush1.msra.mxu0 0.0
      %889 = vmatprep.subr.mxu0 0.0
      %890 = vmatpush1.msra.mxu0 0.0
      %891 = vmatprep.subr.mxu0 0.0
      %892 = vmatpush1.msra.mxu0 0.0
      %893 = vmatprep.subr.mxu0 0.0
      %894 = vmatpush1.msra.mxu0 0.0
      %895 = vmatprep.subr.mxu0 0.0
      %896 = vmatpush1.msra.mxu0 0.0
      %897 = vmatprep.subr.mxu0 0.0
      %898 = vmatpush1.msra.mxu0 0.0
      %899 = vmatprep.subr.mxu0 0.0
      %900 = vmatpush1.msra.mxu0 0.0
      %901 = vmatprep.subr.mxu0 0.0
      %902 = vmatpush1.msra.mxu0 0.0
      %903 = vmatprep.subr.mxu0 0.0
      %904 = vmatpush1.msra.mxu0 0.0
      %905 = vmatprep.subr.mxu0 0.0
      %906 = vmatpush1.msra.mxu0 0.0
      %907 = vmatprep.subr.mxu0 0.0
      %908 = vmatpush1.msra.mxu0 0.0
      %909 = vmatprep.subr.mxu0 0.0
      %910 = vmatpush1.msra.mxu0 0.0
      %911 = vmatprep.subr.mxu0 0.0
      %912 = vmatpush1.msra.mxu0 0.0
      %913 = vmatprep.subr.mxu0 0.0
      %914 = vmatpush1.msra.mxu0 0.0
      %915 = vmatprep.subr.mxu0 0.0
      %916 = vmatpush1.msra.mxu0 0.0
      %917 = vmatprep.subr.mxu0 0.0
      %918 = vmatpush1.msra.mxu0 0.0
      %919 = vmatprep.subr.mxu0 0.0
      %920 = vmatpush1.msra.mxu0 0.0
      %921 = vmatprep.mubr.f32.mxu0 0.0
      %922 = vmatmul.mubr.f32.gmra.mrb[0].mxu0 %v822
      %v923 = vpop.f32.mrb[0].mxu0
      %v924 = vadd.f32 0.0, %v923
      %v925 = vpop.f32.mrb[0].mxu0
      %926 = vmatprep.mubr.f32.mxu0 0.0
      %927 = vmatmul.mubr.f32.gmra.mrb[0].mxu0 %v824
      %v928 = vpop.f32.mrb[0].mxu0
      %v929 = vadd.f32 0.0, %v928
      %v930 = vpop.f32.mrb[0].mxu0
      %931 = vmatprep.mubr.f32.mxu0 0.0
      %932 = vmatmul.mubr.f32.gmra.mrb[0].mxu0 %v826
      %v933 = vpop.f32.mrb[0].mxu0
      %v934 = vadd.f32 0.0, %v933
      %v935 = vpop.f32.mrb[0].mxu0
      %936 = vmatprep.mubr.f32.mxu0 0.0
      %937 = vmatmul.mubr.f32.gmra.mrb[0].mxu0 %v828
      %v938 = vpop.f32.mrb[0].mxu0
      %v939 = vadd.f32 0.0, %v938
      %v940 = vpop.f32.mrb[0].mxu0
      %941 = vmatprep.mubr.f32.mxu0 0.0
      %942 = vmatmul.mubr.f32.gmra.mrb[0].mxu0 %v830
      %v943 = vpop.f32.mrb[0].mxu0
      %v944 = vadd.f32 0.0, %v943
      %v945 = vpop.f32.mrb[0].mxu0
      %946 = vmatprep.mubr.f32.mxu0 0.0
      %947 = vmatmul.mubr.f32.gmra.mrb[0].mxu0 %v832
      %v948 = vpop.f32.mrb[0].mxu0
      %v949 = vadd.f32 0.0, %v948
      %v950 = vpop.f32.mrb[0].mxu0
      %951 = vmatprep.mubr.f32.mxu0 0.0
      %952 = vmatmul.mubr.f32.gmra.mrb[0].mxu0 %v834
      %v953 = vpop.f32.mrb[0].mxu0
      %v954 = vadd.f32 0.0, %v953
      %v955 = vpop.f32.mrb[0].mxu0
      %956 = vmatprep.mubr.f32.mxu0 0.0
      %957 = vmatmul.mubr.f32.gmra.mrb[0].mxu0 %v836
      %v958 = vpop.f32.mrb[0].mxu0
      %v959 = vadd.f32 0.0, %v958
      %v960 = vpop.f32.mrb[0].mxu0
      %961 = vmatprep.mubr.f32.mxu0 0.0
      %962 = vmatmul.mubr.f32.gmra.mrb[0].mxu0 %v838
      %v963 = vpop.f32.mrb[0].mxu0
      %v964 = vadd.f32 0.0, %v963
      %v965 = vpop.f32.mrb[0].mxu0
      %966 = vmatprep.mubr.f32.mxu0 0.0
      %967 = vmatmul.mubr.f32.gmra.mrb[0].mxu0 %v840
      %v968 = vpop.f32.mrb[0].mxu0
      %v969 = vadd.f32 0.0, %v968
      %v970 = vpop.f32.mrb[0].mxu0
      %971 = vmatprep.mubr.f32.mxu0 0.0
      %972 = vmatmul.mubr.f32.gmra.mrb[0].mxu0 %v842
      %v973 = vpop.f32.mrb[0].mxu0
      %v974 = vadd.f32 0.0, %v973
      %v975 = vpop.f32.mrb[0].mxu0
      %976 = vmatprep.mubr.f32.mxu0 0.0
      %977 = vmatmul.mubr.f32.gmra.mrb[0].mxu0 %v844
      %v978 = vpop.f32.mrb[0].mxu0
      %v979 = vadd.f32 0.0, %v978
      %v980 = vpop.f32.mrb[0].mxu0
      %981 = vmatprep.mubr.f32.mxu0 0.0
      %982 = vmatmul.mubr.f32.gmra.mrb[0].mxu0 %v846
      %v983 = vpop.f32.mrb[0].mxu0
      %v984 = vadd.f32 0.0, %v983
      %v985 = vpop.f32.mrb[0].mxu0
      %986 = vmatprep.mubr.f32.mxu0 0.0
      %987 = vmatmul.mubr.f32.gmra.mrb[0].mxu0 %v848
      %v988 = vpop.f32.mrb[0].mxu0
      %v989 = vadd.f32 0.0, %v988
      %v990 = vpop.f32.mrb[0].mxu0
      %991 = vmatprep.mubr.f32.mxu0 0.0
      %992 = vmatmul.mubr.f32.gmra.mrb[0].mxu0 %v850
      %v993 = vpop.f32.mrb[0].mxu0
      %v994 = vadd.f32 0.0, %v993
      %v995 = vpop.f32.mrb[0].mxu0
      %996 = vmatprep.mubr.f32.mxu0 0.0
      %997 = vmatmul.mubr.f32.gmra.mrb[0].mxu0 %v852
      %v998 = vpop.f32.mrb[0].mxu0
      %v999 = vadd.f32 0.0, %v998
      %v1000 = vpop.f32.mrb[0].mxu0
      %1001 = vdwg.mxu0
      %v1002 = vadd.f32 %v701, %v924
      %v1003 = vadd.f32 %v706, %v929
      %v1004 = vadd.f32 %v711, %v934
      %v1005 = vadd.f32 %v716, %v939
      %v1006 = vadd.f32 %v721, %v944
      %v1007 = vadd.f32 %v726, %v949
      %v1008 = vadd.f32 %v731, %v954
      %v1009 = vadd.f32 %v736, %v959
      %v1010 = vadd.f32 %v741, %v964
      %v1011 = vadd.f32 %v746, %v969
      %v1012 = vadd.f32 %v751, %v974
      %v1013 = vadd.f32 %v756, %v979
      %v1014 = vadd.f32 %v761, %v984
      %v1015 = vadd.f32 %v766, %v989
      %v1016 = vadd.f32 %v771, %v994
      %v1017 = vadd.f32 %v776, %v999
      %s1018 = scalar_lea.vmem %s2, 24
      %v1019 = vld [vmem:[%s1018] sm:$0x1f]
      %v1021 = vsel %vm417, %v343, 0
      %v1024 = vsel %vm417, %v344, 0
      %v1027 = vsel %vm450, %v1019, 0
      %1029 = vmatprep.subr.mxu0 0.0
      %1030 = vmatpush1.msra.mxu0 %v1027
      %1031 = vmatprep.subr.mxu0 0.0
      %1032 = vmatpush1.msra.mxu0 0.0
      %1033 = vmatprep.subr.mxu0 0.0
      %1034 = vmatpush1.msra.mxu0 0.0
      %1035 = vmatprep.subr.mxu0 0.0
      %1036 = vmatpush1.msra.mxu0 0.0
      %1037 = vmatprep.subr.mxu0 0.0
      %1038 = vmatpush1.msra.mxu0 0.0
      %1039 = vmatprep.subr.mxu0 0.0
      %1040 = vmatpush1.msra.mxu0 0.0
      %1041 = vmatprep.subr.mxu0 0.0
      %1042 = vmatpush1.msra.mxu0 0.0
      %1043 = vmatprep.subr.mxu0 0.0
      %1044 = vmatpush1.msra.mxu0 0.0
      %1045 = vmatprep.subr.mxu0 0.0
      %1046 = vmatpush1.msra.mxu0 0.0
      %1047 = vmatprep.subr.mxu0 0.0
      %1048 = vmatpush1.msra.mxu0 0.0
      %1049 = vmatprep.subr.mxu0 0.0
      %1050 = vmatpush1.msra.mxu0 0.0
      %1051 = vmatprep.subr.mxu0 0.0
      %1052 = vmatpush1.msra.mxu0 0.0
      %1053 = vmatprep.subr.mxu0 0.0
      %1054 = vmatpush1.msra.mxu0 0.0
      %1055 = vmatprep.subr.mxu0 0.0
      %1056 = vmatpush1.msra.mxu0 0.0
      %1057 = vmatprep.subr.mxu0 0.0
      %1058 = vmatpush1.msra.mxu0 0.0
      %1059 = vmatprep.subr.mxu0 0.0
      %1060 = vmatpush1.msra.mxu0 0.0
      %1061 = vmatprep.subr.mxu0 0.0
      %1062 = vmatpush1.msra.mxu0 0.0
      %1063 = vmatprep.subr.mxu0 0.0
      %1064 = vmatpush1.msra.mxu0 0.0
      %1065 = vmatprep.subr.mxu0 0.0
      %1066 = vmatpush1.msra.mxu0 0.0
      %1067 = vmatprep.subr.mxu0 0.0
      %1068 = vmatpush1.msra.mxu0 0.0
      %1069 = vmatprep.subr.mxu0 0.0
      %1070 = vmatpush1.msra.mxu0 0.0
      %1071 = vmatprep.subr.mxu0 0.0
      %1072 = vmatpush1.msra.mxu0 0.0
      %1073 = vmatprep.subr.mxu0 0.0
      %1074 = vmatpush1.msra.mxu0 0.0
      %1075 = vmatprep.subr.mxu0 0.0
      %1076 = vmatpush1.msra.mxu0 0.0
      %1077 = vmatprep.subr.mxu0 0.0
      %1078 = vmatpush1.msra.mxu0 0.0
      %1079 = vmatprep.subr.mxu0 0.0
      %1080 = vmatpush1.msra.mxu0 0.0
      %1081 = vmatprep.subr.mxu0 0.0
      %1082 = vmatpush1.msra.mxu0 0.0
      %1083 = vmatprep.subr.mxu0 0.0
      %1084 = vmatpush1.msra.mxu0 0.0
      %1085 = vmatprep.subr.mxu0 0.0
      %1086 = vmatpush1.msra.mxu0 0.0
      %1087 = vmatprep.subr.mxu0 0.0
      %1088 = vmatpush1.msra.mxu0 0.0
      %1089 = vmatprep.subr.mxu0 0.0
      %1090 = vmatpush1.msra.mxu0 0.0
      %1091 = vmatprep.subr.mxu0 0.0
      %1092 = vmatpush1.msra.mxu0 0.0
      %1093 = vmatprep.mubr.f32.mxu0 0.0
      %1094 = vmatmul.mubr.f32.gmra.mrb[0].mxu0 %v603
      %v1095 = vpop.f32.mrb[0].mxu0
      %v1096 = vadd.f32 0.0, %v1095
      %v1097 = vpop.f32.mrb[0].mxu0
      %1098 = vmatprep.mubr.f32.mxu0 0.0
      %1099 = vmatmul.mubr.f32.gmra.mrb[0].mxu0 %v605
      %v1100 = vpop.f32.mrb[0].mxu0
      %v1101 = vadd.f32 0.0, %v1100
      %v1102 = vpop.f32.mrb[0].mxu0
      %1103 = vmatprep.mubr.f32.mxu0 0.0
      %1104 = vmatmul.mubr.f32.gmra.mrb[0].mxu0 %v607
      %v1105 = vpop.f32.mrb[0].mxu0
      %v1106 = vadd.f32 0.0, %v1105
      %v1107 = vpop.f32.mrb[0].mxu0
      %1108 = vmatprep.mubr.f32.mxu0 0.0
      %1109 = vmatmul.mubr.f32.gmra.mrb[0].mxu0 %v609
      %v1110 = vpop.f32.mrb[0].mxu0
      %v1111 = vadd.f32 0.0, %v1110
      %v1112 = vpop.f32.mrb[0].mxu0
      %1113 = vmatprep.mubr.f32.mxu0 0.0
      %1114 = vmatmul.mubr.f32.gmra.mrb[0].mxu0 %v611
      %v1115 = vpop.f32.mrb[0].mxu0
      %v1116 = vadd.f32 0.0, %v1115
      %v1117 = vpop.f32.mrb[0].mxu0
      %1118 = vmatprep.mubr.f32.mxu0 0.0
      %1119 = vmatmul.mubr.f32.gmra.mrb[0].mxu0 %v613
      %v1120 = vpop.f32.mrb[0].mxu0
      %v1121 = vadd.f32 0.0, %v1120
      %v1122 = vpop.f32.mrb[0].mxu0
      %1123 = vmatprep.mubr.f32.mxu0 0.0
      %1124 = vmatmul.mubr.f32.gmra.mrb[0].mxu0 %v615
      %v1125 = vpop.f32.mrb[0].mxu0
      %v1126 = vadd.f32 0.0, %v1125
      %v1127 = vpop.f32.mrb[0].mxu0
      %1128 = vmatprep.mubr.f32.mxu0 0.0
      %1129 = vmatmul.mubr.f32.gmra.mrb[0].mxu0 %v617
      %v1130 = vpop.f32.mrb[0].mxu0
      %v1131 = vadd.f32 0.0, %v1130
      %v1132 = vpop.f32.mrb[0].mxu0
      %1133 = vmatprep.mubr.f32.mxu0 0.0
      %1134 = vmatmul.mubr.f32.gmra.mrb[0].mxu0 %v619
      %v1135 = vpop.f32.mrb[0].mxu0
      %v1136 = vadd.f32 0.0, %v1135
      %v1137 = vpop.f32.mrb[0].mxu0
      %1138 = vmatprep.mubr.f32.mxu0 0.0
      %1139 = vmatmul.mubr.f32.gmra.mrb[0].mxu0 %v621
      %v1140 = vpop.f32.mrb[0].mxu0
      %v1141 = vadd.f32 0.0, %v1140
      %v1142 = vpop.f32.mrb[0].mxu0
      %1143 = vmatprep.mubr.f32.mxu0 0.0
      %1144 = vmatmul.mubr.f32.gmra.mrb[0].mxu0 %v623
      %v1145 = vpop.f32.mrb[0].mxu0
      %v1146 = vadd.f32 0.0, %v1145
      %v1147 = vpop.f32.mrb[0].mxu0
      %1148 = vmatprep.mubr.f32.mxu0 0.0
      %1149 = vmatmul.mubr.f32.gmra.mrb[0].mxu0 %v625
      %v1150 = vpop.f32.mrb[0].mxu0
      %v1151 = vadd.f32 0.0, %v1150
      %v1152 = vpop.f32.mrb[0].mxu0
      %1153 = vmatprep.mubr.f32.mxu0 0.0
      %1154 = vmatmul.mubr.f32.gmra.mrb[0].mxu0 %v627
      %v1155 = vpop.f32.mrb[0].mxu0
      %v1156 = vadd.f32 0.0, %v1155
      %v1157 = vpop.f32.mrb[0].mxu0
      %1158 = vmatprep.mubr.f32.mxu0 0.0
      %1159 = vmatmul.mubr.f32.gmra.mrb[0].mxu0 %v629
      %v1160 = vpop.f32.mrb[0].mxu0
      %v1161 = vadd.f32 0.0, %v1160
      %v1162 = vpop.f32.mrb[0].mxu0
      %1163 = vmatprep.mubr.f32.mxu0 0.0
      %1164 = vmatmul.mubr.f32.gmra.mrb[0].mxu0 %v1021
      %v1165 = vpop.f32.mrb[0].mxu0
      %v1166 = vadd.f32 0.0, %v1165
      %v1167 = vpop.f32.mrb[0].mxu0
      %1168 = vmatprep.mubr.f32.mxu0 0.0
      %1169 = vmatmul.mubr.f32.gmra.mrb[0].mxu0 %v1024
      %v1170 = vpop.f32.mrb[0].mxu0
      %v1171 = vadd.f32 0.0, %v1170
      %v1172 = vpop.f32.mrb[0].mxu0
      %1173 = vdwg.mxu0
      %v1174 = vadd.f32 %v1002, %v1096
      %v1175 = vadd.f32 %v1003, %v1101
      %v1176 = vadd.f32 %v1004, %v1106
      %v1177 = vadd.f32 %v1005, %v1111
      %v1178 = vadd.f32 %v1006, %v1116
      %v1179 = vadd.f32 %v1007, %v1121
      %v1180 = vadd.f32 %v1008, %v1126
      %v1181 = vadd.f32 %v1009, %v1131
      %v1182 = vadd.f32 %v1010, %v1136
      %v1183 = vadd.f32 %v1011, %v1141
      %v1184 = vadd.f32 %v1012, %v1146
      %v1185 = vadd.f32 %v1013, %v1151
      %v1186 = vadd.f32 %v1014, %v1156
      %v1187 = vadd.f32 %v1015, %v1161
      %v1188 = vadd.f32 %v1016, %v1166
      %v1189 = vadd.f32 %v1017, %v1171
      %v1191 = vrot.slane %v343, 1
      %v1192 = vrot.slane %v344, 1
      %v1193 = vsel %vm374, %v1191, %v1192
      %v1194 = vrot.slane %v345, 1
      %v1195 = vsel %vm374, %v1192, %v1194
      %s1196 = scalar_lea.vmem %s2, 32
      %v1197 = vld [vmem:[%s1196] sm:$0x1f]
      %v1198 = vsel %vm417, %v1193, 0
      %v1200 = vsel %vm417, %v1195, 0
      %v1203 = vsel %vm450, %v1197, 0
      %1205 = vmatprep.subr.mxu0 0.0
      %1206 = vmatpush1.msra.mxu0 %v1203
      %1207 = vmatprep.subr.mxu0 0.0
      %1208 = vmatpush1.msra.mxu0 0.0
      %1209 = vmatprep.subr.mxu0 0.0
      %1210 = vmatpush1.msra.mxu0 0.0
      %1211 = vmatprep.subr.mxu0 0.0
      %1212 = vmatpush1.msra.mxu0 0.0
      %1213 = vmatprep.subr.mxu0 0.0
      %1214 = vmatpush1.msra.mxu0 0.0
      %1215 = vmatprep.subr.mxu0 0.0
      %1216 = vmatpush1.msra.mxu0 0.0
      %1217 = vmatprep.subr.mxu0 0.0
      %1218 = vmatpush1.msra.mxu0 0.0
      %1219 = vmatprep.subr.mxu0 0.0
      %1220 = vmatpush1.msra.mxu0 0.0
      %1221 = vmatprep.subr.mxu0 0.0
      %1222 = vmatpush1.msra.mxu0 0.0
      %1223 = vmatprep.subr.mxu0 0.0
      %1224 = vmatpush1.msra.mxu0 0.0
      %1225 = vmatprep.subr.mxu0 0.0
      %1226 = vmatpush1.msra.mxu0 0.0
      %1227 = vmatprep.subr.mxu0 0.0
      %1228 = vmatpush1.msra.mxu0 0.0
      %1229 = vmatprep.subr.mxu0 0.0
      %1230 = vmatpush1.msra.mxu0 0.0
      %1231 = vmatprep.subr.mxu0 0.0
      %1232 = vmatpush1.msra.mxu0 0.0
      %1233 = vmatprep.subr.mxu0 0.0
      %1234 = vmatpush1.msra.mxu0 0.0
      %1235 = vmatprep.subr.mxu0 0.0
      %1236 = vmatpush1.msra.mxu0 0.0
      %1237 = vmatprep.subr.mxu0 0.0
      %1238 = vmatpush1.msra.mxu0 0.0
      %1239 = vmatprep.subr.mxu0 0.0
      %1240 = vmatpush1.msra.mxu0 0.0
      %1241 = vmatprep.subr.mxu0 0.0
      %1242 = vmatpush1.msra.mxu0 0.0
      %1243 = vmatprep.subr.mxu0 0.0
      %1244 = vmatpush1.msra.mxu0 0.0
      %1245 = vmatprep.subr.mxu0 0.0
      %1246 = vmatpush1.msra.mxu0 0.0
      %1247 = vmatprep.subr.mxu0 0.0
      %1248 = vmatpush1.msra.mxu0 0.0
      %1249 = vmatprep.subr.mxu0 0.0
      %1250 = vmatpush1.msra.mxu0 0.0
      %1251 = vmatprep.subr.mxu0 0.0
      %1252 = vmatpush1.msra.mxu0 0.0
      %1253 = vmatprep.subr.mxu0 0.0
      %1254 = vmatpush1.msra.mxu0 0.0
      %1255 = vmatprep.subr.mxu0 0.0
      %1256 = vmatpush1.msra.mxu0 0.0
      %1257 = vmatprep.subr.mxu0 0.0
      %1258 = vmatpush1.msra.mxu0 0.0
      %1259 = vmatprep.subr.mxu0 0.0
      %1260 = vmatpush1.msra.mxu0 0.0
      %1261 = vmatprep.subr.mxu0 0.0
      %1262 = vmatpush1.msra.mxu0 0.0
      %1263 = vmatprep.subr.mxu0 0.0
      %1264 = vmatpush1.msra.mxu0 0.0
      %1265 = vmatprep.subr.mxu0 0.0
      %1266 = vmatpush1.msra.mxu0 0.0
      %1267 = vmatprep.subr.mxu0 0.0
      %1268 = vmatpush1.msra.mxu0 0.0
      %1269 = vmatprep.mubr.f32.mxu0 0.0
      %1270 = vmatmul.mubr.f32.gmra.mrb[0].mxu0 %v422
      %v1271 = vpop.f32.mrb[0].mxu0
      %v1272 = vadd.f32 0.0, %v1271
      %v1273 = vpop.f32.mrb[0].mxu0
      %1274 = vmatprep.mubr.f32.mxu0 0.0
      %1275 = vmatmul.mubr.f32.gmra.mrb[0].mxu0 %v424
      %v1276 = vpop.f32.mrb[0].mxu0
      %v1277 = vadd.f32 0.0, %v1276
      %v1278 = vpop.f32.mrb[0].mxu0
      %1279 = vmatprep.mubr.f32.mxu0 0.0
      %1280 = vmatmul.mubr.f32.gmra.mrb[0].mxu0 %v426
      %v1281 = vpop.f32.mrb[0].mxu0
      %v1282 = vadd.f32 0.0, %v1281
      %v1283 = vpop.f32.mrb[0].mxu0
      %1284 = vmatprep.mubr.f32.mxu0 0.0
      %1285 = vmatmul.mubr.f32.gmra.mrb[0].mxu0 %v428
      %v1286 = vpop.f32.mrb[0].mxu0
      %v1287 = vadd.f32 0.0, %v1286
      %v1288 = vpop.f32.mrb[0].mxu0
      %1289 = vmatprep.mubr.f32.mxu0 0.0
      %1290 = vmatmul.mubr.f32.gmra.mrb[0].mxu0 %v430
      %v1291 = vpop.f32.mrb[0].mxu0
      %v1292 = vadd.f32 0.0, %v1291
      %v1293 = vpop.f32.mrb[0].mxu0
      %1294 = vmatprep.mubr.f32.mxu0 0.0
      %1295 = vmatmul.mubr.f32.gmra.mrb[0].mxu0 %v432
      %v1296 = vpop.f32.mrb[0].mxu0
      %v1297 = vadd.f32 0.0, %v1296
      %v1298 = vpop.f32.mrb[0].mxu0
      %1299 = vmatprep.mubr.f32.mxu0 0.0
      %1300 = vmatmul.mubr.f32.gmra.mrb[0].mxu0 %v434
      %v1301 = vpop.f32.mrb[0].mxu0
      %v1302 = vadd.f32 0.0, %v1301
      %v1303 = vpop.f32.mrb[0].mxu0
      %1304 = vmatprep.mubr.f32.mxu0 0.0
      %1305 = vmatmul.mubr.f32.gmra.mrb[0].mxu0 %v436
      %v1306 = vpop.f32.mrb[0].mxu0
      %v1307 = vadd.f32 0.0, %v1306
      %v1308 = vpop.f32.mrb[0].mxu0
      %1309 = vmatprep.mubr.f32.mxu0 0.0
      %1310 = vmatmul.mubr.f32.gmra.mrb[0].mxu0 %v438
      %v1311 = vpop.f32.mrb[0].mxu0
      %v1312 = vadd.f32 0.0, %v1311
      %v1313 = vpop.f32.mrb[0].mxu0
      %1314 = vmatprep.mubr.f32.mxu0 0.0
      %1315 = vmatmul.mubr.f32.gmra.mrb[0].mxu0 %v440
      %v1316 = vpop.f32.mrb[0].mxu0
      %v1317 = vadd.f32 0.0, %v1316
      %v1318 = vpop.f32.mrb[0].mxu0
      %1319 = vmatprep.mubr.f32.mxu0 0.0
      %1320 = vmatmul.mubr.f32.gmra.mrb[0].mxu0 %v442
      %v1321 = vpop.f32.mrb[0].mxu0
      %v1322 = vadd.f32 0.0, %v1321
      %v1323 = vpop.f32.mrb[0].mxu0
      %1324 = vmatprep.mubr.f32.mxu0 0.0
      %1325 = vmatmul.mubr.f32.gmra.mrb[0].mxu0 %v444
      %v1326 = vpop.f32.mrb[0].mxu0
      %v1327 = vadd.f32 0.0, %v1326
      %v1328 = vpop.f32.mrb[0].mxu0
      %1329 = vmatprep.mubr.f32.mxu0 0.0
      %1330 = vmatmul.mubr.f32.gmra.mrb[0].mxu0 %v446
      %v1331 = vpop.f32.mrb[0].mxu0
      %v1332 = vadd.f32 0.0, %v1331
      %v1333 = vpop.f32.mrb[0].mxu0
      %1334 = vmatprep.mubr.f32.mxu0 0.0
      %1335 = vmatmul.mubr.f32.gmra.mrb[0].mxu0 %v448
      %v1336 = vpop.f32.mrb[0].mxu0
      %v1337 = vadd.f32 0.0, %v1336
      %v1338 = vpop.f32.mrb[0].mxu0
      %1339 = vmatprep.mubr.f32.mxu0 0.0
      %1340 = vmatmul.mubr.f32.gmra.mrb[0].mxu0 %v1198
      %v1341 = vpop.f32.mrb[0].mxu0
      %v1342 = vadd.f32 0.0, %v1341
      %v1343 = vpop.f32.mrb[0].mxu0
      %1344 = vmatprep.mubr.f32.mxu0 0.0
      %1345 = vmatmul.mubr.f32.gmra.mrb[0].mxu0 %v1200
      %v1346 = vpop.f32.mrb[0].mxu0
      %v1347 = vadd.f32 0.0, %v1346
      %v1348 = vpop.f32.mrb[0].mxu0
      %1349 = vdwg.mxu0
      %v1350 = vadd.f32 %v1174, %v1272
      %v1351 = vadd.f32 %v1175, %v1277
      %v1352 = vadd.f32 %v1176, %v1282
      %v1353 = vadd.f32 %v1177, %v1287
      %v1354 = vadd.f32 %v1178, %v1292
      %v1355 = vadd.f32 %v1179, %v1297
      %v1356 = vadd.f32 %v1180, %v1302
      %v1357 = vadd.f32 %v1181, %v1307
      %v1358 = vadd.f32 %v1182, %v1312
      %v1359 = vadd.f32 %v1183, %v1317
      %v1360 = vadd.f32 %v1184, %v1322
      %v1361 = vadd.f32 %v1185, %v1327
      %v1362 = vadd.f32 %v1186, %v1332
      %v1363 = vadd.f32 %v1187, %v1337
      %v1364 = vadd.f32 %v1188, %v1342
      %v1365 = vadd.f32 %v1189, %v1347
      %v1366 = vrot.slane %v343, 2
      %v1367 = vrot.slane %v344, 2
      %v1368 = vsel %vm779, %v1366, %v1367
      %v1369 = vrot.slane %v345, 2
      %v1370 = vsel %vm779, %v1367, %v1369
      %s1371 = scalar_lea.vmem %s2, 40
      %v1372 = vld [vmem:[%s1371] sm:$0x1f]
      %v1373 = vsel %vm417, %v1368, 0
      %v1375 = vsel %vm417, %v1370, 0
      %v1378 = vsel %vm450, %v1372, 0
      %1380 = vmatprep.subr.mxu0 0.0
      %1381 = vmatpush1.msra.mxu0 %v1378
      %1382 = vmatprep.subr.mxu0 0.0
      %1383 = vmatpush1.msra.mxu0 0.0
      %1384 = vmatprep.subr.mxu0 0.0
      %1385 = vmatpush1.msra.mxu0 0.0
      %1386 = vmatprep.subr.mxu0 0.0
      %1387 = vmatpush1.msra.mxu0 0.0
      %1388 = vmatprep.subr.mxu0 0.0
      %1389 = vmatpush1.msra.mxu0 0.0
      %1390 = vmatprep.subr.mxu0 0.0
      %1391 = vmatpush1.msra.mxu0 0.0
      %1392 = vmatprep.subr.mxu0 0.0
      %1393 = vmatpush1.msra.mxu0 0.0
      %1394 = vmatprep.subr.mxu0 0.0
      %1395 = vmatpush1.msra.mxu0 0.0
      %1396 = vmatprep.subr.mxu0 0.0
      %1397 = vmatpush1.msra.mxu0 0.0
      %1398 = vmatprep.subr.mxu0 0.0
      %1399 = vmatpush1.msra.mxu0 0.0
      %1400 = vmatprep.subr.mxu0 0.0
      %1401 = vmatpush1.msra.mxu0 0.0
      %1402 = vmatprep.subr.mxu0 0.0
      %1403 = vmatpush1.msra.mxu0 0.0
      %1404 = vmatprep.subr.mxu0 0.0
      %1405 = vmatpush1.msra.mxu0 0.0
      %1406 = vmatprep.subr.mxu0 0.0
      %1407 = vmatpush1.msra.mxu0 0.0
      %1408 = vmatprep.subr.mxu0 0.0
      %1409 = vmatpush1.msra.mxu0 0.0
      %1410 = vmatprep.subr.mxu0 0.0
      %1411 = vmatpush1.msra.mxu0 0.0
      %1412 = vmatprep.subr.mxu0 0.0
      %1413 = vmatpush1.msra.mxu0 0.0
      %1414 = vmatprep.subr.mxu0 0.0
      %1415 = vmatpush1.msra.mxu0 0.0
      %1416 = vmatprep.subr.mxu0 0.0
      %1417 = vmatpush1.msra.mxu0 0.0
      %1418 = vmatprep.subr.mxu0 0.0
      %1419 = vmatpush1.msra.mxu0 0.0
      %1420 = vmatprep.subr.mxu0 0.0
      %1421 = vmatpush1.msra.mxu0 0.0
      %1422 = vmatprep.subr.mxu0 0.0
      %1423 = vmatpush1.msra.mxu0 0.0
      %1424 = vmatprep.subr.mxu0 0.0
      %1425 = vmatpush1.msra.mxu0 0.0
      %1426 = vmatprep.subr.mxu0 0.0
      %1427 = vmatpush1.msra.mxu0 0.0
      %1428 = vmatprep.subr.mxu0 0.0
      %1429 = vmatpush1.msra.mxu0 0.0
      %1430 = vmatprep.subr.mxu0 0.0
      %1431 = vmatpush1.msra.mxu0 0.0
      %1432 = vmatprep.subr.mxu0 0.0
      %1433 = vmatpush1.msra.mxu0 0.0
      %1434 = vmatprep.subr.mxu0 0.0
      %1435 = vmatpush1.msra.mxu0 0.0
      %1436 = vmatprep.subr.mxu0 0.0
      %1437 = vmatpush1.msra.mxu0 0.0
      %1438 = vmatprep.subr.mxu0 0.0
      %1439 = vmatpush1.msra.mxu0 0.0
      %1440 = vmatprep.subr.mxu0 0.0
      %1441 = vmatpush1.msra.mxu0 0.0
      %1442 = vmatprep.subr.mxu0 0.0
      %1443 = vmatpush1.msra.mxu0 0.0
      %1444 = vmatprep.mubr.f32.mxu0 0.0
      %1445 = vmatmul.mubr.f32.gmra.mrb[0].mxu0 %v826
      %v1446 = vpop.f32.mrb[0].mxu0
      %v1447 = vadd.f32 0.0, %v1446
      %v1448 = vpop.f32.mrb[0].mxu0
      %1449 = vmatprep.mubr.f32.mxu0 0.0
      %1450 = vmatmul.mubr.f32.gmra.mrb[0].mxu0 %v828
      %v1451 = vpop.f32.mrb[0].mxu0
      %v1452 = vadd.f32 0.0, %v1451
      %v1453 = vpop.f32.mrb[0].mxu0
      %1454 = vmatprep.mubr.f32.mxu0 0.0
      %1455 = vmatmul.mubr.f32.gmra.mrb[0].mxu0 %v830
      %v1456 = vpop.f32.mrb[0].mxu0
      %v1457 = vadd.f32 0.0, %v1456
      %v1458 = vpop.f32.mrb[0].mxu0
      %1459 = vmatprep.mubr.f32.mxu0 0.0
      %1460 = vmatmul.mubr.f32.gmra.mrb[0].mxu0 %v832
      %v1461 = vpop.f32.mrb[0].mxu0
      %v1462 = vadd.f32 0.0, %v1461
      %v1463 = vpop.f32.mrb[0].mxu0
      %1464 = vmatprep.mubr.f32.mxu0 0.0
      %1465 = vmatmul.mubr.f32.gmra.mrb[0].mxu0 %v834
      %v1466 = vpop.f32.mrb[0].mxu0
      %v1467 = vadd.f32 0.0, %v1466
      %v1468 = vpop.f32.mrb[0].mxu0
      %1469 = vmatprep.mubr.f32.mxu0 0.0
      %1470 = vmatmul.mubr.f32.gmra.mrb[0].mxu0 %v836
      %v1471 = vpop.f32.mrb[0].mxu0
      %v1472 = vadd.f32 0.0, %v1471
      %v1473 = vpop.f32.mrb[0].mxu0
      %1474 = vmatprep.mubr.f32.mxu0 0.0
      %1475 = vmatmul.mubr.f32.gmra.mrb[0].mxu0 %v838
      %v1476 = vpop.f32.mrb[0].mxu0
      %v1477 = vadd.f32 0.0, %v1476
      %v1478 = vpop.f32.mrb[0].mxu0
      %1479 = vmatprep.mubr.f32.mxu0 0.0
      %1480 = vmatmul.mubr.f32.gmra.mrb[0].mxu0 %v840
      %v1481 = vpop.f32.mrb[0].mxu0
      %v1482 = vadd.f32 0.0, %v1481
      %v1483 = vpop.f32.mrb[0].mxu0
      %1484 = vmatprep.mubr.f32.mxu0 0.0
      %1485 = vmatmul.mubr.f32.gmra.mrb[0].mxu0 %v842
      %v1486 = vpop.f32.mrb[0].mxu0
      %v1487 = vadd.f32 0.0, %v1486
      %v1488 = vpop.f32.mrb[0].mxu0
      %1489 = vmatprep.mubr.f32.mxu0 0.0
      %1490 = vmatmul.mubr.f32.gmra.mrb[0].mxu0 %v844
      %v1491 = vpop.f32.mrb[0].mxu0
      %v1492 = vadd.f32 0.0, %v1491
      %v1493 = vpop.f32.mrb[0].mxu0
      %1494 = vmatprep.mubr.f32.mxu0 0.0
      %1495 = vmatmul.mubr.f32.gmra.mrb[0].mxu0 %v846
      %v1496 = vpop.f32.mrb[0].mxu0
      %v1497 = vadd.f32 0.0, %v1496
      %v1498 = vpop.f32.mrb[0].mxu0
      %1499 = vmatprep.mubr.f32.mxu0 0.0
      %1500 = vmatmul.mubr.f32.gmra.mrb[0].mxu0 %v848
      %v1501 = vpop.f32.mrb[0].mxu0
      %v1502 = vadd.f32 0.0, %v1501
      %v1503 = vpop.f32.mrb[0].mxu0
      %1504 = vmatprep.mubr.f32.mxu0 0.0
      %1505 = vmatmul.mubr.f32.gmra.mrb[0].mxu0 %v850
      %v1506 = vpop.f32.mrb[0].mxu0
      %v1507 = vadd.f32 0.0, %v1506
      %v1508 = vpop.f32.mrb[0].mxu0
      %1509 = vmatprep.mubr.f32.mxu0 0.0
      %1510 = vmatmul.mubr.f32.gmra.mrb[0].mxu0 %v852
      %v1511 = vpop.f32.mrb[0].mxu0
      %v1512 = vadd.f32 0.0, %v1511
      %v1513 = vpop.f32.mrb[0].mxu0
      %1514 = vmatprep.mubr.f32.mxu0 0.0
      %1515 = vmatmul.mubr.f32.gmra.mrb[0].mxu0 %v1373
      %v1516 = vpop.f32.mrb[0].mxu0
      %v1517 = vadd.f32 0.0, %v1516
      %v1518 = vpop.f32.mrb[0].mxu0
      %1519 = vmatprep.mubr.f32.mxu0 0.0
      %1520 = vmatmul.mubr.f32.gmra.mrb[0].mxu0 %v1375
      %v1521 = vpop.f32.mrb[0].mxu0
      %v1522 = vadd.f32 0.0, %v1521
      %v1523 = vpop.f32.mrb[0].mxu0
      %1524 = vdwg.mxu0
      %v1525 = vadd.f32 %v1350, %v1447
      %v1526 = vadd.f32 %v1351, %v1452
      %v1527 = vadd.f32 %v1352, %v1457
      %v1528 = vadd.f32 %v1353, %v1462
      %v1529 = vadd.f32 %v1354, %v1467
      %v1530 = vadd.f32 %v1355, %v1472
      %v1531 = vadd.f32 %v1356, %v1477
      %v1532 = vadd.f32 %v1357, %v1482
      %v1533 = vadd.f32 %v1358, %v1487
      %v1534 = vadd.f32 %v1359, %v1492
      %v1535 = vadd.f32 %v1360, %v1497
      %v1536 = vadd.f32 %v1361, %v1502
      %v1537 = vadd.f32 %v1362, %v1507
      %v1538 = vadd.f32 %v1363, %v1512
      %v1539 = vadd.f32 %v1364, %v1517
      %v1540 = vadd.f32 %v1365, %v1522
      %s1541 = scalar_lea.vmem %s2, 48
      %v1542 = vld [vmem:[%s1541] sm:$0x1f]
      %v1544 = vsel %vm417, %v346, 0
      %v1547 = vsel %vm417, %v347, 0
      %v1550 = vsel %vm450, %v1542, 0
      %1552 = vmatprep.subr.mxu0 0.0
      %1553 = vmatpush1.msra.mxu0 %v1550
      %1554 = vmatprep.subr.mxu0 0.0
      %1555 = vmatpush1.msra.mxu0 0.0
      %1556 = vmatprep.subr.mxu0 0.0
      %1557 = vmatpush1.msra.mxu0 0.0
      %1558 = vmatprep.subr.mxu0 0.0
      %1559 = vmatpush1.msra.mxu0 0.0
      %1560 = vmatprep.subr.mxu0 0.0
      %1561 = vmatpush1.msra.mxu0 0.0
      %1562 = vmatprep.subr.mxu0 0.0
      %1563 = vmatpush1.msra.mxu0 0.0
      %1564 = vmatprep.subr.mxu0 0.0
      %1565 = vmatpush1.msra.mxu0 0.0
      %1566 = vmatprep.subr.mxu0 0.0
      %1567 = vmatpush1.msra.mxu0 0.0
      %1568 = vmatprep.subr.mxu0 0.0
      %1569 = vmatpush1.msra.mxu0 0.0
      %1570 = vmatprep.subr.mxu0 0.0
      %1571 = vmatpush1.msra.mxu0 0.0
      %1572 = vmatprep.subr.mxu0 0.0
      %1573 = vmatpush1.msra.mxu0 0.0
      %1574 = vmatprep.subr.mxu0 0.0
      %1575 = vmatpush1.msra.mxu0 0.0
      %1576 = vmatprep.subr.mxu0 0.0
      %1577 = vmatpush1.msra.mxu0 0.0
      %1578 = vmatprep.subr.mxu0 0.0
      %1579 = vmatpush1.msra.mxu0 0.0
      %1580 = vmatprep.subr.mxu0 0.0
      %1581 = vmatpush1.msra.mxu0 0.0
      %1582 = vmatprep.subr.mxu0 0.0
      %1583 = vmatpush1.msra.mxu0 0.0
      %1584 = vmatprep.subr.mxu0 0.0
      %1585 = vmatpush1.msra.mxu0 0.0
      %1586 = vmatprep.subr.mxu0 0.0
      %1587 = vmatpush1.msra.mxu0 0.0
      %1588 = vmatprep.subr.mxu0 0.0
      %1589 = vmatpush1.msra.mxu0 0.0
      %1590 = vmatprep.subr.mxu0 0.0
      %1591 = vmatpush1.msra.mxu0 0.0
      %1592 = vmatprep.subr.mxu0 0.0
      %1593 = vmatpush1.msra.mxu0 0.0
      %1594 = vmatprep.subr.mxu0 0.0
      %1595 = vmatpush1.msra.mxu0 0.0
      %1596 = vmatprep.subr.mxu0 0.0
      %1597 = vmatpush1.msra.mxu0 0.0
      %1598 = vmatprep.subr.mxu0 0.0
      %1599 = vmatpush1.msra.mxu0 0.0
      %1600 = vmatprep.subr.mxu0 0.0
      %1601 = vmatpush1.msra.mxu0 0.0
      %1602 = vmatprep.subr.mxu0 0.0
      %1603 = vmatpush1.msra.mxu0 0.0
      %1604 = vmatprep.subr.mxu0 0.0
      %1605 = vmatpush1.msra.mxu0 0.0
      %1606 = vmatprep.subr.mxu0 0.0
      %1607 = vmatpush1.msra.mxu0 0.0
      %1608 = vmatprep.subr.mxu0 0.0
      %1609 = vmatpush1.msra.mxu0 0.0
      %1610 = vmatprep.subr.mxu0 0.0
      %1611 = vmatpush1.msra.mxu0 0.0
      %1612 = vmatprep.subr.mxu0 0.0
      %1613 = vmatpush1.msra.mxu0 0.0
      %1614 = vmatprep.subr.mxu0 0.0
      %1615 = vmatpush1.msra.mxu0 0.0
      %1616 = vmatprep.mubr.f32.mxu0 0.0
      %1617 = vmatmul.mubr.f32.gmra.mrb[0].mxu0 %v607
      %v1618 = vpop.f32.mrb[0].mxu0
      %v1619 = vadd.f32 0.0, %v1618
      %v1620 = vpop.f32.mrb[0].mxu0
      %1621 = vmatprep.mubr.f32.mxu0 0.0
      %1622 = vmatmul.mubr.f32.gmra.mrb[0].mxu0 %v609
      %v1623 = vpop.f32.mrb[0].mxu0
      %v1624 = vadd.f32 0.0, %v1623
      %v1625 = vpop.f32.mrb[0].mxu0
      %1626 = vmatprep.mubr.f32.mxu0 0.0
      %1627 = vmatmul.mubr.f32.gmra.mrb[0].mxu0 %v611
      %v1628 = vpop.f32.mrb[0].mxu0
      %v1629 = vadd.f32 0.0, %v1628
      %v1630 = vpop.f32.mrb[0].mxu0
      %1631 = vmatprep.mubr.f32.mxu0 0.0
      %1632 = vmatmul.mubr.f32.gmra.mrb[0].mxu0 %v613
      %v1633 = vpop.f32.mrb[0].mxu0
      %v1634 = vadd.f32 0.0, %v1633
      %v1635 = vpop.f32.mrb[0].mxu0
      %1636 = vmatprep.mubr.f32.mxu0 0.0
      %1637 = vmatmul.mubr.f32.gmra.mrb[0].mxu0 %v615
      %v1638 = vpop.f32.mrb[0].mxu0
      %v1639 = vadd.f32 0.0, %v1638
      %v1640 = vpop.f32.mrb[0].mxu0
      %1641 = vmatprep.mubr.f32.mxu0 0.0
      %1642 = vmatmul.mubr.f32.gmra.mrb[0].mxu0 %v617
      %v1643 = vpop.f32.mrb[0].mxu0
      %v1644 = vadd.f32 0.0, %v1643
      %v1645 = vpop.f32.mrb[0].mxu0
      %1646 = vmatprep.mubr.f32.mxu0 0.0
      %1647 = vmatmul.mubr.f32.gmra.mrb[0].mxu0 %v619
      %v1648 = vpop.f32.mrb[0].mxu0
      %v1649 = vadd.f32 0.0, %v1648
      %v1650 = vpop.f32.mrb[0].mxu0
      %1651 = vmatprep.mubr.f32.mxu0 0.0
      %1652 = vmatmul.mubr.f32.gmra.mrb[0].mxu0 %v621
      %v1653 = vpop.f32.mrb[0].mxu0
      %v1654 = vadd.f32 0.0, %v1653
      %v1655 = vpop.f32.mrb[0].mxu0
      %1656 = vmatprep.mubr.f32.mxu0 0.0
      %1657 = vmatmul.mubr.f32.gmra.mrb[0].mxu0 %v623
      %v1658 = vpop.f32.mrb[0].mxu0
      %v1659 = vadd.f32 0.0, %v1658
      %v1660 = vpop.f32.mrb[0].mxu0
      %1661 = vmatprep.mubr.f32.mxu0 0.0
      %1662 = vmatmul.mubr.f32.gmra.mrb[0].mxu0 %v625
      %v1663 = vpop.f32.mrb[0].mxu0
      %v1664 = vadd.f32 0.0, %v1663
      %v1665 = vpop.f32.mrb[0].mxu0
      %1666 = vmatprep.mubr.f32.mxu0 0.0
      %1667 = vmatmul.mubr.f32.gmra.mrb[0].mxu0 %v627
      %v1668 = vpop.f32.mrb[0].mxu0
      %v1669 = vadd.f32 0.0, %v1668
      %v1670 = vpop.f32.mrb[0].mxu0
      %1671 = vmatprep.mubr.f32.mxu0 0.0
      %1672 = vmatmul.mubr.f32.gmra.mrb[0].mxu0 %v629
      %v1673 = vpop.f32.mrb[0].mxu0
      %v1674 = vadd.f32 0.0, %v1673
      %v1675 = vpop.f32.mrb[0].mxu0
      %1676 = vmatprep.mubr.f32.mxu0 0.0
      %1677 = vmatmul.mubr.f32.gmra.mrb[0].mxu0 %v1021
      %v1678 = vpop.f32.mrb[0].mxu0
      %v1679 = vadd.f32 0.0, %v1678
      %v1680 = vpop.f32.mrb[0].mxu0
      %1681 = vmatprep.mubr.f32.mxu0 0.0
      %1682 = vmatmul.mubr.f32.gmra.mrb[0].mxu0 %v1024
      %v1683 = vpop.f32.mrb[0].mxu0
      %v1684 = vadd.f32 0.0, %v1683
      %v1685 = vpop.f32.mrb[0].mxu0
      %1686 = vmatprep.mubr.f32.mxu0 0.0
      %1687 = vmatmul.mubr.f32.gmra.mrb[0].mxu0 %v1544
      %v1688 = vpop.f32.mrb[0].mxu0
      %v1689 = vadd.f32 0.0, %v1688
      %v1690 = vpop.f32.mrb[0].mxu0
      %1691 = vmatprep.mubr.f32.mxu0 0.0
      %1692 = vmatmul.mubr.f32.gmra.mrb[0].mxu0 %v1547
      %v1693 = vpop.f32.mrb[0].mxu0
      %v1694 = vadd.f32 0.0, %v1693
      %v1695 = vpop.f32.mrb[0].mxu0
      %1696 = vdwg.mxu0
      %v1697 = vadd.f32 %v1525, %v1619
      %v1698 = vadd.f32 %v1526, %v1624
      %v1699 = vadd.f32 %v1527, %v1629
      %v1700 = vadd.f32 %v1528, %v1634
      %v1701 = vadd.f32 %v1529, %v1639
      %v1702 = vadd.f32 %v1530, %v1644
      %v1703 = vadd.f32 %v1531, %v1649
      %v1704 = vadd.f32 %v1532, %v1654
      %v1705 = vadd.f32 %v1533, %v1659
      %v1706 = vadd.f32 %v1534, %v1664
      %v1707 = vadd.f32 %v1535, %v1669
      %v1708 = vadd.f32 %v1536, %v1674
      %v1709 = vadd.f32 %v1537, %v1679
      %v1710 = vadd.f32 %v1538, %v1684
      %v1711 = vadd.f32 %v1539, %v1689
      %v1712 = vadd.f32 %v1540, %v1694
      %v1714 = vrot.slane %v346, 1
      %v1715 = vrot.slane %v347, 1
      %v1716 = vsel %vm374, %v1714, %v1715
      %v1717 = vrot.slane %v348, 1
      %v1718 = vsel %vm374, %v1715, %v1717
      %s1719 = scalar_lea.vmem %s2, 56
      %v1720 = vld [vmem:[%s1719] sm:$0x1f]
      %v1721 = vsel %vm417, %v1716, 0
      %v1723 = vsel %vm417, %v1718, 0
      %v1726 = vsel %vm450, %v1720, 0
      %1728 = vmatprep.subr.mxu0 0.0
      %1729 = vmatpush1.msra.mxu0 %v1726
      %1730 = vmatprep.subr.mxu0 0.0
      %1731 = vmatpush1.msra.mxu0 0.0
      %1732 = vmatprep.subr.mxu0 0.0
      %1733 = vmatpush1.msra.mxu0 0.0
      %1734 = vmatprep.subr.mxu0 0.0
      %1735 = vmatpush1.msra.mxu0 0.0
      %1736 = vmatprep.subr.mxu0 0.0
      %1737 = vmatpush1.msra.mxu0 0.0
      %1738 = vmatprep.subr.mxu0 0.0
      %1739 = vmatpush1.msra.mxu0 0.0
      %1740 = vmatprep.subr.mxu0 0.0
      %1741 = vmatpush1.msra.mxu0 0.0
      %1742 = vmatprep.subr.mxu0 0.0
      %1743 = vmatpush1.msra.mxu0 0.0
      %1744 = vmatprep.subr.mxu0 0.0
      %1745 = vmatpush1.msra.mxu0 0.0
      %1746 = vmatprep.subr.mxu0 0.0
      %1747 = vmatpush1.msra.mxu0 0.0
      %1748 = vmatprep.subr.mxu0 0.0
      %1749 = vmatpush1.msra.mxu0 0.0
      %1750 = vmatprep.subr.mxu0 0.0
      %1751 = vmatpush1.msra.mxu0 0.0
      %1752 = vmatprep.subr.mxu0 0.0
      %1753 = vmatpush1.msra.mxu0 0.0
      %1754 = vmatprep.subr.mxu0 0.0
      %1755 = vmatpush1.msra.mxu0 0.0
      %1756 = vmatprep.subr.mxu0 0.0
      %1757 = vmatpush1.msra.mxu0 0.0
      %1758 = vmatprep.subr.mxu0 0.0
      %1759 = vmatpush1.msra.mxu0 0.0
      %1760 = vmatprep.subr.mxu0 0.0
      %1761 = vmatpush1.msra.mxu0 0.0
      %1762 = vmatprep.subr.mxu0 0.0
      %1763 = vmatpush1.msra.mxu0 0.0
      %1764 = vmatprep.subr.mxu0 0.0
      %1765 = vmatpush1.msra.mxu0 0.0
      %1766 = vmatprep.subr.mxu0 0.0
      %1767 = vmatpush1.msra.mxu0 0.0
      %1768 = vmatprep.subr.mxu0 0.0
      %1769 = vmatpush1.msra.mxu0 0.0
      %1770 = vmatprep.subr.mxu0 0.0
      %1771 = vmatpush1.msra.mxu0 0.0
      %1772 = vmatprep.subr.mxu0 0.0
      %1773 = vmatpush1.msra.mxu0 0.0
      %1774 = vmatprep.subr.mxu0 0.0
      %1775 = vmatpush1.msra.mxu0 0.0
      %1776 = vmatprep.subr.mxu0 0.0
      %1777 = vmatpush1.msra.mxu0 0.0
      %1778 = vmatprep.subr.mxu0 0.0
      %1779 = vmatpush1.msra.mxu0 0.0
      %1780 = vmatprep.subr.mxu0 0.0
      %1781 = vmatpush1.msra.mxu0 0.0
      %1782 = vmatprep.subr.mxu0 0.0
      %1783 = vmatpush1.msra.mxu0 0.0
      %1784 = vmatprep.subr.mxu0 0.0
      %1785 = vmatpush1.msra.mxu0 0.0
      %1786 = vmatprep.subr.mxu0 0.0
      %1787 = vmatpush1.msra.mxu0 0.0
      %1788 = vmatprep.subr.mxu0 0.0
      %1789 = vmatpush1.msra.mxu0 0.0
      %1790 = vmatprep.subr.mxu0 0.0
      %1791 = vmatpush1.msra.mxu0 0.0
      %1792 = vmatprep.mubr.f32.mxu0 0.0
      %1793 = vmatmul.mubr.f32.gmra.mrb[0].mxu0 %v426
      %v1794 = vpop.f32.mrb[0].mxu0
      %v1795 = vadd.f32 0.0, %v1794
      %v1796 = vpop.f32.mrb[0].mxu0
      %1797 = vmatprep.mubr.f32.mxu0 0.0
      %1798 = vmatmul.mubr.f32.gmra.mrb[0].mxu0 %v428
      %v1799 = vpop.f32.mrb[0].mxu0
      %v1800 = vadd.f32 0.0, %v1799
      %v1801 = vpop.f32.mrb[0].mxu0
      %1802 = vmatprep.mubr.f32.mxu0 0.0
      %1803 = vmatmul.mubr.f32.gmra.mrb[0].mxu0 %v430
      %v1804 = vpop.f32.mrb[0].mxu0
      %v1805 = vadd.f32 0.0, %v1804
      %v1806 = vpop.f32.mrb[0].mxu0
      %1807 = vmatprep.mubr.f32.mxu0 0.0
      %1808 = vmatmul.mubr.f32.gmra.mrb[0].mxu0 %v432
      %v1809 = vpop.f32.mrb[0].mxu0
      %v1810 = vadd.f32 0.0, %v1809
      %v1811 = vpop.f32.mrb[0].mxu0
      %1812 = vmatprep.mubr.f32.mxu0 0.0
      %1813 = vmatmul.mubr.f32.gmra.mrb[0].mxu0 %v434
      %v1814 = vpop.f32.mrb[0].mxu0
      %v1815 = vadd.f32 0.0, %v1814
      %v1816 = vpop.f32.mrb[0].mxu0
      %1817 = vmatprep.mubr.f32.mxu0 0.0
      %1818 = vmatmul.mubr.f32.gmra.mrb[0].mxu0 %v436
      %v1819 = vpop.f32.mrb[0].mxu0
      %v1820 = vadd.f32 0.0, %v1819
      %v1821 = vpop.f32.mrb[0].mxu0
      %1822 = vmatprep.mubr.f32.mxu0 0.0
      %1823 = vmatmul.mubr.f32.gmra.mrb[0].mxu0 %v438
      %v1824 = vpop.f32.mrb[0].mxu0
      %v1825 = vadd.f32 0.0, %v1824
      %v1826 = vpop.f32.mrb[0].mxu0
      %1827 = vmatprep.mubr.f32.mxu0 0.0
      %1828 = vmatmul.mubr.f32.gmra.mrb[0].mxu0 %v440
      %v1829 = vpop.f32.mrb[0].mxu0
      %v1830 = vadd.f32 0.0, %v1829
      %v1831 = vpop.f32.mrb[0].mxu0
      %1832 = vmatprep.mubr.f32.mxu0 0.0
      %1833 = vmatmul.mubr.f32.gmra.mrb[0].mxu0 %v442
      %v1834 = vpop.f32.mrb[0].mxu0
      %v1835 = vadd.f32 0.0, %v1834
      %v1836 = vpop.f32.mrb[0].mxu0
      %1837 = vmatprep.mubr.f32.mxu0 0.0
      %1838 = vmatmul.mubr.f32.gmra.mrb[0].mxu0 %v444
      %v1839 = vpop.f32.mrb[0].mxu0
      %v1840 = vadd.f32 0.0, %v1839
      %v1841 = vpop.f32.mrb[0].mxu0
      %1842 = vmatprep.mubr.f32.mxu0 0.0
      %1843 = vmatmul.mubr.f32.gmra.mrb[0].mxu0 %v446
      %v1844 = vpop.f32.mrb[0].mxu0
      %v1845 = vadd.f32 0.0, %v1844
      %v1846 = vpop.f32.mrb[0].mxu0
      %1847 = vmatprep.mubr.f32.mxu0 0.0
      %1848 = vmatmul.mubr.f32.gmra.mrb[0].mxu0 %v448
      %v1849 = vpop.f32.mrb[0].mxu0
      %v1850 = vadd.f32 0.0, %v1849
      %v1851 = vpop.f32.mrb[0].mxu0
      %1852 = vmatprep.mubr.f32.mxu0 0.0
      %1853 = vmatmul.mubr.f32.gmra.mrb[0].mxu0 %v1198
      %v1854 = vpop.f32.mrb[0].mxu0
      %v1855 = vadd.f32 0.0, %v1854
      %v1856 = vpop.f32.mrb[0].mxu0
      %1857 = vmatprep.mubr.f32.mxu0 0.0
      %1858 = vmatmul.mubr.f32.gmra.mrb[0].mxu0 %v1200
      %v1859 = vpop.f32.mrb[0].mxu0
      %v1860 = vadd.f32 0.0, %v1859
      %v1861 = vpop.f32.mrb[0].mxu0
      %1862 = vmatprep.mubr.f32.mxu0 0.0
      %1863 = vmatmul.mubr.f32.gmra.mrb[0].mxu0 %v1721
      %v1864 = vpop.f32.mrb[0].mxu0
      %v1865 = vadd.f32 0.0, %v1864
      %v1866 = vpop.f32.mrb[0].mxu0
      %1867 = vmatprep.mubr.f32.mxu0 0.0
      %1868 = vmatmul.mubr.f32.gmra.mrb[0].mxu0 %v1723
      %v1869 = vpop.f32.mrb[0].mxu0
      %v1870 = vadd.f32 0.0, %v1869
      %v1871 = vpop.f32.mrb[0].mxu0
      %1872 = vdwg.mxu0
      %v1873 = vadd.f32 %v1697, %v1795
      %v1874 = vadd.f32 %v1698, %v1800
      %v1875 = vadd.f32 %v1699, %v1805
      %v1876 = vadd.f32 %v1700, %v1810
      %v1877 = vadd.f32 %v1701, %v1815
      %v1878 = vadd.f32 %v1702, %v1820
      %v1879 = vadd.f32 %v1703, %v1825
      %v1880 = vadd.f32 %v1704, %v1830
      %v1881 = vadd.f32 %v1705, %v1835
      %v1882 = vadd.f32 %v1706, %v1840
      %v1883 = vadd.f32 %v1707, %v1845
      %v1884 = vadd.f32 %v1708, %v1850
      %v1885 = vadd.f32 %v1709, %v1855
      %v1886 = vadd.f32 %v1710, %v1860
      %v1887 = vadd.f32 %v1711, %v1865
      %v1888 = vadd.f32 %v1712, %v1870
      %v1889 = vrot.slane %v346, 2
      %v1890 = vrot.slane %v347, 2
      %v1891 = vsel %vm779, %v1889, %v1890
      %v1892 = vrot.slane %v348, 2
      %v1893 = vsel %vm779, %v1890, %v1892
      %s1894 = scalar_lea.vmem %s2, 64
      %v1895 = vld [vmem:[%s1894] sm:$0x1f]
      %v1896 = vsel %vm417, %v1891, 0
      %v1898 = vsel %vm417, %v1893, 0
      %v1901 = vsel %vm450, %v1895, 0
      %1903 = vmatprep.subr.mxu0 0.0
      %1904 = vmatpush1.msra.mxu0 %v1901
      %1905 = vmatprep.subr.mxu0 0.0
      %1906 = vmatpush1.msra.mxu0 0.0
      %1907 = vmatprep.subr.mxu0 0.0
      %1908 = vmatpush1.msra.mxu0 0.0
      %1909 = vmatprep.subr.mxu0 0.0
      %1910 = vmatpush1.msra.mxu0 0.0
      %1911 = vmatprep.subr.mxu0 0.0
      %1912 = vmatpush1.msra.mxu0 0.0
      %1913 = vmatprep.subr.mxu0 0.0
      %1914 = vmatpush1.msra.mxu0 0.0
      %1915 = vmatprep.subr.mxu0 0.0
      %1916 = vmatpush1.msra.mxu0 0.0
      %1917 = vmatprep.subr.mxu0 0.0
      %1918 = vmatpush1.msra.mxu0 0.0
      %1919 = vmatprep.subr.mxu0 0.0
      %1920 = vmatpush1.msra.mxu0 0.0
      %1921 = vmatprep.subr.mxu0 0.0
      %1922 = vmatpush1.msra.mxu0 0.0
      %1923 = vmatprep.subr.mxu0 0.0
      %1924 = vmatpush1.msra.mxu0 0.0
      %1925 = vmatprep.subr.mxu0 0.0
      %1926 = vmatpush1.msra.mxu0 0.0
      %1927 = vmatprep.subr.mxu0 0.0
      %1928 = vmatpush1.msra.mxu0 0.0
      %1929 = vmatprep.subr.mxu0 0.0
      %1930 = vmatpush1.msra.mxu0 0.0
      %1931 = vmatprep.subr.mxu0 0.0
      %1932 = vmatpush1.msra.mxu0 0.0
      %1933 = vmatprep.subr.mxu0 0.0
      %1934 = vmatpush1.msra.mxu0 0.0
      %1935 = vmatprep.subr.mxu0 0.0
      %1936 = vmatpush1.msra.mxu0 0.0
      %1937 = vmatprep.subr.mxu0 0.0
      %1938 = vmatpush1.msra.mxu0 0.0
      %1939 = vmatprep.subr.mxu0 0.0
      %1940 = vmatpush1.msra.mxu0 0.0
      %1941 = vmatprep.subr.mxu0 0.0
      %1942 = vmatpush1.msra.mxu0 0.0
      %1943 = vmatprep.subr.mxu0 0.0
      %1944 = vmatpush1.msra.mxu0 0.0
      %1945 = vmatprep.subr.mxu0 0.0
      %1946 = vmatpush1.msra.mxu0 0.0
      %1947 = vmatprep.subr.mxu0 0.0
      %1948 = vmatpush1.msra.mxu0 0.0
      %1949 = vmatprep.subr.mxu0 0.0
      %1950 = vmatpush1.msra.mxu0 0.0
      %1951 = vmatprep.subr.mxu0 0.0
      %1952 = vmatpush1.msra.mxu0 0.0
      %1953 = vmatprep.subr.mxu0 0.0
      %1954 = vmatpush1.msra.mxu0 0.0
      %1955 = vmatprep.subr.mxu0 0.0
      %1956 = vmatpush1.msra.mxu0 0.0
      %1957 = vmatprep.subr.mxu0 0.0
      %1958 = vmatpush1.msra.mxu0 0.0
      %1959 = vmatprep.subr.mxu0 0.0
      %1960 = vmatpush1.msra.mxu0 0.0
      %1961 = vmatprep.subr.mxu0 0.0
      %1962 = vmatpush1.msra.mxu0 0.0
      %1963 = vmatprep.subr.mxu0 0.0
      %1964 = vmatpush1.msra.mxu0 0.0
      %1965 = vmatprep.subr.mxu0 0.0
      %1966 = vmatpush1.msra.mxu0 0.0
      %1967 = vmatprep.mubr.f32.mxu0 0.0
      %1968 = vmatmul.mubr.f32.gmra.mrb[0].mxu0 %v830
      %v1969 = vpop.f32.mrb[0].mxu0
      %v1970 = vadd.f32 0.0, %v1969
      %v1971 = vpop.f32.mrb[0].mxu0
      %1972 = vmatprep.mubr.f32.mxu0 0.0
      %1973 = vmatmul.mubr.f32.gmra.mrb[0].mxu0 %v832
      %v1974 = vpop.f32.mrb[0].mxu0
      %v1975 = vadd.f32 0.0, %v1974
      %v1976 = vpop.f32.mrb[0].mxu0
      %1977 = vmatprep.mubr.f32.mxu0 0.0
      %1978 = vmatmul.mubr.f32.gmra.mrb[0].mxu0 %v834
      %v1979 = vpop.f32.mrb[0].mxu0
      %v1980 = vadd.f32 0.0, %v1979
      %v1981 = vpop.f32.mrb[0].mxu0
      %1982 = vmatprep.mubr.f32.mxu0 0.0
      %1983 = vmatmul.mubr.f32.gmra.mrb[0].mxu0 %v836
      %v1984 = vpop.f32.mrb[0].mxu0
      %v1985 = vadd.f32 0.0, %v1984
      %v1986 = vpop.f32.mrb[0].mxu0
      %1987 = vmatprep.mubr.f32.mxu0 0.0
      %1988 = vmatmul.mubr.f32.gmra.mrb[0].mxu0 %v838
      %v1989 = vpop.f32.mrb[0].mxu0
      %v1990 = vadd.f32 0.0, %v1989
      %v1991 = vpop.f32.mrb[0].mxu0
      %1992 = vmatprep.mubr.f32.mxu0 0.0
      %1993 = vmatmul.mubr.f32.gmra.mrb[0].mxu0 %v840
      %v1994 = vpop.f32.mrb[0].mxu0
      %v1995 = vadd.f32 0.0, %v1994
      %v1996 = vpop.f32.mrb[0].mxu0
      %1997 = vmatprep.mubr.f32.mxu0 0.0
      %1998 = vmatmul.mubr.f32.gmra.mrb[0].mxu0 %v842
      %v1999 = vpop.f32.mrb[0].mxu0
      %v2000 = vadd.f32 0.0, %v1999
      %v2001 = vpop.f32.mrb[0].mxu0
      %2002 = vmatprep.mubr.f32.mxu0 0.0
      %2003 = vmatmul.mubr.f32.gmra.mrb[0].mxu0 %v844
      %v2004 = vpop.f32.mrb[0].mxu0
      %v2005 = vadd.f32 0.0, %v2004
      %v2006 = vpop.f32.mrb[0].mxu0
      %2007 = vmatprep.mubr.f32.mxu0 0.0
      %2008 = vmatmul.mubr.f32.gmra.mrb[0].mxu0 %v846
      %v2009 = vpop.f32.mrb[0].mxu0
      %v2010 = vadd.f32 0.0, %v2009
      %v2011 = vpop.f32.mrb[0].mxu0
      %2012 = vmatprep.mubr.f32.mxu0 0.0
      %2013 = vmatmul.mubr.f32.gmra.mrb[0].mxu0 %v848
      %v2014 = vpop.f32.mrb[0].mxu0
      %v2015 = vadd.f32 0.0, %v2014
      %v2016 = vpop.f32.mrb[0].mxu0
      %2017 = vmatprep.mubr.f32.mxu0 0.0
      %2018 = vmatmul.mubr.f32.gmra.mrb[0].mxu0 %v850
      %v2019 = vpop.f32.mrb[0].mxu0
      %v2020 = vadd.f32 0.0, %v2019
      %v2021 = vpop.f32.mrb[0].mxu0
      %2022 = vmatprep.mubr.f32.mxu0 0.0
      %2023 = vmatmul.mubr.f32.gmra.mrb[0].mxu0 %v852
      %v2024 = vpop.f32.mrb[0].mxu0
      %v2025 = vadd.f32 0.0, %v2024
      %v2026 = vpop.f32.mrb[0].mxu0
      %2027 = vmatprep.mubr.f32.mxu0 0.0
      %2028 = vmatmul.mubr.f32.gmra.mrb[0].mxu0 %v1373
      %v2029 = vpop.f32.mrb[0].mxu0
      %v2030 = vadd.f32 0.0, %v2029
      %v2031 = vpop.f32.mrb[0].mxu0
      %2032 = vmatprep.mubr.f32.mxu0 0.0
      %2033 = vmatmul.mubr.f32.gmra.mrb[0].mxu0 %v1375
      %v2034 = vpop.f32.mrb[0].mxu0
      %v2035 = vadd.f32 0.0, %v2034
      %v2036 = vpop.f32.mrb[0].mxu0
      %2037 = vmatprep.mubr.f32.mxu0 0.0
      %2038 = vmatmul.mubr.f32.gmra.mrb[0].mxu0 %v1896
      %v2039 = vpop.f32.mrb[0].mxu0
      %v2040 = vadd.f32 0.0, %v2039
      %v2041 = vpop.f32.mrb[0].mxu0
      %2042 = vmatprep.mubr.f32.mxu0 0.0
      %2043 = vmatmul.mubr.f32.gmra.mrb[0].mxu0 %v1898
      %v2044 = vpop.f32.mrb[0].mxu0
      %v2045 = vadd.f32 0.0, %v2044
      %v2046 = vpop.f32.mrb[0].mxu0
      %2047 = vdwg.mxu0
      %v2048 = vadd.f32 %v1873, %v1970
      %v2049 = vadd.f32 %v1874, %v1975
      %v2050 = vadd.f32 %v1875, %v1980
      %v2051 = vadd.f32 %v1876, %v1985
      %v2052 = vadd.f32 %v1877, %v1990
      %v2053 = vadd.f32 %v1878, %v1995
      %v2054 = vadd.f32 %v1879, %v2000
      %v2055 = vadd.f32 %v1880, %v2005
      %v2056 = vadd.f32 %v1881, %v2010
      %v2057 = vadd.f32 %v1882, %v2015
      %v2058 = vadd.f32 %v1883, %v2020
      %v2059 = vadd.f32 %v1884, %v2025
      %v2060 = vadd.f32 %v1885, %v2030
      %v2061 = vadd.f32 %v1886, %v2035
      %v2062 = vadd.f32 %v1887, %v2040
      %v2063 = vadd.f32 %v1888, %v2045
      %2080 = vrot.lane.b32.xlu0 %v2048, 120
      %v2081 = vpop.permute.xlu0 %2080
      %2082 = vrot.lane.b32.xlu0 %v2049, 120
      %v2083 = vpop.permute.xlu0 %2082
      %2084 = vrot.lane.b32.xlu0 %v2050, 120
      %v2085 = vpop.permute.xlu0 %2084
      %2086 = vrot.lane.b32.xlu0 %v2051, 120
      %v2087 = vpop.permute.xlu0 %2086
      %2088 = vrot.lane.b32.xlu0 %v2052, 120
      %v2089 = vpop.permute.xlu0 %2088
      %2090 = vrot.lane.b32.xlu0 %v2053, 120
      %v2091 = vpop.permute.xlu0 %2090
      %2092 = vrot.lane.b32.xlu0 %v2054, 120
      %v2093 = vpop.permute.xlu0 %2092
      %2094 = vrot.lane.b32.xlu0 %v2055, 120
      %v2095 = vpop.permute.xlu0 %2094
      %2096 = vrot.lane.b32.xlu0 %v2056, 120
      %v2097 = vpop.permute.xlu0 %2096
      %2098 = vrot.lane.b32.xlu0 %v2057, 120
      %v2099 = vpop.permute.xlu0 %2098
      %2100 = vrot.lane.b32.xlu0 %v2058, 120
      %v2101 = vpop.permute.xlu0 %2100
      %2102 = vrot.lane.b32.xlu0 %v2059, 120
      %v2103 = vpop.permute.xlu0 %2102
      %2104 = vrot.lane.b32.xlu0 %v2060, 120
      %v2105 = vpop.permute.xlu0 %2104
      %2106 = vrot.lane.b32.xlu0 %v2061, 120
      %v2107 = vpop.permute.xlu0 %2106
      %2108 = vrot.lane.b32.xlu0 %v2062, 120
      %v2109 = vpop.permute.xlu0 %2108
      %2110 = vrot.lane.b32.xlu0 %v2063, 120
      %v2111 = vpop.permute.xlu0 %2110
      %vm2128 = vcmask 31744
      %2129 = vst.msk [vmem:[%s271] sm:$0xff] %vm2128, %v2081
      %2130 = vst.msk [vmem:[%s271 + $0x8] sm:$0xff] %vm2128, %v2083
      %2131 = vst.msk [vmem:[%s271 + $0x10] sm:$0xff] %vm2128, %v2085
      %2132 = vst.msk [vmem:[%s271 + $0x18] sm:$0xff] %vm2128, %v2087
      %2133 = vst.msk [vmem:[%s271 + $0x20] sm:$0xff] %vm2128, %v2089
      %2134 = vst.msk [vmem:[%s271 + $0x28] sm:$0xff] %vm2128, %v2091
      %2135 = vst.msk [vmem:[%s271 + $0x30] sm:$0xff] %vm2128, %v2093
      %2136 = vst.msk [vmem:[%s271 + $0x38] sm:$0xff] %vm2128, %v2095
      %2137 = vst.msk [vmem:[%s271 + $0x40] sm:$0xff] %vm2128, %v2097
      %2138 = vst.msk [vmem:[%s271 + $0x48] sm:$0xff] %vm2128, %v2099
      %2139 = vst.msk [vmem:[%s271 + $0x50] sm:$0xff] %vm2128, %v2101
      %2140 = vst.msk [vmem:[%s271 + $0x58] sm:$0xff] %vm2128, %v2103
      %2141 = vst.msk [vmem:[%s271 + $0x60] sm:$0xff] %vm2128, %v2105
      %2142 = vst.msk [vmem:[%s271 + $0x68] sm:$0xff] %vm2128, %v2107
      %2143 = vst.msk [vmem:[%s271 + $0x70] sm:$0xff] %vm2128, %v2109
      %2144 = vst.msk [vmem:[%s271 + $0x78] sm:$0xff] %vm2128, %v2111
      %v2145 = vld [vmem:[#allocation2] sm:$0xf]
      %2146 = vrot.lane.b32.xlu0 %v2048, 124
      %v2147 = vpop.permute.xlu0 %2146
      %2148 = vrot.lane.b32.xlu0 %v2049, 124
      %v2149 = vpop.permute.xlu0 %2148
      %2150 = vrot.lane.b32.xlu0 %v2050, 124
      %v2151 = vpop.permute.xlu0 %2150
      %2152 = vrot.lane.b32.xlu0 %v2051, 124
      %v2153 = vpop.permute.xlu0 %2152
      %2154 = vrot.lane.b32.xlu0 %v2052, 124
      %v2155 = vpop.permute.xlu0 %2154
      %2156 = vrot.lane.b32.xlu0 %v2053, 124
      %v2157 = vpop.permute.xlu0 %2156
      %2158 = vrot.lane.b32.xlu0 %v2054, 124
      %v2159 = vpop.permute.xlu0 %2158
      %2160 = vrot.lane.b32.xlu0 %v2055, 124
      %v2161 = vpop.permute.xlu0 %2160
      %2162 = vrot.lane.b32.xlu0 %v2056, 124
      %v2163 = vpop.permute.xlu0 %2162
      %2164 = vrot.lane.b32.xlu0 %v2057, 124
      %v2165 = vpop.permute.xlu0 %2164
      %2166 = vrot.lane.b32.xlu0 %v2058, 124
      %v2167 = vpop.permute.xlu0 %2166
      %2168 = vrot.lane.b32.xlu0 %v2059, 124
      %v2169 = vpop.permute.xlu0 %2168
      %2170 = vrot.lane.b32.xlu0 %v2060, 124
      %v2171 = vpop.permute.xlu0 %2170
      %2172 = vrot.lane.b32.xlu0 %v2061, 124
      %v2173 = vpop.permute.xlu0 %2172
      %2174 = vrot.lane.b32.xlu0 %v2062, 124
      %v2175 = vpop.permute.xlu0 %2174
      %2176 = vrot.lane.b32.xlu0 %v2063, 124
      %v2177 = vpop.permute.xlu0 %2176
      %2194 = vxpose.xlu0.b32.start [1/16] %v2147, 128
      %2195 = vxpose.xlu0.b32.cont [2/16] %v2149, 128
      %2196 = vxpose.xlu0.b32.cont [3/16] %v2151, 128
      %2197 = vxpose.xlu0.b32.cont [4/16] %v2153, 128
      %2198 = vxpose.xlu0.b32.cont [5/16] %v2155, 128
      %2199 = vxpose.xlu0.b32.cont [6/16] %v2157, 128
      %2200 = vxpose.xlu0.b32.cont [7/16] %v2159, 128
      %2201 = vxpose.xlu0.b32.cont [8/16] %v2161, 128
      %2202 = vxpose.xlu0.b32.cont [9/16] %v2163, 128
      %2203 = vxpose.xlu0.b32.cont [10/16] %v2165, 128
      %2204 = vxpose.xlu0.b32.cont [11/16] %v2167, 128
      %2205 = vxpose.xlu0.b32.cont [12/16] %v2169, 128
      %2206 = vxpose.xlu0.b32.cont [13/16] %v2171, 128
      %2207 = vxpose.xlu0.b32.cont [14/16] %v2173, 128
      %2208 = vxpose.xlu0.b32.cont [15/16] %v2175, 128
      %2209 = vxpose.xlu0.b32.end [16/16] %v2177, 128
      %v2210 = vpop.trf.xlu0
      %v2211 = vpop.trf.xlu0
      %v2212 = vpop.trf.xlu0
      %v2213 = vpop.trf.xlu0
      %v2214 = vpop.trf.xlu0
      %v2215 = vpop.trf.xlu0
      %v2216 = vpop.trf.xlu0
      %v2217 = vpop.trf.xlu0
      %v2218 = vpop.trf.xlu0
      %v2219 = vpop.trf.xlu0
      %v2220 = vpop.trf.xlu0
      %v2221 = vpop.trf.xlu0
      %v2222 = vpop.trf.xlu0
      %v2223 = vpop.trf.xlu0
      %v2224 = vpop.trf.xlu0
      %v2225 = vpop.trf.xlu0
      %2226 = vmatprep.subr.mxu0 0.0
      %2227 = vmatpush1.msra.mxu0 %v2048
      %2228 = vmatprep.subr.mxu0 0.0
      %2229 = vmatpush1.msra.mxu0 %v2049
      %2230 = vmatprep.subr.mxu0 0.0
      %2231 = vmatpush1.msra.mxu0 %v2050
      %2232 = vmatprep.subr.mxu0 0.0
      %2233 = vmatpush1.msra.mxu0 %v2051
      %2234 = vmatprep.subr.mxu0 0.0
      %2235 = vmatpush1.msra.mxu0 %v2052
      %2236 = vmatprep.subr.mxu0 0.0
      %2237 = vmatpush1.msra.mxu0 %v2053
      %2238 = vmatprep.subr.mxu0 0.0
      %2239 = vmatpush1.msra.mxu0 %v2054
      %2240 = vmatprep.subr.mxu0 0.0
      %2241 = vmatpush1.msra.mxu0 %v2055
      %2242 = vmatprep.subr.mxu0 0.0
      %2243 = vmatpush1.msra.mxu0 %v2056
      %2244 = vmatprep.subr.mxu0 0.0
      %2245 = vmatpush1.msra.mxu0 %v2057
      %2246 = vmatprep.subr.mxu0 0.0
      %2247 = vmatpush1.msra.mxu0 %v2058
      %2248 = vmatprep.subr.mxu0 0.0
      %2249 = vmatpush1.msra.mxu0 %v2059
      %2250 = vmatprep.subr.mxu0 0.0
      %2251 = vmatpush1.msra.mxu0 %v2060
      %2252 = vmatprep.subr.mxu0 0.0
      %2253 = vmatpush1.msra.mxu0 %v2061
      %2254 = vmatprep.subr.mxu0 0.0
      %2255 = vmatpush1.msra.mxu0 %v2062
      %2256 = vmatprep.subr.mxu0 0.0
      %2257 = vmatpush1.msra.mxu0 %v2063
      %2258 = vmatprep.subr.mxu0 0.0
      %2259 = vmatpush1.msra.mxu0 0.0
      %2260 = vmatprep.subr.mxu0 0.0
      %2261 = vmatpush1.msra.mxu0 0.0
      %2262 = vmatprep.subr.mxu0 0.0
      %2263 = vmatpush1.msra.mxu0 0.0
      %2264 = vmatprep.subr.mxu0 0.0
      %2265 = vmatpush1.msra.mxu0 0.0
      %2266 = vmatprep.subr.mxu0 0.0
      %2267 = vmatpush1.msra.mxu0 0.0
      %2268 = vmatprep.subr.mxu0 0.0
      %2269 = vmatpush1.msra.mxu0 0.0
      %2270 = vmatprep.subr.mxu0 0.0
      %2271 = vmatpush1.msra.mxu0 0.0
      %2272 = vmatprep.subr.mxu0 0.0
      %2273 = vmatpush1.msra.mxu0 0.0
      %2274 = vmatprep.subr.mxu0 0.0
      %2275 = vmatpush1.msra.mxu0 0.0
      %2276 = vmatprep.subr.mxu0 0.0
      %2277 = vmatpush1.msra.mxu0 0.0
      %2278 = vmatprep.subr.mxu0 0.0
      %2279 = vmatpush1.msra.mxu0 0.0
      %2280 = vmatprep.subr.mxu0 0.0
      %2281 = vmatpush1.msra.mxu0 0.0
      %2282 = vmatprep.subr.mxu0 0.0
      %2283 = vmatpush1.msra.mxu0 0.0
      %2284 = vmatprep.subr.mxu0 0.0
      %2285 = vmatpush1.msra.mxu0 0.0
      %2286 = vmatprep.subr.mxu0 0.0
      %2287 = vmatpush1.msra.mxu0 0.0
      %2288 = vmatprep.subr.mxu0 0.0
      %2289 = vmatpush1.msra.mxu0 0.0
      %2290 = vmatprep.mubr.f32.mxu0 0.0
      %2291 = vmatmul.mubr.f32.gmra.mrb[0].mxu0 %v2210
      %v2292 = vpop.f32.mrb[0].mxu0
      %v2293 = vadd.f32 0.0, %v2292
      %v2294 = vpop.f32.mrb[0].mxu0
      %2295 = vdwg.mxu0
      %v2296 = vadd.f32 %v2145, %v2293
      %vm2297 = vcmask 27648
      %2298 = vst.msk [vmem:[#allocation2] sm:$0xf] %vm2297, %v2296
      %p2299 = scmp.eq.s32.totalorder %s22, 1
      // Predicated region
      $region41: #{mdta_forward.4} parent=35 // pred_check
        %p2300 = pneg %p2299
      $region42: #{mdta_forward.4} parent=35 // pred_check_branch
        %2302 = sbr.rel (%p2300) target = $region44
      $region43: #{mdta_forward.4} parent=35 // pred_region
        %v2303 = vld [vmem:[#allocation2] sm:$0xf]
        %v2304 = vsel %vm2297, %v2303, -inf
        %2305 = vmax.xlane.f32.xlu0 %v2304
        %v2306 = vpop.xlane.xlu0 %2305
        %vm2307 = vcmask 1043456
        %v2308 = vsel %vm2307, %v2306, -inf
        %v2309 = vrot.slane %v2308, 4
        %v2310 = vmax.f32 %v2308, %v2309
        %v2311 = vrot.slane %v2310, 2
        %v2312 = vmax.f32 %v2310, %v2311
        %v2313 = vrot.slane %v2312, 1
        %v2314 = vmax.f32 %v2312, %v2313
        %v2315 = vsub.f32 %v2303, %v2314
        %v2316 = vmul.f32 %v2315, 1.442695
        %v2317 = vpow.pop %v2316
        %v2318 = vsel %vm2297, %v2317, 0.0
        %2319 = vadd.xlane.f32.xlu0 %v2318
        %v2320 = vpop.xlane.xlu0 %2319
        %v2321 = vsel %vm2307, %v2320, 0.0
        %v2322 = vrot.slane %v2321, 4
        %v2323 = vadd.f32 %v2321, %v2322
        %v2324 = vrot.slane %v2323, 2
        %v2325 = vadd.f32 %v2323, %v2324
        %v2326 = vrot.slane %v2325, 1
        %v2327 = vadd.f32 %v2325, %v2326
        %v2328 = vrcp.pop %v2327
        %v2329 = vmul.f32 %v2317, %v2328
        %v2330 = vld [vmem:[%s3] sm:$0xf]
        %v2332 = vsel %vm2128, %v2330, 0
        %v2335 = vsel %vm2128, %v2329, 0
        %2337 = vmatprep.subr.mxu0 0.0
        %2338 = vmatpush1.xpose.msra.mxu0 %v2335
        %2339 = vmatprep.subr.mxu0 0.0
        %2340 = vmatpush1.xpose.msra.mxu0 0.0
        %2341 = vmatprep.subr.mxu0 0.0
        %2342 = vmatpush1.xpose.msra.mxu0 0.0
        %2343 = vmatprep.subr.mxu0 0.0
        %2344 = vmatpush1.xpose.msra.mxu0 0.0
        %2345 = vmatprep.subr.mxu0 0.0
        %2346 = vmatpush1.xpose.msra.mxu0 0.0
        %2347 = vmatprep.subr.mxu0 0.0
        %2348 = vmatpush1.xpose.msra.mxu0 0.0
        %2349 = vmatprep.subr.mxu0 0.0
        %2350 = vmatpush1.xpose.msra.mxu0 0.0
        %2351 = vmatprep.subr.mxu0 0.0
        %2352 = vmatpush1.xpose.msra.mxu0 0.0
        %2353 = vmatprep.subr.mxu0 0.0
        %2354 = vmatpush1.xpose.msra.mxu0 0.0
        %2355 = vmatprep.subr.mxu0 0.0
        %2356 = vmatpush1.xpose.msra.mxu0 0.0
        %2357 = vmatprep.subr.mxu0 0.0
        %2358 = vmatpush1.xpose.msra.mxu0 0.0
        %2359 = vmatprep.subr.mxu0 0.0
        %2360 = vmatpush1.xpose.msra.mxu0 0.0
        %2361 = vmatprep.subr.mxu0 0.0
        %2362 = vmatpush1.xpose.msra.mxu0 0.0
        %2363 = vmatprep.subr.mxu0 0.0
        %2364 = vmatpush1.xpose.msra.mxu0 0.0
        %2365 = vmatprep.subr.mxu0 0.0
        %2366 = vmatpush1.xpose.msra.mxu0 0.0
        %2367 = vmatprep.subr.mxu0 0.0
        %2368 = vmatpush1.xpose.msra.mxu0 0.0
        %2369 = vmatprep.subr.mxu0 0.0
        %2370 = vmatpush1.xpose.msra.mxu0 0.0
        %2371 = vmatprep.subr.mxu0 0.0
        %2372 = vmatpush1.xpose.msra.mxu0 0.0
        %2373 = vmatprep.subr.mxu0 0.0
        %2374 = vmatpush1.xpose.msra.mxu0 0.0
        %2375 = vmatprep.subr.mxu0 0.0
        %2376 = vmatpush1.xpose.msra.mxu0 0.0
        %2377 = vmatprep.subr.mxu0 0.0
        %2378 = vmatpush1.xpose.msra.mxu0 0.0
        %2379 = vmatprep.subr.mxu0 0.0
        %2380 = vmatpush1.xpose.msra.mxu0 0.0
        %2381 = vmatprep.subr.mxu0 0.0
        %2382 = vmatpush1.xpose.msra.mxu0 0.0
        %2383 = vmatprep.subr.mxu0 0.0
        %2384 = vmatpush1.xpose.msra.mxu0 0.0
        %2385 = vmatprep.subr.mxu0 0.0
        %2386 = vmatpush1.xpose.msra.mxu0 0.0
        %2387 = vmatprep.subr.mxu0 0.0
        %2388 = vmatpush1.xpose.msra.mxu0 0.0
        %2389 = vmatprep.subr.mxu0 0.0
        %2390 = vmatpush1.xpose.msra.mxu0 0.0
        %2391 = vmatprep.subr.mxu0 0.0
        %2392 = vmatpush1.xpose.msra.mxu0 0.0
        %2393 = vmatprep.subr.mxu0 0.0
        %2394 = vmatpush1.xpose.msra.mxu0 0.0
        %2395 = vmatprep.subr.mxu0 0.0
        %2396 = vmatpush1.xpose.msra.mxu0 0.0
        %2397 = vmatprep.subr.mxu0 0.0
        %2398 = vmatpush1.xpose.msra.mxu0 0.0
        %2399 = vmatprep.subr.mxu0 0.0
        %2400 = vmatpush1.xpose.msra.mxu0 0.0
        %2401 = vmatprep.mubr.f32.mxu0 0.0
        %2402 = vmatmul.mubr.f32.gmra.mrb[0].mxu0 %v2332
        %v2403 = vpop.f32.mrb[0].mxu0
        %v2404 = vadd.f32 0.0, %v2403
        %v2405 = vpop.f32.mrb[0].mxu0
        %2406 = vdwg.mxu0
        %2407 = vst.msk [vmem:[%s262] sm:$0xf] %vm2297, %v2404
      $region44: #{mdta_forward.4} parent=35 // pred_fallthru
        _
      %p2408 = scmp.lt.s32.totalorder %s21, 1
      %s2409 = scalar_select %p2408, %s21, 1
      %s2410 = smul.addr %s2409, 4
      %s2411 = scalar_lea.vmem %s4, %s2410
      %s2412 = smul.u32 16, %s22
      %p2413 = scmp.lt.s32.totalorder %s21, 1
      %s2414 = scalar_select %p2413, %s21, 1
      %p2415 = scmp.lt.s32.totalorder %s2412, 31
      %s2416 = scalar_select %p2415, %s2412, 31
      %s2417 = smul.addr %s2414, 32
      %s2418 = sadd.s32 %s2416, %s2417
      %s2419 = smul.addr %s2418, 8
      %s2420 = scalar_lea.vmem %s5, %s2419
      // Predicated region
      $region45: #{mdta_forward.4} parent=35 // pred_check
        %p2421 = pneg %p141
      $region46: #{mdta_forward.4} parent=35 // pred_check_branch
        %2423 = sbr.rel (%p2421) target = $region48
      $region47: #{mdta_forward.4} parent=35 // pred_region
        _
      $region48: #{mdta_forward.4} parent=35 // pred_fallthru
        _
      // Predicated region
      $region49: #{mdta_forward.4} parent=35 // pred_check
        %p2424 = pneg %p169
      $region50: #{mdta_forward.4} parent=35 // pred_check_branch
        %2426 = sbr.rel (%p2424) target = $region52
      $region51: #{mdta_forward.4} parent=35 // pred_region
        %s2427 = smul.u32 16, %s22
      $region52: #{mdta_forward.4} parent=35 // pred_fallthru
        _
    $region36: #{mdta_forward.4} parent=5 // pred_fallthru
      _
    %p2428 = scmp.le.s32.totalorder 2, %s12
    // Predicated region
    $region53: #{mdta_forward.4} parent=5 // pred_check
      %p2429 = pneg %p2428
    $region54: #{mdta_forward.4} parent=5 // pred_check_branch
      %2431 = sbr.rel (%p2429) target = $region56
    $region55: #{mdta_forward.4} parent=5 // pred_region
      %s2432 = ssub.s32 %s12, 2
      // Predicated region
      $region57: #{mdta_forward.4} parent=55 // pred_check
        %p2433 = pneg %p147
      $region58: #{mdta_forward.4} parent=55 // pred_check_branch
        %2435 = sbr.rel (%p2433) target = $region60
      $region59: #{mdta_forward.4} parent=55 // pred_region
        %p2436 = scmp.lt.s32.totalorder %s23, 1
        %s2437 = scalar_select %p2436, %s23, 1
        %s2438 = smul.addr %s2437, 4
        %s2439 = scalar_lea.vmem %s4, %s2438
      $region60: #{mdta_forward.4} parent=55 // pred_fallthru
        _
      // Predicated region
      $region61: #{mdta_forward.4} parent=55 // pred_check
        %p2440 = pneg %p175
      $region62: #{mdta_forward.4} parent=55 // pred_check_branch
        %2442 = sbr.rel (%p2440) target = $region64
      $region63: #{mdta_forward.4} parent=55 // pred_region
        %s2443 = smul.u32 16, %s24
        %p2444 = scmp.lt.s32.totalorder %s23, 1
        %s2445 = scalar_select %p2444, %s23, 1
        %p2446 = scmp.lt.s32.totalorder %s2443, 31
        %s2447 = scalar_select %p2446, %s2443, 31
        %s2448 = smul.addr %s2445, 32
        %s2449 = sadd.s32 %s2447, %s2448
        %s2450 = smul.addr %s2449, 8
        %s2451 = scalar_lea.vmem %s5, %s2450
      $region64: #{mdta_forward.4} parent=55 // pred_fallthru
        _
    $region56: #{mdta_forward.4} parent=5 // pred_fallthru
      _
  $region6: #{mdta_forward.4} parent=0 // loop_footer
    %s16 = sadd.s32 1, %s12
  $region7: #{mdta_forward.4} parent=0 // loop_footer_branch
    %11 = sbr.rel target = $region3
  $region8: #{mdta_forward.4} parent=0 // loop_exit
    _

</llo_original>
